<compile_context>
chip_gen: v5e
topology: v5e:2x2
jax: 0.10.0
libtpu: 0.0.40
codegen_flags: <defaults>
</compile_context>

<pallas_src>
import jax
import jax.numpy as jnp
from jax import lax
from jax.experimental import pallas as pl
from jax.experimental.pallas import tpu as pltpu

K = 7                 # Conv3d kernel_size
P = (K - 1) // 2      # padding = 3


def spatial_attention_kernel(wsub_ref, x_ref, o_ref, qpad_ref):
    """One grid step handles `bblk` batch elements.

    wsub_ref : VMEM (K, 2*HW, HW) bf16     banded conv weights (constant block)
    x_ref    : VMEM (bblk, C, D, HW)       input block (lane-dense minor dim)
    o_ref    : VMEM (bblk, C, D, HW)       output block
    qpad_ref : VMEM (bblk, D + 2P, 2*HW) bf16   depth-padded pooled maps;
               lanes [0:HW] hold the channel-max map, [HW:2HW] the channel-mean.
    """
    B, C, D, HW = x_ref.shape

    # ---- channel pooling (read x_ref once; no f32 block copy stays live) ----
    xv = x_ref[...]
    mx = jnp.max(xv, axis=1)                                   # (B, D, HW)
    av = jnp.mean(xv.astype(jnp.float32), axis=1)              # (B, D, HW)

    # ---- write pooled maps into the depth-padded bf16 scratch ---------------
    # Only the +-P halo rows are zeroed (interior fully rewritten every step);
    # done per step so batch-axis sharding across TensorCores stays correct.
    zhalo = jnp.zeros((B, P, 2 * HW), jnp.bfloat16)
    qpad_ref[:, 0:P, :] = zhalo
    qpad_ref[:, P + D:P + D + P, :] = zhalo
    qpad_ref[:, P:P + D, 0:HW] = mx.astype(jnp.bfloat16)
    qpad_ref[:, P:P + D, HW:2 * HW] = av.astype(jnp.bfloat16)

    # ---- 7x7x7 conv as K accumulated MXU matmuls ----------------------------
    # Per depth tap kd: (B*D, 2*HW) @ (2*HW, HW), bf16 in / f32 accumulate.
    # The (kh, kw) taps and the H/W zero padding are encoded in the banded
    # weight; the depth padding is the halo rows of qpad.
    acc = jnp.zeros((B * D, HW), jnp.float32)
    for kd in range(K):                       # static, fully unrolled (K = 7)
        lhs = qpad_ref[:, kd:kd + D, :].reshape(B * D, 2 * HW)  # bf16
        acc = acc + jnp.dot(lhs, wsub_ref[kd],
                            preferred_element_type=jnp.float32)

    # ---- sigmoid + broadcast multiply (re-read x_ref; dense lane stores) ----
    att = jax.nn.sigmoid(acc).reshape(B, 1, D, HW)
    o_ref[...] = (att * x_ref[...]).astype(o_ref.dtype)


def _banded_conv_weights(weight, H, W):
    """Fold (kh, kw) taps and BOTH input channels into banded (2*HW, HW) mats.

    weight: (1, 2, K, K, K)  ->  (K, 2*HW, HW) bf16 with
      out[kd, c*HW + h_in*W + w_in, h_out*W + w_out]
        = weight[0, c, kd, h_in - h_out + P, w_in - w_out + P]
      (zero outside the 7x7 band, which also encodes the H/W zero padding).
    """
    HW = H * W
    idx = jnp.arange(HW)
    h_i, w_i = idx // W, idx % W
    kh = h_i[:, None] - h_i[None, :] + P               # (HW_in, HW_out)
    kw = w_i[:, None] - w_i[None, :] + P
    valid = (kh >= 0) & (kh < K) & (kw >= 0) & (kw < K)
    kh_c = jnp.clip(kh, 0, K - 1)
    kw_c = jnp.clip(kw, 0, K - 1)
    w0 = weight[0].astype(jnp.float32)                 # (2, K, K, K)
    band = w0[:, :, kh_c, kw_c]                        # (2, K, HW, HW)
    band = jnp.where(valid[None, None], band, 0.0)
    band = jnp.transpose(band, (1, 0, 2, 3))           # (K, 2, HW, HW)
    return band.reshape(K, 2 * HW, HW).astype(jnp.bfloat16)


def spatial_attention(x, weight):
    """x: (N, C, D, H, W); weight: (1, 2, K, K, K) (Conv3d weight, no bias)."""
    N, C, D, H, W = x.shape
    HW = H * W
    # TODO(synk): for large H*W (e.g. H=W>=32) the (2*HW, HW) banded weight no
    # longer fits v7x's 64 MiB VMEM; band only along W ((W, W) slabs, kh taps
    # via sublane shifts of qpad) or tile the HW axis before scaling this up.

    x2 = x.reshape(N, C, D, HW)                        # lane-dense minor dim
    wsub = _banded_conv_weights(weight, H, W)          # (K, 2*HW, HW) bf16

    itemsize = x.dtype.itemsize
    per_batch_io = C * D * HW * itemsize
    # >= 2 grid steps whenever N >= 2 (v7x megacore); ~2 MiB input-tile target.
    bblk = max(1, min(N if N < 2 else N // 2,
                      (2 << 20) // max(per_batch_io, 1)))
    while N % bblk:
        bblk -= 1

    # Explicit VMEM budget: weight (double-buffered constant block) + in/out
    # tiles (double-buffered) + bf16 scratch, with headroom for relayouts.
    weight_bytes = 2 * wsub.size * wsub.dtype.itemsize
    io_bytes = 4 * bblk * per_batch_io
    qpad_bytes = bblk * (D + 2 * P) * 2 * HW * 2
    vmem_limit = int(min(2 * (weight_bytes + io_bytes + qpad_bytes) + (8 << 20),
                         64 << 20))

    out2 = pl.pallas_call(
        spatial_attention_kernel,
        out_shape=jax.ShapeDtypeStruct((N, C, D, HW), x.dtype),
        grid_spec=pltpu.PrefetchScalarGridSpec(
            num_scalar_prefetch=0,
            grid=(N // bblk,),
            in_specs=[
                # Banded conv weights: constant block index -> fetched once.
                pl.BlockSpec((K, 2 * HW, HW), lambda n: (0, 0, 0)),
                pl.BlockSpec((bblk, C, D, HW), lambda n: (n, 0, 0, 0)),
            ],
            out_specs=pl.BlockSpec((bblk, C, D, HW), lambda n: (n, 0, 0, 0)),
            scratch_shapes=[
                pltpu.VMEM((bblk, D + 2 * P, 2 * HW), jnp.bfloat16),
            ],
        ),
        compiler_params=pltpu.CompilerParams(
            dimension_semantics=("parallel",),
            vmem_limit_bytes=vmem_limit,
        ),
    )(wsub, x2)
    return out2.reshape(N, C, D, H, W)


def reference(x, weight):
    """Pure-JAX reference matching the PyTorch forward (f32 precision)."""
    mx = jnp.max(x, axis=1, keepdims=True)
    av = jnp.mean(x, axis=1, keepdims=True)
    cat = jnp.concatenate([mx, av], axis=1)
    conv = lax.conv_general_dilated(
        cat, weight,
        window_strides=(1, 1, 1),
        padding=[(P, P), (P, P), (P, P)],
        dimension_numbers=("NCDHW", "OIDHW", "NCDHW"),
        precision=lax.Precision.HIGHEST,
    )
    return jax.nn.sigmoid(conv) * x


if __name__ == "__main__":
    key = jax.random.PRNGKey(0)
    kx, kw = jax.random.split(key)

    # Small shapes implied by the forward: 5-D input (N, C, D, H, W).
    N, C, D, H, W = 2, 4, 8, 16, 16
    x = jax.random.normal(kx, (N, C, D, H, W), dtype=jnp.float32)
    # Deterministic synthetic Conv3d weight: (out=1, in=2, K, K, K), no bias.
    weight = jax.random.normal(kw, (1, 2, K, K, K), dtype=jnp.float32) * 0.05

    y = spatial_attention(x, weight)
    jax.block_until_ready(y)

    y_ref = reference(x, weight)
    assert y.shape == x.shape and y.dtype == x.dtype
    err = float(jnp.max(jnp.abs(y - y_ref)))
    # Kernel uses single-pass bf16-in / f32-accumulate MXU matmuls, so compare
    # against the f32 reference with a bf16-class tolerance.
    assert jnp.allclose(y, y_ref, rtol=1e-2, atol=1e-2), err

    print("KERNEL_OK")
</pallas_src>

<mosaic_0001>
module attributes {stable_mosaic.version = 11 : i64} {
  func.func @spatial_attention_kernel(%arg0: i32, %arg1: memref<7x512x256xbf16, #tpu.memory_space<vmem>>, %arg2: memref<1x4x8x256xf32, #tpu.memory_space<vmem>>, %arg3: memref<1x4x8x256xf32, #tpu.memory_space<vmem>>, %arg4: memref<1x14x512xbf16, #tpu.memory_space<vmem>>) attributes {dimension_semantics = [#tpu.dimension_semantics<parallel>], iteration_bounds = array<i64: 2>, scalar_prefetch = 0 : i64, scratch_operands = 1 : i64, tpu.core_type = #tpu.core_type<tc>, window_params = [{pipeline_mode = #tpu.pipeline_mode<synchronous>, transform_indices = @transform_0, window_bounds = array<i64: 7, 512, 256>}, {transform_indices = @transform_1, window_bounds = array<i64: 1, 4, 8, 256>}, {transform_indices = @transform_2, window_bounds = array<i64: 1, 4, 8, 256>}]} {
    %c0 = arith.constant 0 : index
    %c0_0 = arith.constant 0 : index
    %c0_1 = arith.constant 0 : index
    %c0_2 = arith.constant 0 : index
    %0 = vector.load %arg2[%c0, %c0_0, %c0_1, %c0_2] : memref<1x4x8x256xf32, #tpu.memory_space<vmem>>, vector<1x4x8x256xf32>
    %cst = arith.constant dense<0xFF800000> : vector<1x8x256xf32>
    %1 = vector.multi_reduction <maximumf>, %0, %cst [1] : vector<1x4x8x256xf32> to vector<1x8x256xf32>
    %cst_3 = arith.constant dense<0.000000e+00> : vector<1x8x256xf32>
    %2 = vector.multi_reduction <add>, %0, %cst_3 [1] : vector<1x4x8x256xf32> to vector<1x8x256xf32>
    %cst_4 = arith.constant 4.000000e+00 : f32
    %3 = vector.broadcast %cst_4 : f32 to vector<1x8x256xf32>
    %4 = arith.divf %2, %3 : vector<1x8x256xf32>
    %cst_5 = arith.constant 0.000000e+00 : bf16
    %5 = vector.broadcast %cst_5 : bf16 to vector<1x3x512xbf16>
    %c0_6 = arith.constant 0 : index
    %c0_7 = arith.constant 0 : index
    %c0_8 = arith.constant 0 : index
    %6 = vector.load %arg4[%c0_6, %c0_7, %c0_8] : memref<1x14x512xbf16, #tpu.memory_space<vmem>>, vector<1x3x512xbf16>
    tpu.vector_store %arg4[%c0_6, %c0_7, %c0_8], %5 {strides = array<i32>} : memref<1x14x512xbf16, #tpu.memory_space<vmem>>, vector<1x3x512xbf16>,
    %c0_9 = arith.constant 0 : index
    %c11 = arith.constant 11 : index
    %c0_10 = arith.constant 0 : index
    %7 = vector.load %arg4[%c0_9, %c11, %c0_10] : memref<1x14x512xbf16, #tpu.memory_space<vmem>>, vector<1x3x512xbf16>
    tpu.vector_store %arg4[%c0_9, %c11, %c0_10], %5 {strides = array<i32>} : memref<1x14x512xbf16, #tpu.memory_space<vmem>>, vector<1x3x512xbf16>,
    %8 = arith.truncf %1 : vector<1x8x256xf32> to vector<1x8x256xbf16>
    %c0_11 = arith.constant 0 : index
    %c3 = arith.constant 3 : index
    %c0_12 = arith.constant 0 : index
    %9 = vector.load %arg4[%c0_11, %c3, %c0_12] : memref<1x14x512xbf16, #tpu.memory_space<vmem>>, vector<1x8x256xbf16>
    tpu.vector_store %arg4[%c0_11, %c3, %c0_12], %8 {strides = array<i32>} : memref<1x14x512xbf16, #tpu.memory_space<vmem>>, vector<1x8x256xbf16>,
    %10 = arith.truncf %4 : vector<1x8x256xf32> to vector<1x8x256xbf16>
    %c0_13 = arith.constant 0 : index
    %c3_14 = arith.constant 3 : index
    %c256 = arith.constant 256 : index
    %11 = vector.load %arg4[%c0_13, %c3_14, %c256] : memref<1x14x512xbf16, #tpu.memory_space<vmem>>, vector<1x8x256xbf16>
    tpu.vector_store %arg4[%c0_13, %c3_14, %c256], %10 {strides = array<i32>} : memref<1x14x512xbf16, #tpu.memory_space<vmem>>, vector<1x8x256xbf16>,
    %cst_15 = arith.constant 0.000000e+00 : f32
    %12 = vector.broadcast %cst_15 : f32 to vector<8x256xf32>
    %c0_16 = arith.constant 0 : index
    %c0_17 = arith.constant 0 : index
    %c0_18 = arith.constant 0 : index
    %13 = vector.load %arg4[%c0_16, %c0_17, %c0_18] : memref<1x14x512xbf16, #tpu.memory_space<vmem>>, vector<1x8x512xbf16>
    %14 = vector.shape_cast %13 : vector<1x8x512xbf16> to vector<8x512xbf16>
    %c0_19 = arith.constant 0 : index
    %c0_20 = arith.constant 0 : index
    %c0_21 = arith.constant 0 : index
    %15 = vector.load %arg1[%c0_19, %c0_20, %c0_21] : memref<7x512x256xbf16, #tpu.memory_space<vmem>>, vector<1x512x256xbf16>
    %16 = vector.shape_cast %15 : vector<1x512x256xbf16> to vector<512x256xbf16>
    %cst_22 = arith.constant dense<0.000000e+00> : vector<8x256xf32>
    %17 = tpu.matmul %14, %16, %cst_22 {dimension_numbers = #tpu.dot_dimension_numbers<[1], [0], [0], [1], [0, 0, 1, 1], [], []>} : vector<8x512xbf16>, vector<512x256xbf16>, vector<8x256xf32> -> vector<8x256xf32>
    %18 = arith.addf %12, %17 : vector<8x256xf32>
    %c0_23 = arith.constant 0 : index
    %c1 = arith.constant 1 : index
    %c0_24 = arith.constant 0 : index
    %19 = vector.load %arg4[%c0_23, %c1, %c0_24] : memref<1x14x512xbf16, #tpu.memory_space<vmem>>, vector<1x8x512xbf16>
    %20 = vector.shape_cast %19 : vector<1x8x512xbf16> to vector<8x512xbf16>
    %c1_25 = arith.constant 1 : index
    %c0_26 = arith.constant 0 : index
    %c0_27 = arith.constant 0 : index
    %21 = vector.load %arg1[%c1_25, %c0_26, %c0_27] : memref<7x512x256xbf16, #tpu.memory_space<vmem>>, vector<1x512x256xbf16>
    %22 = vector.shape_cast %21 : vector<1x512x256xbf16> to vector<512x256xbf16>
    %cst_28 = arith.constant dense<0.000000e+00> : vector<8x256xf32>
    %23 = tpu.matmul %20, %22, %cst_28 {dimension_numbers = #tpu.dot_dimension_numbers<[1], [0], [0], [1], [0, 0, 1, 1], [], []>} : vector<8x512xbf16>, vector<512x256xbf16>, vector<8x256xf32> -> vector<8x256xf32>
    %24 = arith.addf %18, %23 : vector<8x256xf32>
    %c0_29 = arith.constant 0 : index
    %c2 = arith.constant 2 : index
    %c0_30 = arith.constant 0 : index
    %25 = vector.load %arg4[%c0_29, %c2, %c0_30] : memref<1x14x512xbf16, #tpu.memory_space<vmem>>, vector<1x8x512xbf16>
    %26 = vector.shape_cast %25 : vector<1x8x512xbf16> to vector<8x512xbf16>
    %c2_31 = arith.constant 2 : index
    %c0_32 = arith.constant 0 : index
    %c0_33 = arith.constant 0 : index
    %27 = vector.load %arg1[%c2_31, %c0_32, %c0_33] : memref<7x512x256xbf16, #tpu.memory_space<vmem>>, vector<1x512x256xbf16>
    %28 = vector.shape_cast %27 : vector<1x512x256xbf16> to vector<512x256xbf16>
    %cst_34 = arith.constant dense<0.000000e+00> : vector<8x256xf32>
    %29 = tpu.matmul %26, %28, %cst_34 {dimension_numbers = #tpu.dot_dimension_numbers<[1], [0], [0], [1], [0, 0, 1, 1], [], []>} : vector<8x512xbf16>, vector<512x256xbf16>, vector<8x256xf32> -> vector<8x256xf32>
    %30 = arith.addf %24, %29 : vector<8x256xf32>
    %c0_35 = arith.constant 0 : index
    %c3_36 = arith.constant 3 : index
    %c0_37 = arith.constant 0 : index
    %31 = vector.load %arg4[%c0_35, %c3_36, %c0_37] : memref<1x14x512xbf16, #tpu.memory_space<vmem>>, vector<1x8x512xbf16>
    %32 = vector.shape_cast %31 : vector<1x8x512xbf16> to vector<8x512xbf16>
    %c3_38 = arith.constant 3 : index
    %c0_39 = arith.constant 0 : index
    %c0_40 = arith.constant 0 : index
    %33 = vector.load %arg1[%c3_38, %c0_39, %c0_40] : memref<7x512x256xbf16, #tpu.memory_space<vmem>>, vector<1x512x256xbf16>
    %34 = vector.shape_cast %33 : vector<1x512x256xbf16> to vector<512x256xbf16>
    %cst_41 = arith.constant dense<0.000000e+00> : vector<8x256xf32>
    %35 = tpu.matmul %32, %34, %cst_41 {dimension_numbers = #tpu.dot_dimension_numbers<[1], [0], [0], [1], [0, 0, 1, 1], [], []>} : vector<8x512xbf16>, vector<512x256xbf16>, vector<8x256xf32> -> vector<8x256xf32>
    %36 = arith.addf %30, %35 : vector<8x256xf32>
    %c0_42 = arith.constant 0 : index
    %c4 = arith.constant 4 : index
    %c0_43 = arith.constant 0 : index
    %37 = vector.load %arg4[%c0_42, %c4, %c0_43] : memref<1x14x512xbf16, #tpu.memory_space<vmem>>, vector<1x8x512xbf16>
    %38 = vector.shape_cast %37 : vector<1x8x512xbf16> to vector<8x512xbf16>
    %c4_44 = arith.constant 4 : index
    %c0_45 = arith.constant 0 : index
    %c0_46 = arith.constant 0 : index
    %39 = vector.load %arg1[%c4_44, %c0_45, %c0_46] : memref<7x512x256xbf16, #tpu.memory_space<vmem>>, vector<1x512x256xbf16>
    %40 = vector.shape_cast %39 : vector<1x512x256xbf16> to vector<512x256xbf16>
    %cst_47 = arith.constant dense<0.000000e+00> : vector<8x256xf32>
    %41 = tpu.matmul %38, %40, %cst_47 {dimension_numbers = #tpu.dot_dimension_numbers<[1], [0], [0], [1], [0, 0, 1, 1], [], []>} : vector<8x512xbf16>, vector<512x256xbf16>, vector<8x256xf32> -> vector<8x256xf32>
    %42 = arith.addf %36, %41 : vector<8x256xf32>
    %c0_48 = arith.constant 0 : index
    %c5 = arith.constant 5 : index
    %c0_49 = arith.constant 0 : index
    %43 = vector.load %arg4[%c0_48, %c5, %c0_49] : memref<1x14x512xbf16, #tpu.memory_space<vmem>>, vector<1x8x512xbf16>
    %44 = vector.shape_cast %43 : vector<1x8x512xbf16> to vector<8x512xbf16>
    %c5_50 = arith.constant 5 : index
    %c0_51 = arith.constant 0 : index
    %c0_52 = arith.constant 0 : index
    %45 = vector.load %arg1[%c5_50, %c0_51, %c0_52] : memref<7x512x256xbf16, #tpu.memory_space<vmem>>, vector<1x512x256xbf16>
    %46 = vector.shape_cast %45 : vector<1x512x256xbf16> to vector<512x256xbf16>
    %cst_53 = arith.constant dense<0.000000e+00> : vector<8x256xf32>
    %47 = tpu.matmul %44, %46, %cst_53 {dimension_numbers = #tpu.dot_dimension_numbers<[1], [0], [0], [1], [0, 0, 1, 1], [], []>} : vector<8x512xbf16>, vector<512x256xbf16>, vector<8x256xf32> -> vector<8x256xf32>
    %48 = arith.addf %42, %47 : vector<8x256xf32>
    %c0_54 = arith.constant 0 : index
    %c6 = arith.constant 6 : index
    %c0_55 = arith.constant 0 : index
    %49 = vector.load %arg4[%c0_54, %c6, %c0_55] : memref<1x14x512xbf16, #tpu.memory_space<vmem>>, vector<1x8x512xbf16>
    %50 = vector.shape_cast %49 : vector<1x8x512xbf16> to vector<8x512xbf16>
    %c6_56 = arith.constant 6 : index
    %c0_57 = arith.constant 0 : index
    %c0_58 = arith.constant 0 : index
    %51 = vector.load %arg1[%c6_56, %c0_57, %c0_58] : memref<7x512x256xbf16, #tpu.memory_space<vmem>>, vector<1x512x256xbf16>
    %52 = vector.shape_cast %51 : vector<1x512x256xbf16> to vector<512x256xbf16>
    %cst_59 = arith.constant dense<0.000000e+00> : vector<8x256xf32>
    %53 = tpu.matmul %50, %52, %cst_59 {dimension_numbers = #tpu.dot_dimension_numbers<[1], [0], [0], [1], [0, 0, 1, 1], [], []>} : vector<8x512xbf16>, vector<512x256xbf16>, vector<8x256xf32> -> vector<8x256xf32>
    %54 = arith.addf %48, %53 : vector<8x256xf32>
    %55 = arith.negf %54 : vector<8x256xf32>
    %56 = math.exp %55 : vector<8x256xf32>
    %cst_60 = arith.constant 1.000000e+00 : f32
    %57 = vector.broadcast %cst_60 : f32 to vector<8x256xf32>
    %58 = arith.addf %57, %56 : vector<8x256xf32>
    %59 = arith.divf %57, %58 : vector<8x256xf32>
    %60 = vector.shape_cast %59 : vector<8x256xf32> to vector<1x1x8x256xf32>
    %c0_61 = arith.constant 0 : index
    %c0_62 = arith.constant 0 : index
    %c0_63 = arith.constant 0 : index
    %c0_64 = arith.constant 0 : index
    %61 = vector.load %arg2[%c0_61, %c0_62, %c0_63, %c0_64] : memref<1x4x8x256xf32, #tpu.memory_space<vmem>>, vector<1x4x8x256xf32>
    %62 = vector.broadcast %60 : vector<1x1x8x256xf32> to vector<1x4x8x256xf32>
    %63 = arith.mulf %62, %61 : vector<1x4x8x256xf32>
    %c0_65 = arith.constant 0 : index
    %c0_66 = arith.constant 0 : index
    %c0_67 = arith.constant 0 : index
    %c0_68 = arith.constant 0 : index
    %64 = vector.load %arg3[%c0_65, %c0_66, %c0_67, %c0_68] : memref<1x4x8x256xf32, #tpu.memory_space<vmem>>, vector<1x4x8x256xf32>
    tpu.vector_store %arg3[%c0_65, %c0_66, %c0_67, %c0_68], %63 {strides = array<i32>} : memref<1x4x8x256xf32, #tpu.memory_space<vmem>>, vector<1x4x8x256xf32>,
    return
  }
  func.func @transform_0(%arg0: i32) -> (i32, i32, i32) {
    %c0_i32 = arith.constant 0 : i32
    %c0_i32_0 = arith.constant 0 : i32
    %c0_i32_1 = arith.constant 0 : i32
    %c0_i32_2 = arith.constant 0 : i32
    return %c0_i32, %c0_i32_0, %c0_i32_1 : i32, i32, i32
  }
  func.func @transform_1(%arg0: i32) -> (i32, i32, i32, i32) {
    %c0_i32 = arith.constant 0 : i32
    %c0_i32_0 = arith.constant 0 : i32
    %c0_i32_1 = arith.constant 0 : i32
    %c0_i32_2 = arith.constant 0 : i32
    return %arg0, %c0_i32, %c0_i32_0, %c0_i32_1 : i32, i32, i32, i32
  }
  func.func @transform_2(%arg0: i32) -> (i32, i32, i32, i32) {
    %c0_i32 = arith.constant 0 : i32
    %c0_i32_0 = arith.constant 0 : i32
    %c0_i32_1 = arith.constant 0 : i32
    %c0_i32_2 = arith.constant 0 : i32
    return %arg0, %c0_i32, %c0_i32_0, %c0_i32_1 : i32, i32, i32, i32
  }
}

</mosaic_0001>

<llo_original>
// kernel: tpu_custom_call.1
$region0: #{tpu_custom_call.1}
  #allocation0 [shape = 'u32[]', space=smem, size = 0x4, offset = 0x4, fixed_abs, tag = 'smem constant byte address 0x4 - core index']
  #allocation1 [shape = 'u32[72,128]{1,0:T(1,128)}', space=vmem, size = 0x9000, scoped, tag = 'internal scratch']
  #allocation2 [shape = 'bf16[1,14,512]{2,1,0:T(8,128)(2,1)}', space=vmem, size = 0x4000, scoped, tag = 'scratch operand']
  %s0 = inlined_call_operand.hbm [shape: bf16[7,512,256], index: 0, kind: input, shape index: {}]
  %s1 = inlined_call_operand.hbm [shape: f32[2,4,8,256], index: 1, kind: input, shape index: {}]
  %s2 = inlined_call_operand.hbm [shape: f32[2,4,8,256], index: 2, kind: output, shape index: {}]
  %s3 = sld [smem:[#allocation0]]
  $region49: #{tpu_custom_call.1} parent=0
    _
  %s5 = ssub.s32 1, %s3
  %s6 = scalar_select 0, %s5, %s3
  $region1: #{tpu_custom_call.1} parent=0
    #allocation3 [shape = 'u8[1835008]{0}', space=vmem, size = 0x1c0000, scoped, tag = 'input window, operand 0, single buffered']
    #allocation4 [shape = 's32[2]{0}', space=sflag, size = 0x8, scoped, tag = 'scoped memory for tpu_custom_call.1']
    #allocation5 [shape = 's32[2]{0}', space=sflag, size = 0x8, scoped, tag = 'scoped memory for tpu_custom_call.1']
    #allocation6 [shape = 'u8[65536]{0}', space=vmem, size = 0x10000, scoped, tag = 'input window, operand 1']
    #allocation7 [shape = 's32[2]{0}', space=sflag, size = 0x8, scoped, tag = 'scoped memory for tpu_custom_call.1']
    #allocation8 [shape = 'u8[65536]{0}', space=vmem, size = 0x10000, scoped, tag = 'output window, operand 0']
    %7 = vsyncpa [#allocation4], 0
    %8 = vsyncpa [#allocation7], 0
    %s9 = scalar_lea.sflag [#allocation7], 1
    %10 = vsyncpa %s9, 0
    %11 = vsyncpa [#allocation5], 0
    %s12 = scalar_lea.sflag [#allocation5], 1
    %13 = vsyncpa %s12, 0
    loop: start=0, step=1, limit=4
    $region2: #{tpu_custom_call.1} parent=1 // loop_pre_header
      _
    $region3: #{tpu_custom_call.1} parent=1 // loop_header
      %s15 = sphi 0, %s19
      %p16 = scmp.ge.s32.totalorder %s15, 4
      %s23 = sphi 0, %s23
      %s25 = sphi 0, %s23
      %s26 = sphi 0, %s25
      %s40 = sphi 0, %s26
      %s46 = sphi 0, %s48
      %s49 = sphi 0, %s46
      %s50 = sphi 0, %s49
      %s66 = sphi 0, %s50
      %s72 = sphi 0, %s74
      %s75 = sphi 0, %s72
      %s76 = sphi 0, %s75
      %s92 = sphi 0, %s76
    $region4: #{tpu_custom_call.1} parent=1 // loop_header_branch
      %18 = sbr.rel (%p16) target = $region8
    $region5: #{tpu_custom_call.1} parent=1 // loop_body
      %s20 = ssub.s32 %s15, 1
      %s21 = ssub.s32 %s15, 2
      %s22 = sadd.s32 %s15, 1
      %s24 = sadd.s32 %s23, 1
      %p27 = scmp.eq.s32.totalorder %s15, 1
      %p28 = scmp.ne.s32.totalorder %s23, %s25
      %p29 = scmp.eq.s32.totalorder %s15, 0
      %p30 = por %p28, %p29
      %p31 = scmp.ne.s32.totalorder %s23, %s25
      %p32 = scmp.eq.s32.totalorder %s20, 1
      %p33 = por %p31, %p32
      %p34 = scmp.ne.s32.totalorder %s25, %s26
      %p35 = scmp.eq.s32.totalorder %s20, 0
      %p36 = por %p34, %p35
      %p37 = scmp.ne.s32.totalorder %s25, %s26
      %p38 = scmp.eq.s32.totalorder %s21, 1
      %p39 = por %p37, %p38
      %p41 = scmp.ne.s32.totalorder %s26, %s40
      %p42 = scmp.eq.s32.totalorder %s21, 0
      %p43 = por %p41, %p42
      %s44 = ssub.s32 %s15, %s22
      %p45 = scmp.eq.s32.totalorder %s44, 0
      %s47 = sadd.s32 %s46, 1
      %s48 = scalar_select %p45, %s46, %s47
      %p51 = pneg %p45
      %p52 = scmp.eq.s32.totalorder %s15, 1
      %p53 = por %p51, %p52
      %p54 = scmp.ne.s32.totalorder %s46, %s49
      %p55 = scmp.eq.s32.totalorder %s15, 0
      %p56 = por %p54, %p55
      %p57 = scmp.ne.s32.totalorder %s46, %s49
      %p58 = scmp.eq.s32.totalorder %s20, 1
      %p59 = por %p57, %p58
      %p60 = scmp.ne.s32.totalorder %s49, %s50
      %p61 = scmp.eq.s32.totalorder %s20, 0
      %p62 = por %p60, %p61
      %p63 = scmp.ne.s32.totalorder %s49, %s50
      %p64 = scmp.eq.s32.totalorder %s21, 1
      %p65 = por %p63, %p64
      %p67 = scmp.ne.s32.totalorder %s50, %s66
      %p68 = scmp.eq.s32.totalorder %s21, 0
      %p69 = por %p67, %p68
      %s70 = ssub.s32 %s15, %s22
      %p71 = scmp.eq.s32.totalorder %s70, 0
      %s73 = sadd.s32 %s72, 1
      %s74 = scalar_select %p71, %s72, %s73
      %p77 = pneg %p71
      %p78 = scmp.eq.s32.totalorder %s15, 1
      %p79 = por %p77, %p78
      %p80 = scmp.ne.s32.totalorder %s72, %s75
      %p81 = scmp.eq.s32.totalorder %s15, 0
      %p82 = por %p80, %p81
      %p83 = scmp.ne.s32.totalorder %s72, %s75
      %p84 = scmp.eq.s32.totalorder %s20, 1
      %p85 = por %p83, %p84
      %p86 = scmp.ne.s32.totalorder %s75, %s76
      %p87 = scmp.eq.s32.totalorder %s20, 0
      %p88 = por %p86, %p87
      %p89 = scmp.ne.s32.totalorder %s75, %s76
      %p90 = scmp.eq.s32.totalorder %s21, 1
      %p91 = por %p89, %p90
      %p93 = scmp.ne.s32.totalorder %s76, %s92
      %p94 = scmp.eq.s32.totalorder %s21, 0
      %p95 = por %p93, %p94
      %p96 = scmp.le.s32.totalorder 1, %s15
      %p97 = scmp.lt.s32.totalorder %s15, 3
      %p98 = pnand %p96, %p97
      %p99 = pneg %p98
      // Predicated region
      $region9: #{tpu_custom_call.1} parent=5 // pred_check
        _
      $region10: #{tpu_custom_call.1} parent=5 // pred_check_branch
        %101 = sbr.rel (%p98) target = $region12
      $region11: #{tpu_custom_call.1} parent=5 // pred_region
        %s102 = ssub.s32 %s15, 1
        // Predicated region
        $region13: #{tpu_custom_call.1} parent=11 // pred_check
          %p103 = pneg %p36
        $region14: #{tpu_custom_call.1} parent=11 // pred_check_branch
          %105 = sbr.rel (%p103) target = $region16
        $region15: #{tpu_custom_call.1} parent=11 // pred_region
          %107 = vsyncadd [#allocation4], 0
          %s108 = sshll.u32 %s0, 4
          %s109 = int_to_ptr.hbm [resolvable:$true] %s108
          %s110 = sshll.u32 [#allocation3], 4
          %s111 = int_to_ptr.vmem [resolvable:$true] %s110
          %116 = dma.hbm_to_vmem [thread:$0]  %s109, 57344, %s111, [#allocation4], 128, 128, 8
        $region16: #{tpu_custom_call.1} parent=11 // pred_fallthru
          _
      $region12: #{tpu_custom_call.1} parent=5 // pred_fallthru
        _
      %p117 = scmp.lt.s32.totalorder %s15, 2
      // Predicated region
      $region17: #{tpu_custom_call.1} parent=5 // pred_check
        %p118 = pneg %p117
      $region18: #{tpu_custom_call.1} parent=5 // pred_check_branch
        %120 = sbr.rel (%p118) target = $region20
      $region19: #{tpu_custom_call.1} parent=5 // pred_region
        // Predicated region
        $region21: #{tpu_custom_call.1} parent=19 // pred_check
          %p121 = pneg %p56
        $region22: #{tpu_custom_call.1} parent=19 // pred_check_branch
          %123 = sbr.rel (%p121) target = $region24
        $region23: #{tpu_custom_call.1} parent=19 // pred_region
          %s124 = sand.u32 %s46, 1
          %s125 = scalar_lea.sflag [#allocation7], %s124
          %s126 = sand.u32 %s46, 1
          %s127 = smul.addr %s126, 64
          %s128 = scalar_lea.vmem [#allocation6], %s127
          %130 = vsyncadd %s125, 0
          %s131 = smul.addr %s15, 8
          %s132 = smul.addr %s131, 8
          %s133 = scalar_lea.hbm %s1, %s132
          %s134 = sshll.u32 %s133, 4
          %s135 = int_to_ptr.hbm [resolvable:$true] %s134
          %s136 = sshll.u32 %s128, 4
          %s137 = int_to_ptr.vmem [resolvable:$true] %s136
          %142 = dma.hbm_to_vmem [thread:$0]  %s135, 1024, %s137, %s125, 256, 256, 16
        $region24: #{tpu_custom_call.1} parent=19 // pred_fallthru
          _
      $region20: #{tpu_custom_call.1} parent=5 // pred_fallthru
        _
      %p143 = scmp.le.s32.totalorder 1, %s15
      %p144 = scmp.lt.s32.totalorder %s15, 3
      %p145 = pnand %p143, %p144
      %p146 = pneg %p145
      // Predicated region
      $region25: #{tpu_custom_call.1} parent=5 // pred_check
        _
      $region26: #{tpu_custom_call.1} parent=5 // pred_check_branch
        %148 = sbr.rel (%p145) target = $region28
      $region27: #{tpu_custom_call.1} parent=5 // pred_region
        %s149 = ssub.s32 %s15, 1
        // Predicated region
        $region29: #{tpu_custom_call.1} parent=27 // pred_check
          %p150 = pneg %p36
        $region30: #{tpu_custom_call.1} parent=27 // pred_check_branch
          %152 = sbr.rel (%p150) target = $region32
        $region31: #{tpu_custom_call.1} parent=27 // pred_region
          %154 = dma.done [#allocation4], 57344
        $region32: #{tpu_custom_call.1} parent=27 // pred_fallthru
          _
        %s155 = sand.u32 %s49, 1
        %s156 = scalar_lea.sflag [#allocation7], %s155
        %s157 = sand.u32 %s49, 1
        %s158 = smul.addr %s157, 64
        %s159 = scalar_lea.vmem [#allocation6], %s158
        // Predicated region
        $region33: #{tpu_custom_call.1} parent=27 // pred_check
          %p160 = pneg %p62
        $region34: #{tpu_custom_call.1} parent=27 // pred_check_branch
          %162 = sbr.rel (%p160) target = $region36
        $region35: #{tpu_custom_call.1} parent=27 // pred_region
          %164 = dma.done %s156, 1024
        $region36: #{tpu_custom_call.1} parent=27 // pred_fallthru
          _
        %p165 = pneg %p36
        %p166 = pneg %p33
        %s167 = sand.u32 %s49, 1
        %s168 = scalar_lea.sflag [#allocation7], %s167
        %s169 = sand.u32 %s49, 1
        %s170 = smul.addr %s169, 64
        %s171 = scalar_lea.vmem [#allocation6], %s170
        %p172 = pneg %p62
        %p173 = pneg %p59
        %p174 = pneg %p88
        %p175 = pneg %p85
        %s176 = sand.u32 %s75, 1
        %s177 = scalar_lea.sflag [#allocation5], %s176
        %s178 = sand.u32 %s75, 1
        %s179 = smul.addr %s178, 64
        %s180 = scalar_lea.vmem [#allocation8], %s179
        %v182 = vld [vmem:[%s159] sm:$0xff]
        %v183 = vld [vmem:[%s159 + $0x8] sm:$0xff]
        %v184 = vld [vmem:[%s159 + $0x10] sm:$0xff]
        %v185 = vld [vmem:[%s159 + $0x18] sm:$0xff]
        %v186 = vld [vmem:[%s159 + $0x20] sm:$0xff]
        %v187 = vld [vmem:[%s159 + $0x28] sm:$0xff]
        %v188 = vld [vmem:[%s159 + $0x30] sm:$0xff]
        %v189 = vld [vmem:[%s159 + $0x38] sm:$0xff]
        %v190 = vmax.f32 %v182, %v186
        %v191 = vmax.f32 %v184, %v188
        %v192 = vmax.f32 %v190, %v191
        %v193 = vmax.f32 %v183, %v187
        %v194 = vmax.f32 %v185, %v189
        %v195 = vmax.f32 %v193, %v194
        %v196 = vadd.f32 %v182, %v184
        %v197 = vadd.f32 %v196, %v186
        %v198 = vadd.f32 %v197, %v188
        %v199 = vadd.f32 %v183, %v185
        %v200 = vadd.f32 %v199, %v187
        %v201 = vadd.f32 %v200, %v189
        %v202 = vrcp.pop 4.0
        %v203 = vmul.f32 4.0, %v202
        %v204 = vsub.f32 1.0, %v203
        %v205 = vmul.f32 %v202, %v204
        %v206 = vadd.f32 %v202, %v205
        %vm207 = vweird.f32 %v202
        %v208 = vsel %vm207, %v202, %v206
        %v209 = vmul.f32 %v198, %v208
        %v210 = vmul.f32 %v201, %v208
        %vm211 = vcmask 1041408
        %vm212 = vsmask.f32 1280
        %vm213 = vmand %vm211, %vm212
        %vm214 = vcmask 1045508
        %vm215 = vsmask.f32 5376
        %vm216 = vmand %vm214, %vm215
        %vm217 = vmor %vm216, %vm213
        %v218 = vld [vmem:[#allocation2] sm:$0x33]
        %v219 = vsel %vm217, 0, %v218
        %220 = vst [vmem:[#allocation2] sm:$0x33] %v219
        %v221 = vld [vmem:[#allocation2 + $0x8] sm:$0x33]
        %v222 = vsel %vm217, 0, %v221
        %223 = vst [vmem:[#allocation2 + $0x8] sm:$0x33] %v222
        %vm224 = vcmask 1042433
        %vm225 = vsmask.f32 7942
        %vm226 = vmand %vm224, %vm225
        %vm227 = vcmask 1046533
        %vm228 = vsmask.f32 7958
        %vm229 = vmand %vm227, %vm228
        %vm230 = vmor %vm229, %vm226
        %v231 = vld [vmem:[#allocation2 + $0x10] sm:$0x66]
        %v232 = vsel %vm230, 0, %v231
        %233 = vst [vmem:[#allocation2 + $0x10] sm:$0x66] %v232
        %v234 = vld [vmem:[#allocation2 + $0x18] sm:$0x66]
        %v235 = vsel %vm230, 0, %v234
        %236 = vst [vmem:[#allocation2 + $0x18] sm:$0x66] %v235
        %v237 = vpack.c.bf16 %v195, %v192
        %v239 = vshrl.u32 %v237, 16
        %v241 = vrot.slane %v239, 6
        %v242 = vshll.u32 %v237, 16
        %v244 = vrot.slane %v242, 7
        %v245 = vor.u32 %v241, %v244
        %v246 = vrot.slane %v245, 4
        %vm249 = vcmask 1043457
        %vm250 = vmand %vm249, %vm225
        %vm251 = vcmask 1047557
        %vm252 = vmand %vm251, %vm228
        %vm253 = vmor %vm252, %vm250
        %v254 = vld [vmem:[#allocation2] sm:$0xee]
        %v255 = vsel %vm253, %v245, %v254
        %256 = vst [vmem:[#allocation2] sm:$0xee] %v255
        %v257 = vld [vmem:[#allocation2 + $0x10] sm:$0x33]
        %v258 = vsel %vm217, %v246, %v257
        %259 = vst [vmem:[#allocation2 + $0x10] sm:$0x33] %v258
        %v260 = vpack.c.bf16 %v210, %v209
        %v262 = vshrl.u32 %v260, 16
        %v264 = vrot.slane %v262, 6
        %v265 = vshll.u32 %v260, 16
        %v267 = vrot.slane %v265, 7
        %v268 = vor.u32 %v264, %v267
        %v269 = vrot.slane %v268, 4
        %v272 = vld [vmem:[#allocation2 + $0x8] sm:$0xee]
        %v273 = vsel %vm253, %v268, %v272
        %274 = vst [vmem:[#allocation2 + $0x8] sm:$0xee] %v273
        %v275 = vld [vmem:[#allocation2 + $0x18] sm:$0x33]
        %v276 = vsel %vm217, %v269, %v275
        %277 = vst [vmem:[#allocation2 + $0x18] sm:$0x33] %v276
        %v278 = vld [vmem:[#allocation2] sm:$0xff]
        %v279 = vld [vmem:[#allocation2 + $0x8] sm:$0xff]
        %v280 = vld [vmem:[#allocation3] sm:$0xff]
        %v281 = vld [vmem:[#allocation3 + $0x8] sm:$0xff]
        %v282 = vld [vmem:[#allocation3 + $0x10] sm:$0xff]
        %v283 = vld [vmem:[#allocation3 + $0x18] sm:$0xff]
        %v284 = vld [vmem:[#allocation3 + $0x20] sm:$0xff]
        %v285 = vld [vmem:[#allocation3 + $0x28] sm:$0xff]
        %v286 = vld [vmem:[#allocation3 + $0x30] sm:$0xff]
        %v287 = vld [vmem:[#allocation3 + $0x38] sm:$0xff]
        %v288 = vld [vmem:[#allocation3 + $0x40] sm:$0xff]
        %v289 = vld [vmem:[#allocation3 + $0x48] sm:$0xff]
        %v290 = vld [vmem:[#allocation3 + $0x50] sm:$0xff]
        %v291 = vld [vmem:[#allocation3 + $0x58] sm:$0xff]
        %v292 = vld [vmem:[#allocation3 + $0x60] sm:$0xff]
        %v293 = vld [vmem:[#allocation3 + $0x68] sm:$0xff]
        %v294 = vld [vmem:[#allocation3 + $0x70] sm:$0xff]
        %v295 = vld [vmem:[#allocation3 + $0x78] sm:$0xff]
        %v296 = vld [vmem:[#allocation3 + $0x80] sm:$0xff]
        %v297 = vld [vmem:[#allocation3 + $0x88] sm:$0xff]
        %v298 = vld [vmem:[#allocation3 + $0x90] sm:$0xff]
        %v299 = vld [vmem:[#allocation3 + $0x98] sm:$0xff]
        %v300 = vld [vmem:[#allocation3 + $0xa0] sm:$0xff]
        %v301 = vld [vmem:[#allocation3 + $0xa8] sm:$0xff]
        %v302 = vld [vmem:[#allocation3 + $0xb0] sm:$0xff]
        %v303 = vld [vmem:[#allocation3 + $0xb8] sm:$0xff]
        %v304 = vld [vmem:[#allocation3 + $0xc0] sm:$0xff]
        %v305 = vld [vmem:[#allocation3 + $0xc8] sm:$0xff]
        %v306 = vld [vmem:[#allocation3 + $0xd0] sm:$0xff]
        %v307 = vld [vmem:[#allocation3 + $0xd8] sm:$0xff]
        %v308 = vld [vmem:[#allocation3 + $0xe0] sm:$0xff]
        %v309 = vld [vmem:[#allocation3 + $0xe8] sm:$0xff]
        %v310 = vld [vmem:[#allocation3 + $0xf0] sm:$0xff]
        %v311 = vld [vmem:[#allocation3 + $0xf8] sm:$0xff]
        %v312 = vld [vmem:[#allocation3 + $0x100] sm:$0xff]
        %v313 = vld [vmem:[#allocation3 + $0x108] sm:$0xff]
        %v314 = vld [vmem:[#allocation3 + $0x110] sm:$0xff]
        %v315 = vld [vmem:[#allocation3 + $0x118] sm:$0xff]
        %v316 = vld [vmem:[#allocation3 + $0x120] sm:$0xff]
        %v317 = vld [vmem:[#allocation3 + $0x128] sm:$0xff]
        %v318 = vld [vmem:[#allocation3 + $0x130] sm:$0xff]
        %v319 = vld [vmem:[#allocation3 + $0x138] sm:$0xff]
        %v320 = vld [vmem:[#allocation3 + $0x140] sm:$0xff]
        %v321 = vld [vmem:[#allocation3 + $0x148] sm:$0xff]
        %v322 = vld [vmem:[#allocation3 + $0x150] sm:$0xff]
        %v323 = vld [vmem:[#allocation3 + $0x158] sm:$0xff]
        %v324 = vld [vmem:[#allocation3 + $0x160] sm:$0xff]
        %v325 = vld [vmem:[#allocation3 + $0x168] sm:$0xff]
        %v326 = vld [vmem:[#allocation3 + $0x170] sm:$0xff]
        %v327 = vld [vmem:[#allocation3 + $0x178] sm:$0xff]
        %v328 = vld [vmem:[#allocation3 + $0x180] sm:$0xff]
        %v329 = vld [vmem:[#allocation3 + $0x188] sm:$0xff]
        %v330 = vld [vmem:[#allocation3 + $0x190] sm:$0xff]
        %v331 = vld [vmem:[#allocation3 + $0x198] sm:$0xff]
        %v332 = vld [vmem:[#allocation3 + $0x1a0] sm:$0xff]
        %v333 = vld [vmem:[#allocation3 + $0x1a8] sm:$0xff]
        %v334 = vld [vmem:[#allocation3 + $0x1b0] sm:$0xff]
        %v335 = vld [vmem:[#allocation3 + $0x1b8] sm:$0xff]
        %v336 = vld [vmem:[#allocation3 + $0x1c0] sm:$0xff]
        %v337 = vld [vmem:[#allocation3 + $0x1c8] sm:$0xff]
        %v338 = vld [vmem:[#allocation3 + $0x1d0] sm:$0xff]
        %v339 = vld [vmem:[#allocation3 + $0x1d8] sm:$0xff]
        %v340 = vld [vmem:[#allocation3 + $0x1e0] sm:$0xff]
        %v341 = vld [vmem:[#allocation3 + $0x1e8] sm:$0xff]
        %v342 = vld [vmem:[#allocation3 + $0x1f0] sm:$0xff]
        %v343 = vld [vmem:[#allocation3 + $0x1f8] sm:$0xff]
        %v344 = vld [vmem:[#allocation2 + $0x10] sm:$0x11]
        %v345 = vld [vmem:[#allocation2 + $0x18] sm:$0x11]
        %s346 = scalar_lea.vmem [#allocation3], 512
        %v347 = vld [vmem:[%s346] sm:$0xff]
        %v348 = vld [vmem:[%s346 + $0x8] sm:$0xff]
        %v349 = vld [vmem:[%s346 + $0x10] sm:$0xff]
        %v350 = vld [vmem:[%s346 + $0x18] sm:$0xff]
        %v351 = vld [vmem:[%s346 + $0x20] sm:$0xff]
        %v352 = vld [vmem:[%s346 + $0x28] sm:$0xff]
        %v353 = vld [vmem:[%s346 + $0x30] sm:$0xff]
        %v354 = vld [vmem:[%s346 + $0x38] sm:$0xff]
        %v355 = vld [vmem:[%s346 + $0x40] sm:$0xff]
        %v356 = vld [vmem:[%s346 + $0x48] sm:$0xff]
        %v357 = vld [vmem:[%s346 + $0x50] sm:$0xff]
        %v358 = vld [vmem:[%s346 + $0x58] sm:$0xff]
        %v359 = vld [vmem:[%s346 + $0x60] sm:$0xff]
        %v360 = vld [vmem:[%s346 + $0x68] sm:$0xff]
        %v361 = vld [vmem:[%s346 + $0x70] sm:$0xff]
        %v362 = vld [vmem:[%s346 + $0x78] sm:$0xff]
        %v363 = vld [vmem:[%s346 + $0x80] sm:$0xff]
        %v364 = vld [vmem:[%s346 + $0x88] sm:$0xff]
        %v365 = vld [vmem:[%s346 + $0x90] sm:$0xff]
        %v366 = vld [vmem:[%s346 + $0x98] sm:$0xff]
        %v367 = vld [vmem:[%s346 + $0xa0] sm:$0xff]
        %v368 = vld [vmem:[%s346 + $0xa8] sm:$0xff]
        %v369 = vld [vmem:[%s346 + $0xb0] sm:$0xff]
        %v370 = vld [vmem:[%s346 + $0xb8] sm:$0xff]
        %v371 = vld [vmem:[%s346 + $0xc0] sm:$0xff]
        %v372 = vld [vmem:[%s346 + $0xc8] sm:$0xff]
        %v373 = vld [vmem:[%s346 + $0xd0] sm:$0xff]
        %v374 = vld [vmem:[%s346 + $0xd8] sm:$0xff]
        %v375 = vld [vmem:[%s346 + $0xe0] sm:$0xff]
        %v376 = vld [vmem:[%s346 + $0xe8] sm:$0xff]
        %v377 = vld [vmem:[%s346 + $0xf0] sm:$0xff]
        %v378 = vld [vmem:[%s346 + $0xf8] sm:$0xff]
        %v379 = vld [vmem:[%s346 + $0x100] sm:$0xff]
        %v380 = vld [vmem:[%s346 + $0x108] sm:$0xff]
        %v381 = vld [vmem:[%s346 + $0x110] sm:$0xff]
        %v382 = vld [vmem:[%s346 + $0x118] sm:$0xff]
        %v383 = vld [vmem:[%s346 + $0x120] sm:$0xff]
        %v384 = vld [vmem:[%s346 + $0x128] sm:$0xff]
        %v385 = vld [vmem:[%s346 + $0x130] sm:$0xff]
        %v386 = vld [vmem:[%s346 + $0x138] sm:$0xff]
        %v387 = vld [vmem:[%s346 + $0x140] sm:$0xff]
        %v388 = vld [vmem:[%s346 + $0x148] sm:$0xff]
        %v389 = vld [vmem:[%s346 + $0x150] sm:$0xff]
        %v390 = vld [vmem:[%s346 + $0x158] sm:$0xff]
        %v391 = vld [vmem:[%s346 + $0x160] sm:$0xff]
        %v392 = vld [vmem:[%s346 + $0x168] sm:$0xff]
        %v393 = vld [vmem:[%s346 + $0x170] sm:$0xff]
        %v394 = vld [vmem:[%s346 + $0x178] sm:$0xff]
        %v395 = vld [vmem:[%s346 + $0x180] sm:$0xff]
        %v396 = vld [vmem:[%s346 + $0x188] sm:$0xff]
        %v397 = vld [vmem:[%s346 + $0x190] sm:$0xff]
        %v398 = vld [vmem:[%s346 + $0x198] sm:$0xff]
        %v399 = vld [vmem:[%s346 + $0x1a0] sm:$0xff]
        %v400 = vld [vmem:[%s346 + $0x1a8] sm:$0xff]
        %v401 = vld [vmem:[%s346 + $0x1b0] sm:$0xff]
        %v402 = vld [vmem:[%s346 + $0x1b8] sm:$0xff]
        %v403 = vld [vmem:[%s346 + $0x1c0] sm:$0xff]
        %v404 = vld [vmem:[%s346 + $0x1c8] sm:$0xff]
        %v405 = vld [vmem:[%s346 + $0x1d0] sm:$0xff]
        %v406 = vld [vmem:[%s346 + $0x1d8] sm:$0xff]
        %v407 = vld [vmem:[%s346 + $0x1e0] sm:$0xff]
        %v408 = vld [vmem:[%s346 + $0x1e8] sm:$0xff]
        %v409 = vld [vmem:[%s346 + $0x1f0] sm:$0xff]
        %v410 = vld [vmem:[%s346 + $0x1f8] sm:$0xff]
        %v415 = vunpack.c.l.b16 %v278
        %v416 = vunpack.c.h.b16 %v278
        %v417 = vunpack.c.l.b16 %v279
        %v418 = vunpack.c.h.b16 %v279
        %v419 = vunpack.c.l.b16 %v344
        %v420 = vunpack.c.h.b16 %v344
        %v421 = vunpack.c.l.b16 %v345
        %v422 = vunpack.c.h.b16 %v345
        %v423 = vpack.c.b16 %v419, %v415
        %v424 = vpack.c.b16 %v420, %v416
        %v425 = vpack.c.b16 %v421, %v417
        %v426 = vpack.c.b16 %v422, %v418
        %v428 = vshrl.u32 %v423, 16
        %v430 = vshll.u32 %v423, 16
        %v432 = vrot.slane %v430, 1
        %v433 = vor.u32 %v428, %v432
        %v435 = vshrl.u32 %v424, 16
        %v437 = vshll.u32 %v424, 16
        %v439 = vrot.slane %v437, 1
        %v440 = vor.u32 %v435, %v439
        %v442 = vshrl.u32 %v425, 16
        %v444 = vshll.u32 %v425, 16
        %v446 = vrot.slane %v444, 1
        %v447 = vor.u32 %v442, %v446
        %v449 = vshrl.u32 %v426, 16
        %v451 = vshll.u32 %v426, 16
        %v453 = vrot.slane %v451, 1
        %v454 = vor.u32 %v449, %v453
        %v523 = vunpack.c.l.b16 %v347
        %v524 = vunpack.c.h.b16 %v347
        %v525 = vunpack.c.l.b16 %v348
        %v526 = vunpack.c.h.b16 %v348
        %v527 = vunpack.c.l.b16 %v349
        %v528 = vunpack.c.h.b16 %v349
        %v529 = vunpack.c.l.b16 %v350
        %v530 = vunpack.c.h.b16 %v350
        %v531 = vunpack.c.l.b16 %v351
        %v532 = vunpack.c.h.b16 %v351
        %v533 = vunpack.c.l.b16 %v352
        %v534 = vunpack.c.h.b16 %v352
        %v535 = vunpack.c.l.b16 %v353
        %v536 = vunpack.c.h.b16 %v353
        %v537 = vunpack.c.l.b16 %v354
        %v538 = vunpack.c.h.b16 %v354
        %v539 = vunpack.c.l.b16 %v355
        %v540 = vunpack.c.h.b16 %v355
        %v541 = vunpack.c.l.b16 %v356
        %v542 = vunpack.c.h.b16 %v356
        %v543 = vunpack.c.l.b16 %v357
        %v544 = vunpack.c.h.b16 %v357
        %v545 = vunpack.c.l.b16 %v358
        %v546 = vunpack.c.h.b16 %v358
        %v547 = vunpack.c.l.b16 %v359
        %v548 = vunpack.c.h.b16 %v359
        %v549 = vunpack.c.l.b16 %v360
        %v550 = vunpack.c.h.b16 %v360
        %v551 = vunpack.c.l.b16 %v361
        %v552 = vunpack.c.h.b16 %v361
        %v553 = vunpack.c.l.b16 %v362
        %v554 = vunpack.c.h.b16 %v362
        %v555 = vunpack.c.l.b16 %v363
        %v556 = vunpack.c.h.b16 %v363
        %v557 = vunpack.c.l.b16 %v364
        %v558 = vunpack.c.h.b16 %v364
        %v559 = vunpack.c.l.b16 %v365
        %v560 = vunpack.c.h.b16 %v365
        %v561 = vunpack.c.l.b16 %v366
        %v562 = vunpack.c.h.b16 %v366
        %v563 = vunpack.c.l.b16 %v367
        %v564 = vunpack.c.h.b16 %v367
        %v565 = vunpack.c.l.b16 %v368
        %v566 = vunpack.c.h.b16 %v368
        %v567 = vunpack.c.l.b16 %v369
        %v568 = vunpack.c.h.b16 %v369
        %v569 = vunpack.c.l.b16 %v370
        %v570 = vunpack.c.h.b16 %v370
        %v571 = vunpack.c.l.b16 %v371
        %v572 = vunpack.c.h.b16 %v371
        %v573 = vunpack.c.l.b16 %v372
        %v574 = vunpack.c.h.b16 %v372
        %v575 = vunpack.c.l.b16 %v373
        %v576 = vunpack.c.h.b16 %v373
        %v577 = vunpack.c.l.b16 %v374
        %v578 = vunpack.c.h.b16 %v374
        %v579 = vunpack.c.l.b16 %v375
        %v580 = vunpack.c.h.b16 %v375
        %v581 = vunpack.c.l.b16 %v376
        %v582 = vunpack.c.h.b16 %v376
        %v583 = vunpack.c.l.b16 %v377
        %v584 = vunpack.c.h.b16 %v377
        %v585 = vunpack.c.l.b16 %v378
        %v586 = vunpack.c.h.b16 %v378
        %v587 = vunpack.c.l.b16 %v379
        %v588 = vunpack.c.h.b16 %v379
        %v589 = vunpack.c.l.b16 %v380
        %v590 = vunpack.c.h.b16 %v380
        %v591 = vunpack.c.l.b16 %v381
        %v592 = vunpack.c.h.b16 %v381
        %v593 = vunpack.c.l.b16 %v382
        %v594 = vunpack.c.h.b16 %v382
        %v595 = vunpack.c.l.b16 %v383
        %v596 = vunpack.c.h.b16 %v383
        %v597 = vunpack.c.l.b16 %v384
        %v598 = vunpack.c.h.b16 %v384
        %v599 = vunpack.c.l.b16 %v385
        %v600 = vunpack.c.h.b16 %v385
        %v601 = vunpack.c.l.b16 %v386
        %v602 = vunpack.c.h.b16 %v386
        %v603 = vunpack.c.l.b16 %v387
        %v604 = vunpack.c.h.b16 %v387
        %v605 = vunpack.c.l.b16 %v388
        %v606 = vunpack.c.h.b16 %v388
        %v607 = vunpack.c.l.b16 %v389
        %v608 = vunpack.c.h.b16 %v389
        %v609 = vunpack.c.l.b16 %v390
        %v610 = vunpack.c.h.b16 %v390
        %v611 = vunpack.c.l.b16 %v391
        %v612 = vunpack.c.h.b16 %v391
        %v613 = vunpack.c.l.b16 %v392
        %v614 = vunpack.c.h.b16 %v392
        %v615 = vunpack.c.l.b16 %v393
        %v616 = vunpack.c.h.b16 %v393
        %v617 = vunpack.c.l.b16 %v394
        %v618 = vunpack.c.h.b16 %v394
        %v619 = vunpack.c.l.b16 %v395
        %v620 = vunpack.c.h.b16 %v395
        %v621 = vunpack.c.l.b16 %v396
        %v622 = vunpack.c.h.b16 %v396
        %v623 = vunpack.c.l.b16 %v397
        %v624 = vunpack.c.h.b16 %v397
        %v625 = vunpack.c.l.b16 %v398
        %v626 = vunpack.c.h.b16 %v398
        %v627 = vunpack.c.l.b16 %v399
        %v628 = vunpack.c.h.b16 %v399
        %v629 = vunpack.c.l.b16 %v400
        %v630 = vunpack.c.h.b16 %v400
        %v631 = vunpack.c.l.b16 %v401
        %v632 = vunpack.c.h.b16 %v401
        %v633 = vunpack.c.l.b16 %v402
        %v634 = vunpack.c.h.b16 %v402
        %v635 = vunpack.c.l.b16 %v403
        %v636 = vunpack.c.h.b16 %v403
        %v637 = vunpack.c.l.b16 %v404
        %v638 = vunpack.c.h.b16 %v404
        %v639 = vunpack.c.l.b16 %v405
        %v640 = vunpack.c.h.b16 %v405
        %v641 = vunpack.c.l.b16 %v406
        %v642 = vunpack.c.h.b16 %v406
        %v643 = vunpack.c.l.b16 %v407
        %v644 = vunpack.c.h.b16 %v407
        %v645 = vunpack.c.l.b16 %v408
        %v646 = vunpack.c.h.b16 %v408
        %v647 = vunpack.c.l.b16 %v409
        %v648 = vunpack.c.h.b16 %v409
        %v649 = vunpack.c.l.b16 %v410
        %v650 = vunpack.c.h.b16 %v410
        %v651 = vpack.c.b16 %v525, %v523
        %v652 = vpack.c.b16 %v526, %v524
        %v653 = vpack.c.b16 %v529, %v527
        %v654 = vpack.c.b16 %v530, %v528
        %v655 = vpack.c.b16 %v533, %v531
        %v656 = vpack.c.b16 %v534, %v532
        %v657 = vpack.c.b16 %v537, %v535
        %v658 = vpack.c.b16 %v538, %v536
        %v659 = vpack.c.b16 %v541, %v539
        %v660 = vpack.c.b16 %v542, %v540
        %v661 = vpack.c.b16 %v545, %v543
        %v662 = vpack.c.b16 %v546, %v544
        %v663 = vpack.c.b16 %v549, %v547
        %v664 = vpack.c.b16 %v550, %v548
        %v665 = vpack.c.b16 %v553, %v551
        %v666 = vpack.c.b16 %v554, %v552
        %v667 = vpack.c.b16 %v557, %v555
        %v668 = vpack.c.b16 %v558, %v556
        %v669 = vpack.c.b16 %v561, %v559
        %v670 = vpack.c.b16 %v562, %v560
        %v671 = vpack.c.b16 %v565, %v563
        %v672 = vpack.c.b16 %v566, %v564
        %v673 = vpack.c.b16 %v569, %v567
        %v674 = vpack.c.b16 %v570, %v568
        %v675 = vpack.c.b16 %v573, %v571
        %v676 = vpack.c.b16 %v574, %v572
        %v677 = vpack.c.b16 %v577, %v575
        %v678 = vpack.c.b16 %v578, %v576
        %v679 = vpack.c.b16 %v581, %v579
        %v680 = vpack.c.b16 %v582, %v580
        %v681 = vpack.c.b16 %v585, %v583
        %v682 = vpack.c.b16 %v586, %v584
        %v683 = vpack.c.b16 %v589, %v587
        %v684 = vpack.c.b16 %v590, %v588
        %v685 = vpack.c.b16 %v593, %v591
        %v686 = vpack.c.b16 %v594, %v592
        %v687 = vpack.c.b16 %v597, %v595
        %v688 = vpack.c.b16 %v598, %v596
        %v689 = vpack.c.b16 %v601, %v599
        %v690 = vpack.c.b16 %v602, %v600
        %v691 = vpack.c.b16 %v605, %v603
        %v692 = vpack.c.b16 %v606, %v604
        %v693 = vpack.c.b16 %v609, %v607
        %v694 = vpack.c.b16 %v610, %v608
        %v695 = vpack.c.b16 %v613, %v611
        %v696 = vpack.c.b16 %v614, %v612
        %v697 = vpack.c.b16 %v617, %v615
        %v698 = vpack.c.b16 %v618, %v616
        %v699 = vpack.c.b16 %v621, %v619
        %v700 = vpack.c.b16 %v622, %v620
        %v701 = vpack.c.b16 %v625, %v623
        %v702 = vpack.c.b16 %v626, %v624
        %v703 = vpack.c.b16 %v629, %v627
        %v704 = vpack.c.b16 %v630, %v628
        %v705 = vpack.c.b16 %v633, %v631
        %v706 = vpack.c.b16 %v634, %v632
        %v707 = vpack.c.b16 %v637, %v635
        %v708 = vpack.c.b16 %v638, %v636
        %v709 = vpack.c.b16 %v641, %v639
        %v710 = vpack.c.b16 %v642, %v640
        %v711 = vpack.c.b16 %v645, %v643
        %v712 = vpack.c.b16 %v646, %v644
        %v713 = vpack.c.b16 %v649, %v647
        %v714 = vpack.c.b16 %v650, %v648
        %779 = vmatpush.bf16.msra.mxu0 %v665
        %780 = vmatpush.bf16.msra.mxu0 %v663
        %781 = vmatpush.bf16.msra.mxu0 %v661
        %782 = vmatpush.bf16.msra.mxu0 %v659
        %783 = vmatpush.bf16.msra.mxu0 %v657
        %784 = vmatpush.bf16.msra.mxu0 %v655
        %785 = vmatpush.bf16.msra.mxu0 %v653
        %786 = vmatpush.bf16.msra.mxu0 %v651
        %787 = vmatmul.bf16.gmra.mxu0 %v433
        %v788 = vpop.f32.mrf.mxu0
        %v789 = vadd.f32 0.0, %v788
        %v790 = vpop.f32.mrf.mxu0
        %791 = vdwg.mxu0
        %792 = vmatpush.bf16.msra.mxu0 %v681
        %793 = vmatpush.bf16.msra.mxu0 %v679
        %794 = vmatpush.bf16.msra.mxu0 %v677
        %795 = vmatpush.bf16.msra.mxu0 %v675
        %796 = vmatpush.bf16.msra.mxu0 %v673
        %797 = vmatpush.bf16.msra.mxu0 %v671
        %798 = vmatpush.bf16.msra.mxu0 %v669
        %799 = vmatpush.bf16.msra.mxu0 %v667
        %800 = vmatmul.bf16.gmra.mxu0 %v440
        %v801 = vpop.f32.mrf.mxu0
        %v802 = vadd.f32 %v789, %v801
        %v803 = vpop.f32.mrf.mxu0
        %804 = vdwg.mxu0
        %805 = vmatpush.bf16.msra.mxu0 %v697
        %806 = vmatpush.bf16.msra.mxu0 %v695
        %807 = vmatpush.bf16.msra.mxu0 %v693
        %808 = vmatpush.bf16.msra.mxu0 %v691
        %809 = vmatpush.bf16.msra.mxu0 %v689
        %810 = vmatpush.bf16.msra.mxu0 %v687
        %811 = vmatpush.bf16.msra.mxu0 %v685
        %812 = vmatpush.bf16.msra.mxu0 %v683
        %813 = vmatmul.bf16.gmra.mxu0 %v447
        %v814 = vpop.f32.mrf.mxu0
        %v815 = vadd.f32 %v802, %v814
        %v816 = vpop.f32.mrf.mxu0
        %817 = vdwg.mxu0
        %818 = vmatpush.bf16.msra.mxu0 %v713
        %819 = vmatpush.bf16.msra.mxu0 %v711
        %820 = vmatpush.bf16.msra.mxu0 %v709
        %821 = vmatpush.bf16.msra.mxu0 %v707
        %822 = vmatpush.bf16.msra.mxu0 %v705
        %823 = vmatpush.bf16.msra.mxu0 %v703
        %824 = vmatpush.bf16.msra.mxu0 %v701
        %825 = vmatpush.bf16.msra.mxu0 %v699
        %826 = vmatmul.bf16.gmra.mxu0 %v454
        %v827 = vpop.f32.mrf.mxu0
        %v828 = vadd.f32 %v815, %v827
        %v829 = vpop.f32.mrf.mxu0
        %830 = vdwg.mxu0
        %831 = vmatpush.bf16.msra.mxu0 %v666
        %832 = vmatpush.bf16.msra.mxu0 %v664
        %833 = vmatpush.bf16.msra.mxu0 %v662
        %834 = vmatpush.bf16.msra.mxu0 %v660
        %835 = vmatpush.bf16.msra.mxu0 %v658
        %836 = vmatpush.bf16.msra.mxu0 %v656
        %837 = vmatpush.bf16.msra.mxu0 %v654
        %838 = vmatpush.bf16.msra.mxu0 %v652
        %839 = vmatmul.bf16.gmra.mxu0 %v433
        %v840 = vpop.f32.mrf.mxu0
        %v841 = vadd.f32 0.0, %v840
        %v842 = vpop.f32.mrf.mxu0
        %843 = vdwg.mxu0
        %844 = vmatpush.bf16.msra.mxu0 %v682
        %845 = vmatpush.bf16.msra.mxu0 %v680
        %846 = vmatpush.bf16.msra.mxu0 %v678
        %847 = vmatpush.bf16.msra.mxu0 %v676
        %848 = vmatpush.bf16.msra.mxu0 %v674
        %849 = vmatpush.bf16.msra.mxu0 %v672
        %850 = vmatpush.bf16.msra.mxu0 %v670
        %851 = vmatpush.bf16.msra.mxu0 %v668
        %852 = vmatmul.bf16.gmra.mxu0 %v440
        %v853 = vpop.f32.mrf.mxu0
        %v854 = vadd.f32 %v841, %v853
        %v855 = vpop.f32.mrf.mxu0
        %856 = vdwg.mxu0
        %857 = vmatpush.bf16.msra.mxu0 %v698
        %858 = vmatpush.bf16.msra.mxu0 %v696
        %859 = vmatpush.bf16.msra.mxu0 %v694
        %860 = vmatpush.bf16.msra.mxu0 %v692
        %861 = vmatpush.bf16.msra.mxu0 %v690
        %862 = vmatpush.bf16.msra.mxu0 %v688
        %863 = vmatpush.bf16.msra.mxu0 %v686
        %864 = vmatpush.bf16.msra.mxu0 %v684
        %865 = vmatmul.bf16.gmra.mxu0 %v447
        %v866 = vpop.f32.mrf.mxu0
        %v867 = vadd.f32 %v854, %v866
        %v868 = vpop.f32.mrf.mxu0
        %869 = vdwg.mxu0
        %870 = vmatpush.bf16.msra.mxu0 %v714
        %871 = vmatpush.bf16.msra.mxu0 %v712
        %872 = vmatpush.bf16.msra.mxu0 %v710
        %873 = vmatpush.bf16.msra.mxu0 %v708
        %874 = vmatpush.bf16.msra.mxu0 %v706
        %875 = vmatpush.bf16.msra.mxu0 %v704
        %876 = vmatpush.bf16.msra.mxu0 %v702
        %877 = vmatpush.bf16.msra.mxu0 %v700
        %878 = vmatmul.bf16.gmra.mxu0 %v454
        %v879 = vpop.f32.mrf.mxu0
        %v880 = vadd.f32 %v867, %v879
        %v881 = vpop.f32.mrf.mxu0
        %882 = vdwg.mxu0
        %v883 = vpack.c.b16 %v415, %v415
        %v884 = vpack.c.b16 %v416, %v416
        %v885 = vpack.c.b16 %v417, %v417
        %v886 = vpack.c.b16 %v418, %v418
        %v955 = vunpack.c.l.b16 %v280
        %v956 = vunpack.c.h.b16 %v280
        %v957 = vunpack.c.l.b16 %v281
        %v958 = vunpack.c.h.b16 %v281
        %v959 = vunpack.c.l.b16 %v282
        %v960 = vunpack.c.h.b16 %v282
        %v961 = vunpack.c.l.b16 %v283
        %v962 = vunpack.c.h.b16 %v283
        %v963 = vunpack.c.l.b16 %v284
        %v964 = vunpack.c.h.b16 %v284
        %v965 = vunpack.c.l.b16 %v285
        %v966 = vunpack.c.h.b16 %v285
        %v967 = vunpack.c.l.b16 %v286
        %v968 = vunpack.c.h.b16 %v286
        %v969 = vunpack.c.l.b16 %v287
        %v970 = vunpack.c.h.b16 %v287
        %v971 = vunpack.c.l.b16 %v288
        %v972 = vunpack.c.h.b16 %v288
        %v973 = vunpack.c.l.b16 %v289
        %v974 = vunpack.c.h.b16 %v289
        %v975 = vunpack.c.l.b16 %v290
        %v976 = vunpack.c.h.b16 %v290
        %v977 = vunpack.c.l.b16 %v291
        %v978 = vunpack.c.h.b16 %v291
        %v979 = vunpack.c.l.b16 %v292
        %v980 = vunpack.c.h.b16 %v292
        %v981 = vunpack.c.l.b16 %v293
        %v982 = vunpack.c.h.b16 %v293
        %v983 = vunpack.c.l.b16 %v294
        %v984 = vunpack.c.h.b16 %v294
        %v985 = vunpack.c.l.b16 %v295
        %v986 = vunpack.c.h.b16 %v295
        %v987 = vunpack.c.l.b16 %v296
        %v988 = vunpack.c.h.b16 %v296
        %v989 = vunpack.c.l.b16 %v297
        %v990 = vunpack.c.h.b16 %v297
        %v991 = vunpack.c.l.b16 %v298
        %v992 = vunpack.c.h.b16 %v298
        %v993 = vunpack.c.l.b16 %v299
        %v994 = vunpack.c.h.b16 %v299
        %v995 = vunpack.c.l.b16 %v300
        %v996 = vunpack.c.h.b16 %v300
        %v997 = vunpack.c.l.b16 %v301
        %v998 = vunpack.c.h.b16 %v301
        %v999 = vunpack.c.l.b16 %v302
        %v1000 = vunpack.c.h.b16 %v302
        %v1001 = vunpack.c.l.b16 %v303
        %v1002 = vunpack.c.h.b16 %v303
        %v1003 = vunpack.c.l.b16 %v304
        %v1004 = vunpack.c.h.b16 %v304
        %v1005 = vunpack.c.l.b16 %v305
        %v1006 = vunpack.c.h.b16 %v305
        %v1007 = vunpack.c.l.b16 %v306
        %v1008 = vunpack.c.h.b16 %v306
        %v1009 = vunpack.c.l.b16 %v307
        %v1010 = vunpack.c.h.b16 %v307
        %v1011 = vunpack.c.l.b16 %v308
        %v1012 = vunpack.c.h.b16 %v308
        %v1013 = vunpack.c.l.b16 %v309
        %v1014 = vunpack.c.h.b16 %v309
        %v1015 = vunpack.c.l.b16 %v310
        %v1016 = vunpack.c.h.b16 %v310
        %v1017 = vunpack.c.l.b16 %v311
        %v1018 = vunpack.c.h.b16 %v311
        %v1019 = vunpack.c.l.b16 %v312
        %v1020 = vunpack.c.h.b16 %v312
        %v1021 = vunpack.c.l.b16 %v313
        %v1022 = vunpack.c.h.b16 %v313
        %v1023 = vunpack.c.l.b16 %v314
        %v1024 = vunpack.c.h.b16 %v314
        %v1025 = vunpack.c.l.b16 %v315
        %v1026 = vunpack.c.h.b16 %v315
        %v1027 = vunpack.c.l.b16 %v316
        %v1028 = vunpack.c.h.b16 %v316
        %v1029 = vunpack.c.l.b16 %v317
        %v1030 = vunpack.c.h.b16 %v317
        %v1031 = vunpack.c.l.b16 %v318
        %v1032 = vunpack.c.h.b16 %v318
        %v1033 = vunpack.c.l.b16 %v319
        %v1034 = vunpack.c.h.b16 %v319
        %v1035 = vunpack.c.l.b16 %v320
        %v1036 = vunpack.c.h.b16 %v320
        %v1037 = vunpack.c.l.b16 %v321
        %v1038 = vunpack.c.h.b16 %v321
        %v1039 = vunpack.c.l.b16 %v322
        %v1040 = vunpack.c.h.b16 %v322
        %v1041 = vunpack.c.l.b16 %v323
        %v1042 = vunpack.c.h.b16 %v323
        %v1043 = vunpack.c.l.b16 %v324
        %v1044 = vunpack.c.h.b16 %v324
        %v1045 = vunpack.c.l.b16 %v325
        %v1046 = vunpack.c.h.b16 %v325
        %v1047 = vunpack.c.l.b16 %v326
        %v1048 = vunpack.c.h.b16 %v326
        %v1049 = vunpack.c.l.b16 %v327
        %v1050 = vunpack.c.h.b16 %v327
        %v1051 = vunpack.c.l.b16 %v328
        %v1052 = vunpack.c.h.b16 %v328
        %v1053 = vunpack.c.l.b16 %v329
        %v1054 = vunpack.c.h.b16 %v329
        %v1055 = vunpack.c.l.b16 %v330
        %v1056 = vunpack.c.h.b16 %v330
        %v1057 = vunpack.c.l.b16 %v331
        %v1058 = vunpack.c.h.b16 %v331
        %v1059 = vunpack.c.l.b16 %v332
        %v1060 = vunpack.c.h.b16 %v332
        %v1061 = vunpack.c.l.b16 %v333
        %v1062 = vunpack.c.h.b16 %v333
        %v1063 = vunpack.c.l.b16 %v334
        %v1064 = vunpack.c.h.b16 %v334
        %v1065 = vunpack.c.l.b16 %v335
        %v1066 = vunpack.c.h.b16 %v335
        %v1067 = vunpack.c.l.b16 %v336
        %v1068 = vunpack.c.h.b16 %v336
        %v1069 = vunpack.c.l.b16 %v337
        %v1070 = vunpack.c.h.b16 %v337
        %v1071 = vunpack.c.l.b16 %v338
        %v1072 = vunpack.c.h.b16 %v338
        %v1073 = vunpack.c.l.b16 %v339
        %v1074 = vunpack.c.h.b16 %v339
        %v1075 = vunpack.c.l.b16 %v340
        %v1076 = vunpack.c.h.b16 %v340
        %v1077 = vunpack.c.l.b16 %v341
        %v1078 = vunpack.c.h.b16 %v341
        %v1079 = vunpack.c.l.b16 %v342
        %v1080 = vunpack.c.h.b16 %v342
        %v1081 = vunpack.c.l.b16 %v343
        %v1082 = vunpack.c.h.b16 %v343
        %v1083 = vpack.c.b16 %v957, %v955
        %v1084 = vpack.c.b16 %v958, %v956
        %v1085 = vpack.c.b16 %v961, %v959
        %v1086 = vpack.c.b16 %v962, %v960
        %v1087 = vpack.c.b16 %v965, %v963
        %v1088 = vpack.c.b16 %v966, %v964
        %v1089 = vpack.c.b16 %v969, %v967
        %v1090 = vpack.c.b16 %v970, %v968
        %v1091 = vpack.c.b16 %v973, %v971
        %v1092 = vpack.c.b16 %v974, %v972
        %v1093 = vpack.c.b16 %v977, %v975
        %v1094 = vpack.c.b16 %v978, %v976
        %v1095 = vpack.c.b16 %v981, %v979
        %v1096 = vpack.c.b16 %v982, %v980
        %v1097 = vpack.c.b16 %v985, %v983
        %v1098 = vpack.c.b16 %v986, %v984
        %v1099 = vpack.c.b16 %v989, %v987
        %v1100 = vpack.c.b16 %v990, %v988
        %v1101 = vpack.c.b16 %v993, %v991
        %v1102 = vpack.c.b16 %v994, %v992
        %v1103 = vpack.c.b16 %v997, %v995
        %v1104 = vpack.c.b16 %v998, %v996
        %v1105 = vpack.c.b16 %v1001, %v999
        %v1106 = vpack.c.b16 %v1002, %v1000
        %v1107 = vpack.c.b16 %v1005, %v1003
        %v1108 = vpack.c.b16 %v1006, %v1004
        %v1109 = vpack.c.b16 %v1009, %v1007
        %v1110 = vpack.c.b16 %v1010, %v1008
        %v1111 = vpack.c.b16 %v1013, %v1011
        %v1112 = vpack.c.b16 %v1014, %v1012
        %v1113 = vpack.c.b16 %v1017, %v1015
        %v1114 = vpack.c.b16 %v1018, %v1016
        %v1115 = vpack.c.b16 %v1021, %v1019
        %v1116 = vpack.c.b16 %v1022, %v1020
        %v1117 = vpack.c.b16 %v1025, %v1023
        %v1118 = vpack.c.b16 %v1026, %v1024
        %v1119 = vpack.c.b16 %v1029, %v1027
        %v1120 = vpack.c.b16 %v1030, %v1028
        %v1121 = vpack.c.b16 %v1033, %v1031
        %v1122 = vpack.c.b16 %v1034, %v1032
        %v1123 = vpack.c.b16 %v1037, %v1035
        %v1124 = vpack.c.b16 %v1038, %v1036
        %v1125 = vpack.c.b16 %v1041, %v1039
        %v1126 = vpack.c.b16 %v1042, %v1040
        %v1127 = vpack.c.b16 %v1045, %v1043
        %v1128 = vpack.c.b16 %v1046, %v1044
        %v1129 = vpack.c.b16 %v1049, %v1047
        %v1130 = vpack.c.b16 %v1050, %v1048
        %v1131 = vpack.c.b16 %v1053, %v1051
        %v1132 = vpack.c.b16 %v1054, %v1052
        %v1133 = vpack.c.b16 %v1057, %v1055
        %v1134 = vpack.c.b16 %v1058, %v1056
        %v1135 = vpack.c.b16 %v1061, %v1059
        %v1136 = vpack.c.b16 %v1062, %v1060
        %v1137 = vpack.c.b16 %v1065, %v1063
        %v1138 = vpack.c.b16 %v1066, %v1064
        %v1139 = vpack.c.b16 %v1069, %v1067
        %v1140 = vpack.c.b16 %v1070, %v1068
        %v1141 = vpack.c.b16 %v1073, %v1071
        %v1142 = vpack.c.b16 %v1074, %v1072
        %v1143 = vpack.c.b16 %v1077, %v1075
        %v1144 = vpack.c.b16 %v1078, %v1076
        %v1145 = vpack.c.b16 %v1081, %v1079
        %v1146 = vpack.c.b16 %v1082, %v1080
        %1211 = vmatpush.bf16.msra.mxu0 %v1097
        %1212 = vmatpush.bf16.msra.mxu0 %v1095
        %1213 = vmatpush.bf16.msra.mxu0 %v1093
        %1214 = vmatpush.bf16.msra.mxu0 %v1091
        %1215 = vmatpush.bf16.msra.mxu0 %v1089
        %1216 = vmatpush.bf16.msra.mxu0 %v1087
        %1217 = vmatpush.bf16.msra.mxu0 %v1085
        %1218 = vmatpush.bf16.msra.mxu0 %v1083
        %1219 = vmatmul.bf16.gmra.mxu0 %v883
        %v1220 = vpop.f32.mrf.mxu0
        %v1221 = vadd.f32 %v828, %v1220
        %v1222 = vpop.f32.mrf.mxu0
        %1223 = vdwg.mxu0
        %1224 = vmatpush.bf16.msra.mxu0 %v1113
        %1225 = vmatpush.bf16.msra.mxu0 %v1111
        %1226 = vmatpush.bf16.msra.mxu0 %v1109
        %1227 = vmatpush.bf16.msra.mxu0 %v1107
        %1228 = vmatpush.bf16.msra.mxu0 %v1105
        %1229 = vmatpush.bf16.msra.mxu0 %v1103
        %1230 = vmatpush.bf16.msra.mxu0 %v1101
        %1231 = vmatpush.bf16.msra.mxu0 %v1099
        %1232 = vmatmul.bf16.gmra.mxu0 %v884
        %v1233 = vpop.f32.mrf.mxu0
        %v1234 = vadd.f32 %v1221, %v1233
        %v1235 = vpop.f32.mrf.mxu0
        %1236 = vdwg.mxu0
        %1237 = vmatpush.bf16.msra.mxu0 %v1129
        %1238 = vmatpush.bf16.msra.mxu0 %v1127
        %1239 = vmatpush.bf16.msra.mxu0 %v1125
        %1240 = vmatpush.bf16.msra.mxu0 %v1123
        %1241 = vmatpush.bf16.msra.mxu0 %v1121
        %1242 = vmatpush.bf16.msra.mxu0 %v1119
        %1243 = vmatpush.bf16.msra.mxu0 %v1117
        %1244 = vmatpush.bf16.msra.mxu0 %v1115
        %1245 = vmatmul.bf16.gmra.mxu0 %v885
        %v1246 = vpop.f32.mrf.mxu0
        %v1247 = vadd.f32 %v1234, %v1246
        %v1248 = vpop.f32.mrf.mxu0
        %1249 = vdwg.mxu0
        %1250 = vmatpush.bf16.msra.mxu0 %v1145
        %1251 = vmatpush.bf16.msra.mxu0 %v1143
        %1252 = vmatpush.bf16.msra.mxu0 %v1141
        %1253 = vmatpush.bf16.msra.mxu0 %v1139
        %1254 = vmatpush.bf16.msra.mxu0 %v1137
        %1255 = vmatpush.bf16.msra.mxu0 %v1135
        %1256 = vmatpush.bf16.msra.mxu0 %v1133
        %1257 = vmatpush.bf16.msra.mxu0 %v1131
        %1258 = vmatmul.bf16.gmra.mxu0 %v886
        %v1259 = vpop.f32.mrf.mxu0
        %v1260 = vadd.f32 %v1247, %v1259
        %v1261 = vpop.f32.mrf.mxu0
        %1262 = vdwg.mxu0
        %1263 = vmatpush.bf16.msra.mxu0 %v1098
        %1264 = vmatpush.bf16.msra.mxu0 %v1096
        %1265 = vmatpush.bf16.msra.mxu0 %v1094
        %1266 = vmatpush.bf16.msra.mxu0 %v1092
        %1267 = vmatpush.bf16.msra.mxu0 %v1090
        %1268 = vmatpush.bf16.msra.mxu0 %v1088
        %1269 = vmatpush.bf16.msra.mxu0 %v1086
        %1270 = vmatpush.bf16.msra.mxu0 %v1084
        %1271 = vmatmul.bf16.gmra.mxu0 %v883
        %v1272 = vpop.f32.mrf.mxu0
        %v1273 = vadd.f32 %v880, %v1272
        %v1274 = vpop.f32.mrf.mxu0
        %1275 = vdwg.mxu0
        %1276 = vmatpush.bf16.msra.mxu0 %v1114
        %1277 = vmatpush.bf16.msra.mxu0 %v1112
        %1278 = vmatpush.bf16.msra.mxu0 %v1110
        %1279 = vmatpush.bf16.msra.mxu0 %v1108
        %1280 = vmatpush.bf16.msra.mxu0 %v1106
        %1281 = vmatpush.bf16.msra.mxu0 %v1104
        %1282 = vmatpush.bf16.msra.mxu0 %v1102
        %1283 = vmatpush.bf16.msra.mxu0 %v1100
        %1284 = vmatmul.bf16.gmra.mxu0 %v884
        %v1285 = vpop.f32.mrf.mxu0
        %v1286 = vadd.f32 %v1273, %v1285
        %v1287 = vpop.f32.mrf.mxu0
        %1288 = vdwg.mxu0
        %1289 = vmatpush.bf16.msra.mxu0 %v1130
        %1290 = vmatpush.bf16.msra.mxu0 %v1128
        %1291 = vmatpush.bf16.msra.mxu0 %v1126
        %1292 = vmatpush.bf16.msra.mxu0 %v1124
        %1293 = vmatpush.bf16.msra.mxu0 %v1122
        %1294 = vmatpush.bf16.msra.mxu0 %v1120
        %1295 = vmatpush.bf16.msra.mxu0 %v1118
        %1296 = vmatpush.bf16.msra.mxu0 %v1116
        %1297 = vmatmul.bf16.gmra.mxu0 %v885
        %v1298 = vpop.f32.mrf.mxu0
        %v1299 = vadd.f32 %v1286, %v1298
        %v1300 = vpop.f32.mrf.mxu0
        %1301 = vdwg.mxu0
        %1302 = vmatpush.bf16.msra.mxu0 %v1146
        %1303 = vmatpush.bf16.msra.mxu0 %v1144
        %1304 = vmatpush.bf16.msra.mxu0 %v1142
        %1305 = vmatpush.bf16.msra.mxu0 %v1140
        %1306 = vmatpush.bf16.msra.mxu0 %v1138
        %1307 = vmatpush.bf16.msra.mxu0 %v1136
        %1308 = vmatpush.bf16.msra.mxu0 %v1134
        %1309 = vmatpush.bf16.msra.mxu0 %v1132
        %1310 = vmatmul.bf16.gmra.mxu0 %v886
        %v1311 = vpop.f32.mrf.mxu0
        %v1312 = vadd.f32 %v1299, %v1311
        %v1313 = vpop.f32.mrf.mxu0
        %1314 = vdwg.mxu0
        %v1315 = vld [vmem:[#allocation2] sm:$0xee]
        %v1316 = vld [vmem:[#allocation2 + $0x8] sm:$0xee]
        %s1317 = scalar_lea.vmem [#allocation3], 1024
        %v1318 = vld [vmem:[%s1317] sm:$0xff]
        %v1319 = vld [vmem:[%s1317 + $0x8] sm:$0xff]
        %v1320 = vld [vmem:[%s1317 + $0x10] sm:$0xff]
        %v1321 = vld [vmem:[%s1317 + $0x18] sm:$0xff]
        %v1322 = vld [vmem:[%s1317 + $0x20] sm:$0xff]
        %v1323 = vld [vmem:[%s1317 + $0x28] sm:$0xff]
        %v1324 = vld [vmem:[%s1317 + $0x30] sm:$0xff]
        %v1325 = vld [vmem:[%s1317 + $0x38] sm:$0xff]
        %v1326 = vld [vmem:[%s1317 + $0x40] sm:$0xff]
        %v1327 = vld [vmem:[%s1317 + $0x48] sm:$0xff]
        %v1328 = vld [vmem:[%s1317 + $0x50] sm:$0xff]
        %v1329 = vld [vmem:[%s1317 + $0x58] sm:$0xff]
        %v1330 = vld [vmem:[%s1317 + $0x60] sm:$0xff]
        %v1331 = vld [vmem:[%s1317 + $0x68] sm:$0xff]
        %v1332 = vld [vmem:[%s1317 + $0x70] sm:$0xff]
        %v1333 = vld [vmem:[%s1317 + $0x78] sm:$0xff]
        %v1334 = vld [vmem:[%s1317 + $0x80] sm:$0xff]
        %v1335 = vld [vmem:[%s1317 + $0x88] sm:$0xff]
        %v1336 = vld [vmem:[%s1317 + $0x90] sm:$0xff]
        %v1337 = vld [vmem:[%s1317 + $0x98] sm:$0xff]
        %v1338 = vld [vmem:[%s1317 + $0xa0] sm:$0xff]
        %v1339 = vld [vmem:[%s1317 + $0xa8] sm:$0xff]
        %v1340 = vld [vmem:[%s1317 + $0xb0] sm:$0xff]
        %v1341 = vld [vmem:[%s1317 + $0xb8] sm:$0xff]
        %v1342 = vld [vmem:[%s1317 + $0xc0] sm:$0xff]
        %v1343 = vld [vmem:[%s1317 + $0xc8] sm:$0xff]
        %v1344 = vld [vmem:[%s1317 + $0xd0] sm:$0xff]
        %v1345 = vld [vmem:[%s1317 + $0xd8] sm:$0xff]
        %v1346 = vld [vmem:[%s1317 + $0xe0] sm:$0xff]
        %v1347 = vld [vmem:[%s1317 + $0xe8] sm:$0xff]
        %v1348 = vld [vmem:[%s1317 + $0xf0] sm:$0xff]
        %v1349 = vld [vmem:[%s1317 + $0xf8] sm:$0xff]
        %v1350 = vld [vmem:[%s1317 + $0x100] sm:$0xff]
        %v1351 = vld [vmem:[%s1317 + $0x108] sm:$0xff]
        %v1352 = vld [vmem:[%s1317 + $0x110] sm:$0xff]
        %v1353 = vld [vmem:[%s1317 + $0x118] sm:$0xff]
        %v1354 = vld [vmem:[%s1317 + $0x120] sm:$0xff]
        %v1355 = vld [vmem:[%s1317 + $0x128] sm:$0xff]
        %v1356 = vld [vmem:[%s1317 + $0x130] sm:$0xff]
        %v1357 = vld [vmem:[%s1317 + $0x138] sm:$0xff]
        %v1358 = vld [vmem:[%s1317 + $0x140] sm:$0xff]
        %v1359 = vld [vmem:[%s1317 + $0x148] sm:$0xff]
        %v1360 = vld [vmem:[%s1317 + $0x150] sm:$0xff]
        %v1361 = vld [vmem:[%s1317 + $0x158] sm:$0xff]
        %v1362 = vld [vmem:[%s1317 + $0x160] sm:$0xff]
        %v1363 = vld [vmem:[%s1317 + $0x168] sm:$0xff]
        %v1364 = vld [vmem:[%s1317 + $0x170] sm:$0xff]
        %v1365 = vld [vmem:[%s1317 + $0x178] sm:$0xff]
        %v1366 = vld [vmem:[%s1317 + $0x180] sm:$0xff]
        %v1367 = vld [vmem:[%s1317 + $0x188] sm:$0xff]
        %v1368 = vld [vmem:[%s1317 + $0x190] sm:$0xff]
        %v1369 = vld [vmem:[%s1317 + $0x198] sm:$0xff]
        %v1370 = vld [vmem:[%s1317 + $0x1a0] sm:$0xff]
        %v1371 = vld [vmem:[%s1317 + $0x1a8] sm:$0xff]
        %v1372 = vld [vmem:[%s1317 + $0x1b0] sm:$0xff]
        %v1373 = vld [vmem:[%s1317 + $0x1b8] sm:$0xff]
        %v1374 = vld [vmem:[%s1317 + $0x1c0] sm:$0xff]
        %v1375 = vld [vmem:[%s1317 + $0x1c8] sm:$0xff]
        %v1376 = vld [vmem:[%s1317 + $0x1d0] sm:$0xff]
        %v1377 = vld [vmem:[%s1317 + $0x1d8] sm:$0xff]
        %v1378 = vld [vmem:[%s1317 + $0x1e0] sm:$0xff]
        %v1379 = vld [vmem:[%s1317 + $0x1e8] sm:$0xff]
        %v1380 = vld [vmem:[%s1317 + $0x1f0] sm:$0xff]
        %v1381 = vld [vmem:[%s1317 + $0x1f8] sm:$0xff]
        %v1384 = vunpack.c.l.b16 %v1315
        %v1385 = vunpack.c.h.b16 %v1315
        %v1386 = vunpack.c.l.b16 %v1316
        %v1387 = vunpack.c.h.b16 %v1316
        %v1388 = vpack.c.b16 %v419, %v1384
        %v1389 = vpack.c.b16 %v420, %v1385
        %v1390 = vpack.c.b16 %v421, %v1386
        %v1391 = vpack.c.b16 %v422, %v1387
        %v1392 = vrot.slane %v1388, 1
        %v1393 = vrot.slane %v1389, 1
        %v1394 = vrot.slane %v1390, 1
        %v1395 = vrot.slane %v1391, 1
        %v1464 = vunpack.c.l.b16 %v1318
        %v1465 = vunpack.c.h.b16 %v1318
        %v1466 = vunpack.c.l.b16 %v1319
        %v1467 = vunpack.c.h.b16 %v1319
        %v1468 = vunpack.c.l.b16 %v1320
        %v1469 = vunpack.c.h.b16 %v1320
        %v1470 = vunpack.c.l.b16 %v1321
        %v1471 = vunpack.c.h.b16 %v1321
        %v1472 = vunpack.c.l.b16 %v1322
        %v1473 = vunpack.c.h.b16 %v1322
        %v1474 = vunpack.c.l.b16 %v1323
        %v1475 = vunpack.c.h.b16 %v1323
        %v1476 = vunpack.c.l.b16 %v1324
        %v1477 = vunpack.c.h.b16 %v1324
        %v1478 = vunpack.c.l.b16 %v1325
        %v1479 = vunpack.c.h.b16 %v1325
        %v1480 = vunpack.c.l.b16 %v1326
        %v1481 = vunpack.c.h.b16 %v1326
        %v1482 = vunpack.c.l.b16 %v1327
        %v1483 = vunpack.c.h.b16 %v1327
        %v1484 = vunpack.c.l.b16 %v1328
        %v1485 = vunpack.c.h.b16 %v1328
        %v1486 = vunpack.c.l.b16 %v1329
        %v1487 = vunpack.c.h.b16 %v1329
        %v1488 = vunpack.c.l.b16 %v1330
        %v1489 = vunpack.c.h.b16 %v1330
        %v1490 = vunpack.c.l.b16 %v1331
        %v1491 = vunpack.c.h.b16 %v1331
        %v1492 = vunpack.c.l.b16 %v1332
        %v1493 = vunpack.c.h.b16 %v1332
        %v1494 = vunpack.c.l.b16 %v1333
        %v1495 = vunpack.c.h.b16 %v1333
        %v1496 = vunpack.c.l.b16 %v1334
        %v1497 = vunpack.c.h.b16 %v1334
        %v1498 = vunpack.c.l.b16 %v1335
        %v1499 = vunpack.c.h.b16 %v1335
        %v1500 = vunpack.c.l.b16 %v1336
        %v1501 = vunpack.c.h.b16 %v1336
        %v1502 = vunpack.c.l.b16 %v1337
        %v1503 = vunpack.c.h.b16 %v1337
        %v1504 = vunpack.c.l.b16 %v1338
        %v1505 = vunpack.c.h.b16 %v1338
        %v1506 = vunpack.c.l.b16 %v1339
        %v1507 = vunpack.c.h.b16 %v1339
        %v1508 = vunpack.c.l.b16 %v1340
        %v1509 = vunpack.c.h.b16 %v1340
        %v1510 = vunpack.c.l.b16 %v1341
        %v1511 = vunpack.c.h.b16 %v1341
        %v1512 = vunpack.c.l.b16 %v1342
        %v1513 = vunpack.c.h.b16 %v1342
        %v1514 = vunpack.c.l.b16 %v1343
        %v1515 = vunpack.c.h.b16 %v1343
        %v1516 = vunpack.c.l.b16 %v1344
        %v1517 = vunpack.c.h.b16 %v1344
        %v1518 = vunpack.c.l.b16 %v1345
        %v1519 = vunpack.c.h.b16 %v1345
        %v1520 = vunpack.c.l.b16 %v1346
        %v1521 = vunpack.c.h.b16 %v1346
        %v1522 = vunpack.c.l.b16 %v1347
        %v1523 = vunpack.c.h.b16 %v1347
        %v1524 = vunpack.c.l.b16 %v1348
        %v1525 = vunpack.c.h.b16 %v1348
        %v1526 = vunpack.c.l.b16 %v1349
        %v1527 = vunpack.c.h.b16 %v1349
        %v1528 = vunpack.c.l.b16 %v1350
        %v1529 = vunpack.c.h.b16 %v1350
        %v1530 = vunpack.c.l.b16 %v1351
        %v1531 = vunpack.c.h.b16 %v1351
        %v1532 = vunpack.c.l.b16 %v1352
        %v1533 = vunpack.c.h.b16 %v1352
        %v1534 = vunpack.c.l.b16 %v1353
        %v1535 = vunpack.c.h.b16 %v1353
        %v1536 = vunpack.c.l.b16 %v1354
        %v1537 = vunpack.c.h.b16 %v1354
        %v1538 = vunpack.c.l.b16 %v1355
        %v1539 = vunpack.c.h.b16 %v1355
        %v1540 = vunpack.c.l.b16 %v1356
        %v1541 = vunpack.c.h.b16 %v1356
        %v1542 = vunpack.c.l.b16 %v1357
        %v1543 = vunpack.c.h.b16 %v1357
        %v1544 = vunpack.c.l.b16 %v1358
        %v1545 = vunpack.c.h.b16 %v1358
        %v1546 = vunpack.c.l.b16 %v1359
        %v1547 = vunpack.c.h.b16 %v1359
        %v1548 = vunpack.c.l.b16 %v1360
        %v1549 = vunpack.c.h.b16 %v1360
        %v1550 = vunpack.c.l.b16 %v1361
        %v1551 = vunpack.c.h.b16 %v1361
        %v1552 = vunpack.c.l.b16 %v1362
        %v1553 = vunpack.c.h.b16 %v1362
        %v1554 = vunpack.c.l.b16 %v1363
        %v1555 = vunpack.c.h.b16 %v1363
        %v1556 = vunpack.c.l.b16 %v1364
        %v1557 = vunpack.c.h.b16 %v1364
        %v1558 = vunpack.c.l.b16 %v1365
        %v1559 = vunpack.c.h.b16 %v1365
        %v1560 = vunpack.c.l.b16 %v1366
        %v1561 = vunpack.c.h.b16 %v1366
        %v1562 = vunpack.c.l.b16 %v1367
        %v1563 = vunpack.c.h.b16 %v1367
        %v1564 = vunpack.c.l.b16 %v1368
        %v1565 = vunpack.c.h.b16 %v1368
        %v1566 = vunpack.c.l.b16 %v1369
        %v1567 = vunpack.c.h.b16 %v1369
        %v1568 = vunpack.c.l.b16 %v1370
        %v1569 = vunpack.c.h.b16 %v1370
        %v1570 = vunpack.c.l.b16 %v1371
        %v1571 = vunpack.c.h.b16 %v1371
        %v1572 = vunpack.c.l.b16 %v1372
        %v1573 = vunpack.c.h.b16 %v1372
        %v1574 = vunpack.c.l.b16 %v1373
        %v1575 = vunpack.c.h.b16 %v1373
        %v1576 = vunpack.c.l.b16 %v1374
        %v1577 = vunpack.c.h.b16 %v1374
        %v1578 = vunpack.c.l.b16 %v1375
        %v1579 = vunpack.c.h.b16 %v1375
        %v1580 = vunpack.c.l.b16 %v1376
        %v1581 = vunpack.c.h.b16 %v1376
        %v1582 = vunpack.c.l.b16 %v1377
        %v1583 = vunpack.c.h.b16 %v1377
        %v1584 = vunpack.c.l.b16 %v1378
        %v1585 = vunpack.c.h.b16 %v1378
        %v1586 = vunpack.c.l.b16 %v1379
        %v1587 = vunpack.c.h.b16 %v1379
        %v1588 = vunpack.c.l.b16 %v1380
        %v1589 = vunpack.c.h.b16 %v1380
        %v1590 = vunpack.c.l.b16 %v1381
        %v1591 = vunpack.c.h.b16 %v1381
        %v1592 = vpack.c.b16 %v1466, %v1464
        %v1593 = vpack.c.b16 %v1467, %v1465
        %v1594 = vpack.c.b16 %v1470, %v1468
        %v1595 = vpack.c.b16 %v1471, %v1469
        %v1596 = vpack.c.b16 %v1474, %v1472
        %v1597 = vpack.c.b16 %v1475, %v1473
        %v1598 = vpack.c.b16 %v1478, %v1476
        %v1599 = vpack.c.b16 %v1479, %v1477
        %v1600 = vpack.c.b16 %v1482, %v1480
        %v1601 = vpack.c.b16 %v1483, %v1481
        %v1602 = vpack.c.b16 %v1486, %v1484
        %v1603 = vpack.c.b16 %v1487, %v1485
        %v1604 = vpack.c.b16 %v1490, %v1488
        %v1605 = vpack.c.b16 %v1491, %v1489
        %v1606 = vpack.c.b16 %v1494, %v1492
        %v1607 = vpack.c.b16 %v1495, %v1493
        %v1608 = vpack.c.b16 %v1498, %v1496
        %v1609 = vpack.c.b16 %v1499, %v1497
        %v1610 = vpack.c.b16 %v1502, %v1500
        %v1611 = vpack.c.b16 %v1503, %v1501
        %v1612 = vpack.c.b16 %v1506, %v1504
        %v1613 = vpack.c.b16 %v1507, %v1505
        %v1614 = vpack.c.b16 %v1510, %v1508
        %v1615 = vpack.c.b16 %v1511, %v1509
        %v1616 = vpack.c.b16 %v1514, %v1512
        %v1617 = vpack.c.b16 %v1515, %v1513
        %v1618 = vpack.c.b16 %v1518, %v1516
        %v1619 = vpack.c.b16 %v1519, %v1517
        %v1620 = vpack.c.b16 %v1522, %v1520
        %v1621 = vpack.c.b16 %v1523, %v1521
        %v1622 = vpack.c.b16 %v1526, %v1524
        %v1623 = vpack.c.b16 %v1527, %v1525
        %v1624 = vpack.c.b16 %v1530, %v1528
        %v1625 = vpack.c.b16 %v1531, %v1529
        %v1626 = vpack.c.b16 %v1534, %v1532
        %v1627 = vpack.c.b16 %v1535, %v1533
        %v1628 = vpack.c.b16 %v1538, %v1536
        %v1629 = vpack.c.b16 %v1539, %v1537
        %v1630 = vpack.c.b16 %v1542, %v1540
        %v1631 = vpack.c.b16 %v1543, %v1541
        %v1632 = vpack.c.b16 %v1546, %v1544
        %v1633 = vpack.c.b16 %v1547, %v1545
        %v1634 = vpack.c.b16 %v1550, %v1548
        %v1635 = vpack.c.b16 %v1551, %v1549
        %v1636 = vpack.c.b16 %v1554, %v1552
        %v1637 = vpack.c.b16 %v1555, %v1553
        %v1638 = vpack.c.b16 %v1558, %v1556
        %v1639 = vpack.c.b16 %v1559, %v1557
        %v1640 = vpack.c.b16 %v1562, %v1560
        %v1641 = vpack.c.b16 %v1563, %v1561
        %v1642 = vpack.c.b16 %v1566, %v1564
        %v1643 = vpack.c.b16 %v1567, %v1565
        %v1644 = vpack.c.b16 %v1570, %v1568
        %v1645 = vpack.c.b16 %v1571, %v1569
        %v1646 = vpack.c.b16 %v1574, %v1572
        %v1647 = vpack.c.b16 %v1575, %v1573
        %v1648 = vpack.c.b16 %v1578, %v1576
        %v1649 = vpack.c.b16 %v1579, %v1577
        %v1650 = vpack.c.b16 %v1582, %v1580
        %v1651 = vpack.c.b16 %v1583, %v1581
        %v1652 = vpack.c.b16 %v1586, %v1584
        %v1653 = vpack.c.b16 %v1587, %v1585
        %v1654 = vpack.c.b16 %v1590, %v1588
        %v1655 = vpack.c.b16 %v1591, %v1589
        %1720 = vmatpush.bf16.msra.mxu0 %v1606
        %1721 = vmatpush.bf16.msra.mxu0 %v1604
        %1722 = vmatpush.bf16.msra.mxu0 %v1602
        %1723 = vmatpush.bf16.msra.mxu0 %v1600
        %1724 = vmatpush.bf16.msra.mxu0 %v1598
        %1725 = vmatpush.bf16.msra.mxu0 %v1596
        %1726 = vmatpush.bf16.msra.mxu0 %v1594
        %1727 = vmatpush.bf16.msra.mxu0 %v1592
        %1728 = vmatmul.bf16.gmra.mxu0 %v1392
        %v1729 = vpop.f32.mrf.mxu0
        %v1730 = vadd.f32 0.0, %v1729
        %v1731 = vpop.f32.mrf.mxu0
        %1732 = vdwg.mxu0
        %1733 = vmatpush.bf16.msra.mxu0 %v1622
        %1734 = vmatpush.bf16.msra.mxu0 %v1620
        %1735 = vmatpush.bf16.msra.mxu0 %v1618
        %1736 = vmatpush.bf16.msra.mxu0 %v1616
        %1737 = vmatpush.bf16.msra.mxu0 %v1614
        %1738 = vmatpush.bf16.msra.mxu0 %v1612
        %1739 = vmatpush.bf16.msra.mxu0 %v1610
        %1740 = vmatpush.bf16.msra.mxu0 %v1608
        %1741 = vmatmul.bf16.gmra.mxu0 %v1393
        %v1742 = vpop.f32.mrf.mxu0
        %v1743 = vadd.f32 %v1730, %v1742
        %v1744 = vpop.f32.mrf.mxu0
        %1745 = vdwg.mxu0
        %1746 = vmatpush.bf16.msra.mxu0 %v1638
        %1747 = vmatpush.bf16.msra.mxu0 %v1636
        %1748 = vmatpush.bf16.msra.mxu0 %v1634
        %1749 = vmatpush.bf16.msra.mxu0 %v1632
        %1750 = vmatpush.bf16.msra.mxu0 %v1630
        %1751 = vmatpush.bf16.msra.mxu0 %v1628
        %1752 = vmatpush.bf16.msra.mxu0 %v1626
        %1753 = vmatpush.bf16.msra.mxu0 %v1624
        %1754 = vmatmul.bf16.gmra.mxu0 %v1394
        %v1755 = vpop.f32.mrf.mxu0
        %v1756 = vadd.f32 %v1743, %v1755
        %v1757 = vpop.f32.mrf.mxu0
        %1758 = vdwg.mxu0
        %1759 = vmatpush.bf16.msra.mxu0 %v1654
        %1760 = vmatpush.bf16.msra.mxu0 %v1652
        %1761 = vmatpush.bf16.msra.mxu0 %v1650
        %1762 = vmatpush.bf16.msra.mxu0 %v1648
        %1763 = vmatpush.bf16.msra.mxu0 %v1646
        %1764 = vmatpush.bf16.msra.mxu0 %v1644
        %1765 = vmatpush.bf16.msra.mxu0 %v1642
        %1766 = vmatpush.bf16.msra.mxu0 %v1640
        %1767 = vmatmul.bf16.gmra.mxu0 %v1395
        %v1768 = vpop.f32.mrf.mxu0
        %v1769 = vadd.f32 %v1756, %v1768
        %v1770 = vpop.f32.mrf.mxu0
        %1771 = vdwg.mxu0
        %1772 = vmatpush.bf16.msra.mxu0 %v1607
        %1773 = vmatpush.bf16.msra.mxu0 %v1605
        %1774 = vmatpush.bf16.msra.mxu0 %v1603
        %1775 = vmatpush.bf16.msra.mxu0 %v1601
        %1776 = vmatpush.bf16.msra.mxu0 %v1599
        %1777 = vmatpush.bf16.msra.mxu0 %v1597
        %1778 = vmatpush.bf16.msra.mxu0 %v1595
        %1779 = vmatpush.bf16.msra.mxu0 %v1593
        %1780 = vmatmul.bf16.gmra.mxu0 %v1392
        %v1781 = vpop.f32.mrf.mxu0
        %v1782 = vadd.f32 0.0, %v1781
        %v1783 = vpop.f32.mrf.mxu0
        %1784 = vdwg.mxu0
        %1785 = vmatpush.bf16.msra.mxu0 %v1623
        %1786 = vmatpush.bf16.msra.mxu0 %v1621
        %1787 = vmatpush.bf16.msra.mxu0 %v1619
        %1788 = vmatpush.bf16.msra.mxu0 %v1617
        %1789 = vmatpush.bf16.msra.mxu0 %v1615
        %1790 = vmatpush.bf16.msra.mxu0 %v1613
        %1791 = vmatpush.bf16.msra.mxu0 %v1611
        %1792 = vmatpush.bf16.msra.mxu0 %v1609
        %1793 = vmatmul.bf16.gmra.mxu0 %v1393
        %v1794 = vpop.f32.mrf.mxu0
        %v1795 = vadd.f32 %v1782, %v1794
        %v1796 = vpop.f32.mrf.mxu0
        %1797 = vdwg.mxu0
        %1798 = vmatpush.bf16.msra.mxu0 %v1639
        %1799 = vmatpush.bf16.msra.mxu0 %v1637
        %1800 = vmatpush.bf16.msra.mxu0 %v1635
        %1801 = vmatpush.bf16.msra.mxu0 %v1633
        %1802 = vmatpush.bf16.msra.mxu0 %v1631
        %1803 = vmatpush.bf16.msra.mxu0 %v1629
        %1804 = vmatpush.bf16.msra.mxu0 %v1627
        %1805 = vmatpush.bf16.msra.mxu0 %v1625
        %1806 = vmatmul.bf16.gmra.mxu0 %v1394
        %v1807 = vpop.f32.mrf.mxu0
        %v1808 = vadd.f32 %v1795, %v1807
        %v1809 = vpop.f32.mrf.mxu0
        %1810 = vdwg.mxu0
        %1811 = vmatpush.bf16.msra.mxu0 %v1655
        %1812 = vmatpush.bf16.msra.mxu0 %v1653
        %1813 = vmatpush.bf16.msra.mxu0 %v1651
        %1814 = vmatpush.bf16.msra.mxu0 %v1649
        %1815 = vmatpush.bf16.msra.mxu0 %v1647
        %1816 = vmatpush.bf16.msra.mxu0 %v1645
        %1817 = vmatpush.bf16.msra.mxu0 %v1643
        %1818 = vmatpush.bf16.msra.mxu0 %v1641
        %1819 = vmatmul.bf16.gmra.mxu0 %v1395
        %v1820 = vpop.f32.mrf.mxu0
        %v1821 = vadd.f32 %v1808, %v1820
        %v1822 = vpop.f32.mrf.mxu0
        %1823 = vdwg.mxu0
        %v1824 = vadd.f32 %v1260, %v1769
        %v1825 = vadd.f32 %v1312, %v1821
        %v1826 = vld [vmem:[#allocation2 + $0x10] sm:$0x33]
        %v1827 = vld [vmem:[#allocation2 + $0x18] sm:$0x33]
        %s1828 = scalar_lea.vmem [#allocation3], 1536
        %v1829 = vld [vmem:[%s1828] sm:$0xff]
        %v1830 = vld [vmem:[%s1828 + $0x8] sm:$0xff]
        %v1831 = vld [vmem:[%s1828 + $0x10] sm:$0xff]
        %v1832 = vld [vmem:[%s1828 + $0x18] sm:$0xff]
        %v1833 = vld [vmem:[%s1828 + $0x20] sm:$0xff]
        %v1834 = vld [vmem:[%s1828 + $0x28] sm:$0xff]
        %v1835 = vld [vmem:[%s1828 + $0x30] sm:$0xff]
        %v1836 = vld [vmem:[%s1828 + $0x38] sm:$0xff]
        %v1837 = vld [vmem:[%s1828 + $0x40] sm:$0xff]
        %v1838 = vld [vmem:[%s1828 + $0x48] sm:$0xff]
        %v1839 = vld [vmem:[%s1828 + $0x50] sm:$0xff]
        %v1840 = vld [vmem:[%s1828 + $0x58] sm:$0xff]
        %v1841 = vld [vmem:[%s1828 + $0x60] sm:$0xff]
        %v1842 = vld [vmem:[%s1828 + $0x68] sm:$0xff]
        %v1843 = vld [vmem:[%s1828 + $0x70] sm:$0xff]
        %v1844 = vld [vmem:[%s1828 + $0x78] sm:$0xff]
        %v1845 = vld [vmem:[%s1828 + $0x80] sm:$0xff]
        %v1846 = vld [vmem:[%s1828 + $0x88] sm:$0xff]
        %v1847 = vld [vmem:[%s1828 + $0x90] sm:$0xff]
        %v1848 = vld [vmem:[%s1828 + $0x98] sm:$0xff]
        %v1849 = vld [vmem:[%s1828 + $0xa0] sm:$0xff]
        %v1850 = vld [vmem:[%s1828 + $0xa8] sm:$0xff]
        %v1851 = vld [vmem:[%s1828 + $0xb0] sm:$0xff]
        %v1852 = vld [vmem:[%s1828 + $0xb8] sm:$0xff]
        %v1853 = vld [vmem:[%s1828 + $0xc0] sm:$0xff]
        %v1854 = vld [vmem:[%s1828 + $0xc8] sm:$0xff]
        %v1855 = vld [vmem:[%s1828 + $0xd0] sm:$0xff]
        %v1856 = vld [vmem:[%s1828 + $0xd8] sm:$0xff]
        %v1857 = vld [vmem:[%s1828 + $0xe0] sm:$0xff]
        %v1858 = vld [vmem:[%s1828 + $0xe8] sm:$0xff]
        %v1859 = vld [vmem:[%s1828 + $0xf0] sm:$0xff]
        %v1860 = vld [vmem:[%s1828 + $0xf8] sm:$0xff]
        %v1861 = vld [vmem:[%s1828 + $0x100] sm:$0xff]
        %v1862 = vld [vmem:[%s1828 + $0x108] sm:$0xff]
        %v1863 = vld [vmem:[%s1828 + $0x110] sm:$0xff]
        %v1864 = vld [vmem:[%s1828 + $0x118] sm:$0xff]
        %v1865 = vld [vmem:[%s1828 + $0x120] sm:$0xff]
        %v1866 = vld [vmem:[%s1828 + $0x128] sm:$0xff]
        %v1867 = vld [vmem:[%s1828 + $0x130] sm:$0xff]
        %v1868 = vld [vmem:[%s1828 + $0x138] sm:$0xff]
        %v1869 = vld [vmem:[%s1828 + $0x140] sm:$0xff]
        %v1870 = vld [vmem:[%s1828 + $0x148] sm:$0xff]
        %v1871 = vld [vmem:[%s1828 + $0x150] sm:$0xff]
        %v1872 = vld [vmem:[%s1828 + $0x158] sm:$0xff]
        %v1873 = vld [vmem:[%s1828 + $0x160] sm:$0xff]
        %v1874 = vld [vmem:[%s1828 + $0x168] sm:$0xff]
        %v1875 = vld [vmem:[%s1828 + $0x170] sm:$0xff]
        %v1876 = vld [vmem:[%s1828 + $0x178] sm:$0xff]
        %v1877 = vld [vmem:[%s1828 + $0x180] sm:$0xff]
        %v1878 = vld [vmem:[%s1828 + $0x188] sm:$0xff]
        %v1879 = vld [vmem:[%s1828 + $0x190] sm:$0xff]
        %v1880 = vld [vmem:[%s1828 + $0x198] sm:$0xff]
        %v1881 = vld [vmem:[%s1828 + $0x1a0] sm:$0xff]
        %v1882 = vld [vmem:[%s1828 + $0x1a8] sm:$0xff]
        %v1883 = vld [vmem:[%s1828 + $0x1b0] sm:$0xff]
        %v1884 = vld [vmem:[%s1828 + $0x1b8] sm:$0xff]
        %v1885 = vld [vmem:[%s1828 + $0x1c0] sm:$0xff]
        %v1886 = vld [vmem:[%s1828 + $0x1c8] sm:$0xff]
        %v1887 = vld [vmem:[%s1828 + $0x1d0] sm:$0xff]
        %v1888 = vld [vmem:[%s1828 + $0x1d8] sm:$0xff]
        %v1889 = vld [vmem:[%s1828 + $0x1e0] sm:$0xff]
        %v1890 = vld [vmem:[%s1828 + $0x1e8] sm:$0xff]
        %v1891 = vld [vmem:[%s1828 + $0x1f0] sm:$0xff]
        %v1892 = vld [vmem:[%s1828 + $0x1f8] sm:$0xff]
        %v1895 = vunpack.c.l.b16 %v1826
        %v1896 = vunpack.c.h.b16 %v1826
        %v1897 = vunpack.c.l.b16 %v1827
        %v1898 = vunpack.c.h.b16 %v1827
        %v1899 = vpack.c.b16 %v1895, %v1384
        %v1900 = vpack.c.b16 %v1896, %v1385
        %v1901 = vpack.c.b16 %v1897, %v1386
        %v1902 = vpack.c.b16 %v1898, %v1387
        %v1904 = vshrl.u32 %v1899, 16
        %v1906 = vrot.slane %v1904, 1
        %v1907 = vshll.u32 %v1899, 16
        %v1909 = vrot.slane %v1907, 2
        %v1910 = vor.u32 %v1906, %v1909
        %v1912 = vshrl.u32 %v1900, 16
        %v1914 = vrot.slane %v1912, 1
        %v1915 = vshll.u32 %v1900, 16
        %v1917 = vrot.slane %v1915, 2
        %v1918 = vor.u32 %v1914, %v1917
        %v1920 = vshrl.u32 %v1901, 16
        %v1922 = vrot.slane %v1920, 1
        %v1923 = vshll.u32 %v1901, 16
        %v1925 = vrot.slane %v1923, 2
        %v1926 = vor.u32 %v1922, %v1925
        %v1928 = vshrl.u32 %v1902, 16
        %v1930 = vrot.slane %v1928, 1
        %v1931 = vshll.u32 %v1902, 16
        %v1933 = vrot.slane %v1931, 2
        %v1934 = vor.u32 %v1930, %v1933
        %v2003 = vunpack.c.l.b16 %v1829
        %v2004 = vunpack.c.h.b16 %v1829
        %v2005 = vunpack.c.l.b16 %v1830
        %v2006 = vunpack.c.h.b16 %v1830
        %v2007 = vunpack.c.l.b16 %v1831
        %v2008 = vunpack.c.h.b16 %v1831
        %v2009 = vunpack.c.l.b16 %v1832
        %v2010 = vunpack.c.h.b16 %v1832
        %v2011 = vunpack.c.l.b16 %v1833
        %v2012 = vunpack.c.h.b16 %v1833
        %v2013 = vunpack.c.l.b16 %v1834
        %v2014 = vunpack.c.h.b16 %v1834
        %v2015 = vunpack.c.l.b16 %v1835
        %v2016 = vunpack.c.h.b16 %v1835
        %v2017 = vunpack.c.l.b16 %v1836
        %v2018 = vunpack.c.h.b16 %v1836
        %v2019 = vunpack.c.l.b16 %v1837
        %v2020 = vunpack.c.h.b16 %v1837
        %v2021 = vunpack.c.l.b16 %v1838
        %v2022 = vunpack.c.h.b16 %v1838
        %v2023 = vunpack.c.l.b16 %v1839
        %v2024 = vunpack.c.h.b16 %v1839
        %v2025 = vunpack.c.l.b16 %v1840
        %v2026 = vunpack.c.h.b16 %v1840
        %v2027 = vunpack.c.l.b16 %v1841
        %v2028 = vunpack.c.h.b16 %v1841
        %v2029 = vunpack.c.l.b16 %v1842
        %v2030 = vunpack.c.h.b16 %v1842
        %v2031 = vunpack.c.l.b16 %v1843
        %v2032 = vunpack.c.h.b16 %v1843
        %v2033 = vunpack.c.l.b16 %v1844
        %v2034 = vunpack.c.h.b16 %v1844
        %v2035 = vunpack.c.l.b16 %v1845
        %v2036 = vunpack.c.h.b16 %v1845
        %v2037 = vunpack.c.l.b16 %v1846
        %v2038 = vunpack.c.h.b16 %v1846
        %v2039 = vunpack.c.l.b16 %v1847
        %v2040 = vunpack.c.h.b16 %v1847
        %v2041 = vunpack.c.l.b16 %v1848
        %v2042 = vunpack.c.h.b16 %v1848
        %v2043 = vunpack.c.l.b16 %v1849
        %v2044 = vunpack.c.h.b16 %v1849
        %v2045 = vunpack.c.l.b16 %v1850
        %v2046 = vunpack.c.h.b16 %v1850
        %v2047 = vunpack.c.l.b16 %v1851
        %v2048 = vunpack.c.h.b16 %v1851
        %v2049 = vunpack.c.l.b16 %v1852
        %v2050 = vunpack.c.h.b16 %v1852
        %v2051 = vunpack.c.l.b16 %v1853
        %v2052 = vunpack.c.h.b16 %v1853
        %v2053 = vunpack.c.l.b16 %v1854
        %v2054 = vunpack.c.h.b16 %v1854
        %v2055 = vunpack.c.l.b16 %v1855
        %v2056 = vunpack.c.h.b16 %v1855
        %v2057 = vunpack.c.l.b16 %v1856
        %v2058 = vunpack.c.h.b16 %v1856
        %v2059 = vunpack.c.l.b16 %v1857
        %v2060 = vunpack.c.h.b16 %v1857
        %v2061 = vunpack.c.l.b16 %v1858
        %v2062 = vunpack.c.h.b16 %v1858
        %v2063 = vunpack.c.l.b16 %v1859
        %v2064 = vunpack.c.h.b16 %v1859
        %v2065 = vunpack.c.l.b16 %v1860
        %v2066 = vunpack.c.h.b16 %v1860
        %v2067 = vunpack.c.l.b16 %v1861
        %v2068 = vunpack.c.h.b16 %v1861
        %v2069 = vunpack.c.l.b16 %v1862
        %v2070 = vunpack.c.h.b16 %v1862
        %v2071 = vunpack.c.l.b16 %v1863
        %v2072 = vunpack.c.h.b16 %v1863
        %v2073 = vunpack.c.l.b16 %v1864
        %v2074 = vunpack.c.h.b16 %v1864
        %v2075 = vunpack.c.l.b16 %v1865
        %v2076 = vunpack.c.h.b16 %v1865
        %v2077 = vunpack.c.l.b16 %v1866
        %v2078 = vunpack.c.h.b16 %v1866
        %v2079 = vunpack.c.l.b16 %v1867
        %v2080 = vunpack.c.h.b16 %v1867
        %v2081 = vunpack.c.l.b16 %v1868
        %v2082 = vunpack.c.h.b16 %v1868
        %v2083 = vunpack.c.l.b16 %v1869
        %v2084 = vunpack.c.h.b16 %v1869
        %v2085 = vunpack.c.l.b16 %v1870
        %v2086 = vunpack.c.h.b16 %v1870
        %v2087 = vunpack.c.l.b16 %v1871
        %v2088 = vunpack.c.h.b16 %v1871
        %v2089 = vunpack.c.l.b16 %v1872
        %v2090 = vunpack.c.h.b16 %v1872
        %v2091 = vunpack.c.l.b16 %v1873
        %v2092 = vunpack.c.h.b16 %v1873
        %v2093 = vunpack.c.l.b16 %v1874
        %v2094 = vunpack.c.h.b16 %v1874
        %v2095 = vunpack.c.l.b16 %v1875
        %v2096 = vunpack.c.h.b16 %v1875
        %v2097 = vunpack.c.l.b16 %v1876
        %v2098 = vunpack.c.h.b16 %v1876
        %v2099 = vunpack.c.l.b16 %v1877
        %v2100 = vunpack.c.h.b16 %v1877
        %v2101 = vunpack.c.l.b16 %v1878
        %v2102 = vunpack.c.h.b16 %v1878
        %v2103 = vunpack.c.l.b16 %v1879
        %v2104 = vunpack.c.h.b16 %v1879
        %v2105 = vunpack.c.l.b16 %v1880
        %v2106 = vunpack.c.h.b16 %v1880
        %v2107 = vunpack.c.l.b16 %v1881
        %v2108 = vunpack.c.h.b16 %v1881
        %v2109 = vunpack.c.l.b16 %v1882
        %v2110 = vunpack.c.h.b16 %v1882
        %v2111 = vunpack.c.l.b16 %v1883
        %v2112 = vunpack.c.h.b16 %v1883
        %v2113 = vunpack.c.l.b16 %v1884
        %v2114 = vunpack.c.h.b16 %v1884
        %v2115 = vunpack.c.l.b16 %v1885
        %v2116 = vunpack.c.h.b16 %v1885
        %v2117 = vunpack.c.l.b16 %v1886
        %v2118 = vunpack.c.h.b16 %v1886
        %v2119 = vunpack.c.l.b16 %v1887
        %v2120 = vunpack.c.h.b16 %v1887
        %v2121 = vunpack.c.l.b16 %v1888
        %v2122 = vunpack.c.h.b16 %v1888
        %v2123 = vunpack.c.l.b16 %v1889
        %v2124 = vunpack.c.h.b16 %v1889
        %v2125 = vunpack.c.l.b16 %v1890
        %v2126 = vunpack.c.h.b16 %v1890
        %v2127 = vunpack.c.l.b16 %v1891
        %v2128 = vunpack.c.h.b16 %v1891
        %v2129 = vunpack.c.l.b16 %v1892
        %v2130 = vunpack.c.h.b16 %v1892
        %v2131 = vpack.c.b16 %v2005, %v2003
        %v2132 = vpack.c.b16 %v2006, %v2004
        %v2133 = vpack.c.b16 %v2009, %v2007
        %v2134 = vpack.c.b16 %v2010, %v2008
        %v2135 = vpack.c.b16 %v2013, %v2011
        %v2136 = vpack.c.b16 %v2014, %v2012
        %v2137 = vpack.c.b16 %v2017, %v2015
        %v2138 = vpack.c.b16 %v2018, %v2016
        %v2139 = vpack.c.b16 %v2021, %v2019
        %v2140 = vpack.c.b16 %v2022, %v2020
        %v2141 = vpack.c.b16 %v2025, %v2023
        %v2142 = vpack.c.b16 %v2026, %v2024
        %v2143 = vpack.c.b16 %v2029, %v2027
        %v2144 = vpack.c.b16 %v2030, %v2028
        %v2145 = vpack.c.b16 %v2033, %v2031
        %v2146 = vpack.c.b16 %v2034, %v2032
        %v2147 = vpack.c.b16 %v2037, %v2035
        %v2148 = vpack.c.b16 %v2038, %v2036
        %v2149 = vpack.c.b16 %v2041, %v2039
        %v2150 = vpack.c.b16 %v2042, %v2040
        %v2151 = vpack.c.b16 %v2045, %v2043
        %v2152 = vpack.c.b16 %v2046, %v2044
        %v2153 = vpack.c.b16 %v2049, %v2047
        %v2154 = vpack.c.b16 %v2050, %v2048
        %v2155 = vpack.c.b16 %v2053, %v2051
        %v2156 = vpack.c.b16 %v2054, %v2052
        %v2157 = vpack.c.b16 %v2057, %v2055
        %v2158 = vpack.c.b16 %v2058, %v2056
        %v2159 = vpack.c.b16 %v2061, %v2059
        %v2160 = vpack.c.b16 %v2062, %v2060
        %v2161 = vpack.c.b16 %v2065, %v2063
        %v2162 = vpack.c.b16 %v2066, %v2064
        %v2163 = vpack.c.b16 %v2069, %v2067
        %v2164 = vpack.c.b16 %v2070, %v2068
        %v2165 = vpack.c.b16 %v2073, %v2071
        %v2166 = vpack.c.b16 %v2074, %v2072
        %v2167 = vpack.c.b16 %v2077, %v2075
        %v2168 = vpack.c.b16 %v2078, %v2076
        %v2169 = vpack.c.b16 %v2081, %v2079
        %v2170 = vpack.c.b16 %v2082, %v2080
        %v2171 = vpack.c.b16 %v2085, %v2083
        %v2172 = vpack.c.b16 %v2086, %v2084
        %v2173 = vpack.c.b16 %v2089, %v2087
        %v2174 = vpack.c.b16 %v2090, %v2088
        %v2175 = vpack.c.b16 %v2093, %v2091
        %v2176 = vpack.c.b16 %v2094, %v2092
        %v2177 = vpack.c.b16 %v2097, %v2095
        %v2178 = vpack.c.b16 %v2098, %v2096
        %v2179 = vpack.c.b16 %v2101, %v2099
        %v2180 = vpack.c.b16 %v2102, %v2100
        %v2181 = vpack.c.b16 %v2105, %v2103
        %v2182 = vpack.c.b16 %v2106, %v2104
        %v2183 = vpack.c.b16 %v2109, %v2107
        %v2184 = vpack.c.b16 %v2110, %v2108
        %v2185 = vpack.c.b16 %v2113, %v2111
        %v2186 = vpack.c.b16 %v2114, %v2112
        %v2187 = vpack.c.b16 %v2117, %v2115
        %v2188 = vpack.c.b16 %v2118, %v2116
        %v2189 = vpack.c.b16 %v2121, %v2119
        %v2190 = vpack.c.b16 %v2122, %v2120
        %v2191 = vpack.c.b16 %v2125, %v2123
        %v2192 = vpack.c.b16 %v2126, %v2124
        %v2193 = vpack.c.b16 %v2129, %v2127
        %v2194 = vpack.c.b16 %v2130, %v2128
        %2259 = vmatpush.bf16.msra.mxu0 %v2145
        %2260 = vmatpush.bf16.msra.mxu0 %v2143
        %2261 = vmatpush.bf16.msra.mxu0 %v2141
        %2262 = vmatpush.bf16.msra.mxu0 %v2139
        %2263 = vmatpush.bf16.msra.mxu0 %v2137
        %2264 = vmatpush.bf16.msra.mxu0 %v2135
        %2265 = vmatpush.bf16.msra.mxu0 %v2133
        %2266 = vmatpush.bf16.msra.mxu0 %v2131
        %2267 = vmatmul.bf16.gmra.mxu0 %v1910
        %v2268 = vpop.f32.mrf.mxu0
        %v2269 = vadd.f32 0.0, %v2268
        %v2270 = vpop.f32.mrf.mxu0
        %2271 = vdwg.mxu0
        %2272 = vmatpush.bf16.msra.mxu0 %v2161
        %2273 = vmatpush.bf16.msra.mxu0 %v2159
        %2274 = vmatpush.bf16.msra.mxu0 %v2157
        %2275 = vmatpush.bf16.msra.mxu0 %v2155
        %2276 = vmatpush.bf16.msra.mxu0 %v2153
        %2277 = vmatpush.bf16.msra.mxu0 %v2151
        %2278 = vmatpush.bf16.msra.mxu0 %v2149
        %2279 = vmatpush.bf16.msra.mxu0 %v2147
        %2280 = vmatmul.bf16.gmra.mxu0 %v1918
        %v2281 = vpop.f32.mrf.mxu0
        %v2282 = vadd.f32 %v2269, %v2281
        %v2283 = vpop.f32.mrf.mxu0
        %2284 = vdwg.mxu0
        %2285 = vmatpush.bf16.msra.mxu0 %v2177
        %2286 = vmatpush.bf16.msra.mxu0 %v2175
        %2287 = vmatpush.bf16.msra.mxu0 %v2173
        %2288 = vmatpush.bf16.msra.mxu0 %v2171
        %2289 = vmatpush.bf16.msra.mxu0 %v2169
        %2290 = vmatpush.bf16.msra.mxu0 %v2167
        %2291 = vmatpush.bf16.msra.mxu0 %v2165
        %2292 = vmatpush.bf16.msra.mxu0 %v2163
        %2293 = vmatmul.bf16.gmra.mxu0 %v1926
        %v2294 = vpop.f32.mrf.mxu0
        %v2295 = vadd.f32 %v2282, %v2294
        %v2296 = vpop.f32.mrf.mxu0
        %2297 = vdwg.mxu0
        %2298 = vmatpush.bf16.msra.mxu0 %v2193
        %2299 = vmatpush.bf16.msra.mxu0 %v2191
        %2300 = vmatpush.bf16.msra.mxu0 %v2189
        %2301 = vmatpush.bf16.msra.mxu0 %v2187
        %2302 = vmatpush.bf16.msra.mxu0 %v2185
        %2303 = vmatpush.bf16.msra.mxu0 %v2183
        %2304 = vmatpush.bf16.msra.mxu0 %v2181
        %2305 = vmatpush.bf16.msra.mxu0 %v2179
        %2306 = vmatmul.bf16.gmra.mxu0 %v1934
        %v2307 = vpop.f32.mrf.mxu0
        %v2308 = vadd.f32 %v2295, %v2307
        %v2309 = vpop.f32.mrf.mxu0
        %2310 = vdwg.mxu0
        %2311 = vmatpush.bf16.msra.mxu0 %v2146
        %2312 = vmatpush.bf16.msra.mxu0 %v2144
        %2313 = vmatpush.bf16.msra.mxu0 %v2142
        %2314 = vmatpush.bf16.msra.mxu0 %v2140
        %2315 = vmatpush.bf16.msra.mxu0 %v2138
        %2316 = vmatpush.bf16.msra.mxu0 %v2136
        %2317 = vmatpush.bf16.msra.mxu0 %v2134
        %2318 = vmatpush.bf16.msra.mxu0 %v2132
        %2319 = vmatmul.bf16.gmra.mxu0 %v1910
        %v2320 = vpop.f32.mrf.mxu0
        %v2321 = vadd.f32 0.0, %v2320
        %v2322 = vpop.f32.mrf.mxu0
        %2323 = vdwg.mxu0
        %2324 = vmatpush.bf16.msra.mxu0 %v2162
        %2325 = vmatpush.bf16.msra.mxu0 %v2160
        %2326 = vmatpush.bf16.msra.mxu0 %v2158
        %2327 = vmatpush.bf16.msra.mxu0 %v2156
        %2328 = vmatpush.bf16.msra.mxu0 %v2154
        %2329 = vmatpush.bf16.msra.mxu0 %v2152
        %2330 = vmatpush.bf16.msra.mxu0 %v2150
        %2331 = vmatpush.bf16.msra.mxu0 %v2148
        %2332 = vmatmul.bf16.gmra.mxu0 %v1918
        %v2333 = vpop.f32.mrf.mxu0
        %v2334 = vadd.f32 %v2321, %v2333
        %v2335 = vpop.f32.mrf.mxu0
        %2336 = vdwg.mxu0
        %2337 = vmatpush.bf16.msra.mxu0 %v2178
        %2338 = vmatpush.bf16.msra.mxu0 %v2176
        %2339 = vmatpush.bf16.msra.mxu0 %v2174
        %2340 = vmatpush.bf16.msra.mxu0 %v2172
        %2341 = vmatpush.bf16.msra.mxu0 %v2170
        %2342 = vmatpush.bf16.msra.mxu0 %v2168
        %2343 = vmatpush.bf16.msra.mxu0 %v2166
        %2344 = vmatpush.bf16.msra.mxu0 %v2164
        %2345 = vmatmul.bf16.gmra.mxu0 %v1926
        %v2346 = vpop.f32.mrf.mxu0
        %v2347 = vadd.f32 %v2334, %v2346
        %v2348 = vpop.f32.mrf.mxu0
        %2349 = vdwg.mxu0
        %2350 = vmatpush.bf16.msra.mxu0 %v2194
        %2351 = vmatpush.bf16.msra.mxu0 %v2192
        %2352 = vmatpush.bf16.msra.mxu0 %v2190
        %2353 = vmatpush.bf16.msra.mxu0 %v2188
        %2354 = vmatpush.bf16.msra.mxu0 %v2186
        %2355 = vmatpush.bf16.msra.mxu0 %v2184
        %2356 = vmatpush.bf16.msra.mxu0 %v2182
        %2357 = vmatpush.bf16.msra.mxu0 %v2180
        %2358 = vmatmul.bf16.gmra.mxu0 %v1934
        %v2359 = vpop.f32.mrf.mxu0
        %v2360 = vadd.f32 %v2347, %v2359
        %v2361 = vpop.f32.mrf.mxu0
        %2362 = vdwg.mxu0
        %v2363 = vadd.f32 %v1824, %v2308
        %v2364 = vadd.f32 %v1825, %v2360
        %v2365 = vld [vmem:[#allocation2] sm:$0xcc]
        %v2366 = vld [vmem:[#allocation2 + $0x8] sm:$0xcc]
        %s2367 = scalar_lea.vmem [#allocation3], 2048
        %v2368 = vld [vmem:[%s2367] sm:$0xff]
        %v2369 = vld [vmem:[%s2367 + $0x8] sm:$0xff]
        %v2370 = vld [vmem:[%s2367 + $0x10] sm:$0xff]
        %v2371 = vld [vmem:[%s2367 + $0x18] sm:$0xff]
        %v2372 = vld [vmem:[%s2367 + $0x20] sm:$0xff]
        %v2373 = vld [vmem:[%s2367 + $0x28] sm:$0xff]
        %v2374 = vld [vmem:[%s2367 + $0x30] sm:$0xff]
        %v2375 = vld [vmem:[%s2367 + $0x38] sm:$0xff]
        %v2376 = vld [vmem:[%s2367 + $0x40] sm:$0xff]
        %v2377 = vld [vmem:[%s2367 + $0x48] sm:$0xff]
        %v2378 = vld [vmem:[%s2367 + $0x50] sm:$0xff]
        %v2379 = vld [vmem:[%s2367 + $0x58] sm:$0xff]
        %v2380 = vld [vmem:[%s2367 + $0x60] sm:$0xff]
        %v2381 = vld [vmem:[%s2367 + $0x68] sm:$0xff]
        %v2382 = vld [vmem:[%s2367 + $0x70] sm:$0xff]
        %v2383 = vld [vmem:[%s2367 + $0x78] sm:$0xff]
        %v2384 = vld [vmem:[%s2367 + $0x80] sm:$0xff]
        %v2385 = vld [vmem:[%s2367 + $0x88] sm:$0xff]
        %v2386 = vld [vmem:[%s2367 + $0x90] sm:$0xff]
        %v2387 = vld [vmem:[%s2367 + $0x98] sm:$0xff]
        %v2388 = vld [vmem:[%s2367 + $0xa0] sm:$0xff]
        %v2389 = vld [vmem:[%s2367 + $0xa8] sm:$0xff]
        %v2390 = vld [vmem:[%s2367 + $0xb0] sm:$0xff]
        %v2391 = vld [vmem:[%s2367 + $0xb8] sm:$0xff]
        %v2392 = vld [vmem:[%s2367 + $0xc0] sm:$0xff]
        %v2393 = vld [vmem:[%s2367 + $0xc8] sm:$0xff]
        %v2394 = vld [vmem:[%s2367 + $0xd0] sm:$0xff]
        %v2395 = vld [vmem:[%s2367 + $0xd8] sm:$0xff]
        %v2396 = vld [vmem:[%s2367 + $0xe0] sm:$0xff]
        %v2397 = vld [vmem:[%s2367 + $0xe8] sm:$0xff]
        %v2398 = vld [vmem:[%s2367 + $0xf0] sm:$0xff]
        %v2399 = vld [vmem:[%s2367 + $0xf8] sm:$0xff]
        %v2400 = vld [vmem:[%s2367 + $0x100] sm:$0xff]
        %v2401 = vld [vmem:[%s2367 + $0x108] sm:$0xff]
        %v2402 = vld [vmem:[%s2367 + $0x110] sm:$0xff]
        %v2403 = vld [vmem:[%s2367 + $0x118] sm:$0xff]
        %v2404 = vld [vmem:[%s2367 + $0x120] sm:$0xff]
        %v2405 = vld [vmem:[%s2367 + $0x128] sm:$0xff]
        %v2406 = vld [vmem:[%s2367 + $0x130] sm:$0xff]
        %v2407 = vld [vmem:[%s2367 + $0x138] sm:$0xff]
        %v2408 = vld [vmem:[%s2367 + $0x140] sm:$0xff]
        %v2409 = vld [vmem:[%s2367 + $0x148] sm:$0xff]
        %v2410 = vld [vmem:[%s2367 + $0x150] sm:$0xff]
        %v2411 = vld [vmem:[%s2367 + $0x158] sm:$0xff]
        %v2412 = vld [vmem:[%s2367 + $0x160] sm:$0xff]
        %v2413 = vld [vmem:[%s2367 + $0x168] sm:$0xff]
        %v2414 = vld [vmem:[%s2367 + $0x170] sm:$0xff]
        %v2415 = vld [vmem:[%s2367 + $0x178] sm:$0xff]
        %v2416 = vld [vmem:[%s2367 + $0x180] sm:$0xff]
        %v2417 = vld [vmem:[%s2367 + $0x188] sm:$0xff]
        %v2418 = vld [vmem:[%s2367 + $0x190] sm:$0xff]
        %v2419 = vld [vmem:[%s2367 + $0x198] sm:$0xff]
        %v2420 = vld [vmem:[%s2367 + $0x1a0] sm:$0xff]
        %v2421 = vld [vmem:[%s2367 + $0x1a8] sm:$0xff]
        %v2422 = vld [vmem:[%s2367 + $0x1b0] sm:$0xff]
        %v2423 = vld [vmem:[%s2367 + $0x1b8] sm:$0xff]
        %v2424 = vld [vmem:[%s2367 + $0x1c0] sm:$0xff]
        %v2425 = vld [vmem:[%s2367 + $0x1c8] sm:$0xff]
        %v2426 = vld [vmem:[%s2367 + $0x1d0] sm:$0xff]
        %v2427 = vld [vmem:[%s2367 + $0x1d8] sm:$0xff]
        %v2428 = vld [vmem:[%s2367 + $0x1e0] sm:$0xff]
        %v2429 = vld [vmem:[%s2367 + $0x1e8] sm:$0xff]
        %v2430 = vld [vmem:[%s2367 + $0x1f0] sm:$0xff]
        %v2431 = vld [vmem:[%s2367 + $0x1f8] sm:$0xff]
        %v2434 = vunpack.c.l.b16 %v2365
        %v2435 = vunpack.c.h.b16 %v2365
        %v2436 = vunpack.c.l.b16 %v2366
        %v2437 = vunpack.c.h.b16 %v2366
        %v2438 = vpack.c.b16 %v1895, %v2434
        %v2439 = vpack.c.b16 %v1896, %v2435
        %v2440 = vpack.c.b16 %v1897, %v2436
        %v2441 = vpack.c.b16 %v1898, %v2437
        %v2442 = vrot.slane %v2438, 2
        %v2443 = vrot.slane %v2439, 2
        %v2444 = vrot.slane %v2440, 2
        %v2445 = vrot.slane %v2441, 2
        %v2514 = vunpack.c.l.b16 %v2368
        %v2515 = vunpack.c.h.b16 %v2368
        %v2516 = vunpack.c.l.b16 %v2369
        %v2517 = vunpack.c.h.b16 %v2369
        %v2518 = vunpack.c.l.b16 %v2370
        %v2519 = vunpack.c.h.b16 %v2370
        %v2520 = vunpack.c.l.b16 %v2371
        %v2521 = vunpack.c.h.b16 %v2371
        %v2522 = vunpack.c.l.b16 %v2372
        %v2523 = vunpack.c.h.b16 %v2372
        %v2524 = vunpack.c.l.b16 %v2373
        %v2525 = vunpack.c.h.b16 %v2373
        %v2526 = vunpack.c.l.b16 %v2374
        %v2527 = vunpack.c.h.b16 %v2374
        %v2528 = vunpack.c.l.b16 %v2375
        %v2529 = vunpack.c.h.b16 %v2375
        %v2530 = vunpack.c.l.b16 %v2376
        %v2531 = vunpack.c.h.b16 %v2376
        %v2532 = vunpack.c.l.b16 %v2377
        %v2533 = vunpack.c.h.b16 %v2377
        %v2534 = vunpack.c.l.b16 %v2378
        %v2535 = vunpack.c.h.b16 %v2378
        %v2536 = vunpack.c.l.b16 %v2379
        %v2537 = vunpack.c.h.b16 %v2379
        %v2538 = vunpack.c.l.b16 %v2380
        %v2539 = vunpack.c.h.b16 %v2380
        %v2540 = vunpack.c.l.b16 %v2381
        %v2541 = vunpack.c.h.b16 %v2381
        %v2542 = vunpack.c.l.b16 %v2382
        %v2543 = vunpack.c.h.b16 %v2382
        %v2544 = vunpack.c.l.b16 %v2383
        %v2545 = vunpack.c.h.b16 %v2383
        %v2546 = vunpack.c.l.b16 %v2384
        %v2547 = vunpack.c.h.b16 %v2384
        %v2548 = vunpack.c.l.b16 %v2385
        %v2549 = vunpack.c.h.b16 %v2385
        %v2550 = vunpack.c.l.b16 %v2386
        %v2551 = vunpack.c.h.b16 %v2386
        %v2552 = vunpack.c.l.b16 %v2387
        %v2553 = vunpack.c.h.b16 %v2387
        %v2554 = vunpack.c.l.b16 %v2388
        %v2555 = vunpack.c.h.b16 %v2388
        %v2556 = vunpack.c.l.b16 %v2389
        %v2557 = vunpack.c.h.b16 %v2389
        %v2558 = vunpack.c.l.b16 %v2390
        %v2559 = vunpack.c.h.b16 %v2390
        %v2560 = vunpack.c.l.b16 %v2391
        %v2561 = vunpack.c.h.b16 %v2391
        %v2562 = vunpack.c.l.b16 %v2392
        %v2563 = vunpack.c.h.b16 %v2392
        %v2564 = vunpack.c.l.b16 %v2393
        %v2565 = vunpack.c.h.b16 %v2393
        %v2566 = vunpack.c.l.b16 %v2394
        %v2567 = vunpack.c.h.b16 %v2394
        %v2568 = vunpack.c.l.b16 %v2395
        %v2569 = vunpack.c.h.b16 %v2395
        %v2570 = vunpack.c.l.b16 %v2396
        %v2571 = vunpack.c.h.b16 %v2396
        %v2572 = vunpack.c.l.b16 %v2397
        %v2573 = vunpack.c.h.b16 %v2397
        %v2574 = vunpack.c.l.b16 %v2398
        %v2575 = vunpack.c.h.b16 %v2398
        %v2576 = vunpack.c.l.b16 %v2399
        %v2577 = vunpack.c.h.b16 %v2399
        %v2578 = vunpack.c.l.b16 %v2400
        %v2579 = vunpack.c.h.b16 %v2400
        %v2580 = vunpack.c.l.b16 %v2401
        %v2581 = vunpack.c.h.b16 %v2401
        %v2582 = vunpack.c.l.b16 %v2402
        %v2583 = vunpack.c.h.b16 %v2402
        %v2584 = vunpack.c.l.b16 %v2403
        %v2585 = vunpack.c.h.b16 %v2403
        %v2586 = vunpack.c.l.b16 %v2404
        %v2587 = vunpack.c.h.b16 %v2404
        %v2588 = vunpack.c.l.b16 %v2405
        %v2589 = vunpack.c.h.b16 %v2405
        %v2590 = vunpack.c.l.b16 %v2406
        %v2591 = vunpack.c.h.b16 %v2406
        %v2592 = vunpack.c.l.b16 %v2407
        %v2593 = vunpack.c.h.b16 %v2407
        %v2594 = vunpack.c.l.b16 %v2408
        %v2595 = vunpack.c.h.b16 %v2408
        %v2596 = vunpack.c.l.b16 %v2409
        %v2597 = vunpack.c.h.b16 %v2409
        %v2598 = vunpack.c.l.b16 %v2410
        %v2599 = vunpack.c.h.b16 %v2410
        %v2600 = vunpack.c.l.b16 %v2411
        %v2601 = vunpack.c.h.b16 %v2411
        %v2602 = vunpack.c.l.b16 %v2412
        %v2603 = vunpack.c.h.b16 %v2412
        %v2604 = vunpack.c.l.b16 %v2413
        %v2605 = vunpack.c.h.b16 %v2413
        %v2606 = vunpack.c.l.b16 %v2414
        %v2607 = vunpack.c.h.b16 %v2414
        %v2608 = vunpack.c.l.b16 %v2415
        %v2609 = vunpack.c.h.b16 %v2415
        %v2610 = vunpack.c.l.b16 %v2416
        %v2611 = vunpack.c.h.b16 %v2416
        %v2612 = vunpack.c.l.b16 %v2417
        %v2613 = vunpack.c.h.b16 %v2417
        %v2614 = vunpack.c.l.b16 %v2418
        %v2615 = vunpack.c.h.b16 %v2418
        %v2616 = vunpack.c.l.b16 %v2419
        %v2617 = vunpack.c.h.b16 %v2419
        %v2618 = vunpack.c.l.b16 %v2420
        %v2619 = vunpack.c.h.b16 %v2420
        %v2620 = vunpack.c.l.b16 %v2421
        %v2621 = vunpack.c.h.b16 %v2421
        %v2622 = vunpack.c.l.b16 %v2422
        %v2623 = vunpack.c.h.b16 %v2422
        %v2624 = vunpack.c.l.b16 %v2423
        %v2625 = vunpack.c.h.b16 %v2423
        %v2626 = vunpack.c.l.b16 %v2424
        %v2627 = vunpack.c.h.b16 %v2424
        %v2628 = vunpack.c.l.b16 %v2425
        %v2629 = vunpack.c.h.b16 %v2425
        %v2630 = vunpack.c.l.b16 %v2426
        %v2631 = vunpack.c.h.b16 %v2426
        %v2632 = vunpack.c.l.b16 %v2427
        %v2633 = vunpack.c.h.b16 %v2427
        %v2634 = vunpack.c.l.b16 %v2428
        %v2635 = vunpack.c.h.b16 %v2428
        %v2636 = vunpack.c.l.b16 %v2429
        %v2637 = vunpack.c.h.b16 %v2429
        %v2638 = vunpack.c.l.b16 %v2430
        %v2639 = vunpack.c.h.b16 %v2430
        %v2640 = vunpack.c.l.b16 %v2431
        %v2641 = vunpack.c.h.b16 %v2431
        %v2642 = vpack.c.b16 %v2516, %v2514
        %v2643 = vpack.c.b16 %v2517, %v2515
        %v2644 = vpack.c.b16 %v2520, %v2518
        %v2645 = vpack.c.b16 %v2521, %v2519
        %v2646 = vpack.c.b16 %v2524, %v2522
        %v2647 = vpack.c.b16 %v2525, %v2523
        %v2648 = vpack.c.b16 %v2528, %v2526
        %v2649 = vpack.c.b16 %v2529, %v2527
        %v2650 = vpack.c.b16 %v2532, %v2530
        %v2651 = vpack.c.b16 %v2533, %v2531
        %v2652 = vpack.c.b16 %v2536, %v2534
        %v2653 = vpack.c.b16 %v2537, %v2535
        %v2654 = vpack.c.b16 %v2540, %v2538
        %v2655 = vpack.c.b16 %v2541, %v2539
        %v2656 = vpack.c.b16 %v2544, %v2542
        %v2657 = vpack.c.b16 %v2545, %v2543
        %v2658 = vpack.c.b16 %v2548, %v2546
        %v2659 = vpack.c.b16 %v2549, %v2547
        %v2660 = vpack.c.b16 %v2552, %v2550
        %v2661 = vpack.c.b16 %v2553, %v2551
        %v2662 = vpack.c.b16 %v2556, %v2554
        %v2663 = vpack.c.b16 %v2557, %v2555
        %v2664 = vpack.c.b16 %v2560, %v2558
        %v2665 = vpack.c.b16 %v2561, %v2559
        %v2666 = vpack.c.b16 %v2564, %v2562
        %v2667 = vpack.c.b16 %v2565, %v2563
        %v2668 = vpack.c.b16 %v2568, %v2566
        %v2669 = vpack.c.b16 %v2569, %v2567
        %v2670 = vpack.c.b16 %v2572, %v2570
        %v2671 = vpack.c.b16 %v2573, %v2571
        %v2672 = vpack.c.b16 %v2576, %v2574
        %v2673 = vpack.c.b16 %v2577, %v2575
        %v2674 = vpack.c.b16 %v2580, %v2578
        %v2675 = vpack.c.b16 %v2581, %v2579
        %v2676 = vpack.c.b16 %v2584, %v2582
        %v2677 = vpack.c.b16 %v2585, %v2583
        %v2678 = vpack.c.b16 %v2588, %v2586
        %v2679 = vpack.c.b16 %v2589, %v2587
        %v2680 = vpack.c.b16 %v2592, %v2590
        %v2681 = vpack.c.b16 %v2593, %v2591
        %v2682 = vpack.c.b16 %v2596, %v2594
        %v2683 = vpack.c.b16 %v2597, %v2595
        %v2684 = vpack.c.b16 %v2600, %v2598
        %v2685 = vpack.c.b16 %v2601, %v2599
        %v2686 = vpack.c.b16 %v2604, %v2602
        %v2687 = vpack.c.b16 %v2605, %v2603
        %v2688 = vpack.c.b16 %v2608, %v2606
        %v2689 = vpack.c.b16 %v2609, %v2607
        %v2690 = vpack.c.b16 %v2612, %v2610
        %v2691 = vpack.c.b16 %v2613, %v2611
        %v2692 = vpack.c.b16 %v2616, %v2614
        %v2693 = vpack.c.b16 %v2617, %v2615
        %v2694 = vpack.c.b16 %v2620, %v2618
        %v2695 = vpack.c.b16 %v2621, %v2619
        %v2696 = vpack.c.b16 %v2624, %v2622
        %v2697 = vpack.c.b16 %v2625, %v2623
        %v2698 = vpack.c.b16 %v2628, %v2626
        %v2699 = vpack.c.b16 %v2629, %v2627
        %v2700 = vpack.c.b16 %v2632, %v2630
        %v2701 = vpack.c.b16 %v2633, %v2631
        %v2702 = vpack.c.b16 %v2636, %v2634
        %v2703 = vpack.c.b16 %v2637, %v2635
        %v2704 = vpack.c.b16 %v2640, %v2638
        %v2705 = vpack.c.b16 %v2641, %v2639
        %2770 = vmatpush.bf16.msra.mxu0 %v2656
        %2771 = vmatpush.bf16.msra.mxu0 %v2654
        %2772 = vmatpush.bf16.msra.mxu0 %v2652
        %2773 = vmatpush.bf16.msra.mxu0 %v2650
        %2774 = vmatpush.bf16.msra.mxu0 %v2648
        %2775 = vmatpush.bf16.msra.mxu0 %v2646
        %2776 = vmatpush.bf16.msra.mxu0 %v2644
        %2777 = vmatpush.bf16.msra.mxu0 %v2642
        %2778 = vmatmul.bf16.gmra.mxu0 %v2442
        %v2779 = vpop.f32.mrf.mxu0
        %v2780 = vadd.f32 0.0, %v2779
        %v2781 = vpop.f32.mrf.mxu0
        %2782 = vdwg.mxu0
        %2783 = vmatpush.bf16.msra.mxu0 %v2672
        %2784 = vmatpush.bf16.msra.mxu0 %v2670
        %2785 = vmatpush.bf16.msra.mxu0 %v2668
        %2786 = vmatpush.bf16.msra.mxu0 %v2666
        %2787 = vmatpush.bf16.msra.mxu0 %v2664
        %2788 = vmatpush.bf16.msra.mxu0 %v2662
        %2789 = vmatpush.bf16.msra.mxu0 %v2660
        %2790 = vmatpush.bf16.msra.mxu0 %v2658
        %2791 = vmatmul.bf16.gmra.mxu0 %v2443
        %v2792 = vpop.f32.mrf.mxu0
        %v2793 = vadd.f32 %v2780, %v2792
        %v2794 = vpop.f32.mrf.mxu0
        %2795 = vdwg.mxu0
        %2796 = vmatpush.bf16.msra.mxu0 %v2688
        %2797 = vmatpush.bf16.msra.mxu0 %v2686
        %2798 = vmatpush.bf16.msra.mxu0 %v2684
        %2799 = vmatpush.bf16.msra.mxu0 %v2682
        %2800 = vmatpush.bf16.msra.mxu0 %v2680
        %2801 = vmatpush.bf16.msra.mxu0 %v2678
        %2802 = vmatpush.bf16.msra.mxu0 %v2676
        %2803 = vmatpush.bf16.msra.mxu0 %v2674
        %2804 = vmatmul.bf16.gmra.mxu0 %v2444
        %v2805 = vpop.f32.mrf.mxu0
        %v2806 = vadd.f32 %v2793, %v2805
        %v2807 = vpop.f32.mrf.mxu0
        %2808 = vdwg.mxu0
        %2809 = vmatpush.bf16.msra.mxu0 %v2704
        %2810 = vmatpush.bf16.msra.mxu0 %v2702
        %2811 = vmatpush.bf16.msra.mxu0 %v2700
        %2812 = vmatpush.bf16.msra.mxu0 %v2698
        %2813 = vmatpush.bf16.msra.mxu0 %v2696
        %2814 = vmatpush.bf16.msra.mxu0 %v2694
        %2815 = vmatpush.bf16.msra.mxu0 %v2692
        %2816 = vmatpush.bf16.msra.mxu0 %v2690
        %2817 = vmatmul.bf16.gmra.mxu0 %v2445
        %v2818 = vpop.f32.mrf.mxu0
        %v2819 = vadd.f32 %v2806, %v2818
        %v2820 = vpop.f32.mrf.mxu0
        %2821 = vdwg.mxu0
        %2822 = vmatpush.bf16.msra.mxu0 %v2657
        %2823 = vmatpush.bf16.msra.mxu0 %v2655
        %2824 = vmatpush.bf16.msra.mxu0 %v2653
        %2825 = vmatpush.bf16.msra.mxu0 %v2651
        %2826 = vmatpush.bf16.msra.mxu0 %v2649
        %2827 = vmatpush.bf16.msra.mxu0 %v2647
        %2828 = vmatpush.bf16.msra.mxu0 %v2645
        %2829 = vmatpush.bf16.msra.mxu0 %v2643
        %2830 = vmatmul.bf16.gmra.mxu0 %v2442
        %v2831 = vpop.f32.mrf.mxu0
        %v2832 = vadd.f32 0.0, %v2831
        %v2833 = vpop.f32.mrf.mxu0
        %2834 = vdwg.mxu0
        %2835 = vmatpush.bf16.msra.mxu0 %v2673
        %2836 = vmatpush.bf16.msra.mxu0 %v2671
        %2837 = vmatpush.bf16.msra.mxu0 %v2669
        %2838 = vmatpush.bf16.msra.mxu0 %v2667
        %2839 = vmatpush.bf16.msra.mxu0 %v2665
        %2840 = vmatpush.bf16.msra.mxu0 %v2663
        %2841 = vmatpush.bf16.msra.mxu0 %v2661
        %2842 = vmatpush.bf16.msra.mxu0 %v2659
        %2843 = vmatmul.bf16.gmra.mxu0 %v2443
        %v2844 = vpop.f32.mrf.mxu0
        %v2845 = vadd.f32 %v2832, %v2844
        %v2846 = vpop.f32.mrf.mxu0
        %2847 = vdwg.mxu0
        %2848 = vmatpush.bf16.msra.mxu0 %v2689
        %2849 = vmatpush.bf16.msra.mxu0 %v2687
        %2850 = vmatpush.bf16.msra.mxu0 %v2685
        %2851 = vmatpush.bf16.msra.mxu0 %v2683
        %2852 = vmatpush.bf16.msra.mxu0 %v2681
        %2853 = vmatpush.bf16.msra.mxu0 %v2679
        %2854 = vmatpush.bf16.msra.mxu0 %v2677
        %2855 = vmatpush.bf16.msra.mxu0 %v2675
        %2856 = vmatmul.bf16.gmra.mxu0 %v2444
        %v2857 = vpop.f32.mrf.mxu0
        %v2858 = vadd.f32 %v2845, %v2857
        %v2859 = vpop.f32.mrf.mxu0
        %2860 = vdwg.mxu0
        %2861 = vmatpush.bf16.msra.mxu0 %v2705
        %2862 = vmatpush.bf16.msra.mxu0 %v2703
        %2863 = vmatpush.bf16.msra.mxu0 %v2701
        %2864 = vmatpush.bf16.msra.mxu0 %v2699
        %2865 = vmatpush.bf16.msra.mxu0 %v2697
        %2866 = vmatpush.bf16.msra.mxu0 %v2695
        %2867 = vmatpush.bf16.msra.mxu0 %v2693
        %2868 = vmatpush.bf16.msra.mxu0 %v2691
        %2869 = vmatmul.bf16.gmra.mxu0 %v2445
        %v2870 = vpop.f32.mrf.mxu0
        %v2871 = vadd.f32 %v2858, %v2870
        %v2872 = vpop.f32.mrf.mxu0
        %2873 = vdwg.mxu0
        %v2874 = vadd.f32 %v2363, %v2819
        %v2875 = vadd.f32 %v2364, %v2871
        %v2876 = vld [vmem:[#allocation2 + $0x10] sm:$0x77]
        %v2877 = vld [vmem:[#allocation2 + $0x18] sm:$0x77]
        %s2878 = scalar_lea.vmem [#allocation3], 2560
        %v2879 = vld [vmem:[%s2878] sm:$0xff]
        %v2880 = vld [vmem:[%s2878 + $0x8] sm:$0xff]
        %v2881 = vld [vmem:[%s2878 + $0x10] sm:$0xff]
        %v2882 = vld [vmem:[%s2878 + $0x18] sm:$0xff]
        %v2883 = vld [vmem:[%s2878 + $0x20] sm:$0xff]
        %v2884 = vld [vmem:[%s2878 + $0x28] sm:$0xff]
        %v2885 = vld [vmem:[%s2878 + $0x30] sm:$0xff]
        %v2886 = vld [vmem:[%s2878 + $0x38] sm:$0xff]
        %v2887 = vld [vmem:[%s2878 + $0x40] sm:$0xff]
        %v2888 = vld [vmem:[%s2878 + $0x48] sm:$0xff]
        %v2889 = vld [vmem:[%s2878 + $0x50] sm:$0xff]
        %v2890 = vld [vmem:[%s2878 + $0x58] sm:$0xff]
        %v2891 = vld [vmem:[%s2878 + $0x60] sm:$0xff]
        %v2892 = vld [vmem:[%s2878 + $0x68] sm:$0xff]
        %v2893 = vld [vmem:[%s2878 + $0x70] sm:$0xff]
        %v2894 = vld [vmem:[%s2878 + $0x78] sm:$0xff]
        %v2895 = vld [vmem:[%s2878 + $0x80] sm:$0xff]
        %v2896 = vld [vmem:[%s2878 + $0x88] sm:$0xff]
        %v2897 = vld [vmem:[%s2878 + $0x90] sm:$0xff]
        %v2898 = vld [vmem:[%s2878 + $0x98] sm:$0xff]
        %v2899 = vld [vmem:[%s2878 + $0xa0] sm:$0xff]
        %v2900 = vld [vmem:[%s2878 + $0xa8] sm:$0xff]
        %v2901 = vld [vmem:[%s2878 + $0xb0] sm:$0xff]
        %v2902 = vld [vmem:[%s2878 + $0xb8] sm:$0xff]
        %v2903 = vld [vmem:[%s2878 + $0xc0] sm:$0xff]
        %v2904 = vld [vmem:[%s2878 + $0xc8] sm:$0xff]
        %v2905 = vld [vmem:[%s2878 + $0xd0] sm:$0xff]
        %v2906 = vld [vmem:[%s2878 + $0xd8] sm:$0xff]
        %v2907 = vld [vmem:[%s2878 + $0xe0] sm:$0xff]
        %v2908 = vld [vmem:[%s2878 + $0xe8] sm:$0xff]
        %v2909 = vld [vmem:[%s2878 + $0xf0] sm:$0xff]
        %v2910 = vld [vmem:[%s2878 + $0xf8] sm:$0xff]
        %v2911 = vld [vmem:[%s2878 + $0x100] sm:$0xff]
        %v2912 = vld [vmem:[%s2878 + $0x108] sm:$0xff]
        %v2913 = vld [vmem:[%s2878 + $0x110] sm:$0xff]
        %v2914 = vld [vmem:[%s2878 + $0x118] sm:$0xff]
        %v2915 = vld [vmem:[%s2878 + $0x120] sm:$0xff]
        %v2916 = vld [vmem:[%s2878 + $0x128] sm:$0xff]
        %v2917 = vld [vmem:[%s2878 + $0x130] sm:$0xff]
        %v2918 = vld [vmem:[%s2878 + $0x138] sm:$0xff]
        %v2919 = vld [vmem:[%s2878 + $0x140] sm:$0xff]
        %v2920 = vld [vmem:[%s2878 + $0x148] sm:$0xff]
        %v2921 = vld [vmem:[%s2878 + $0x150] sm:$0xff]
        %v2922 = vld [vmem:[%s2878 + $0x158] sm:$0xff]
        %v2923 = vld [vmem:[%s2878 + $0x160] sm:$0xff]
        %v2924 = vld [vmem:[%s2878 + $0x168] sm:$0xff]
        %v2925 = vld [vmem:[%s2878 + $0x170] sm:$0xff]
        %v2926 = vld [vmem:[%s2878 + $0x178] sm:$0xff]
        %v2927 = vld [vmem:[%s2878 + $0x180] sm:$0xff]
        %v2928 = vld [vmem:[%s2878 + $0x188] sm:$0xff]
        %v2929 = vld [vmem:[%s2878 + $0x190] sm:$0xff]
        %v2930 = vld [vmem:[%s2878 + $0x198] sm:$0xff]
        %v2931 = vld [vmem:[%s2878 + $0x1a0] sm:$0xff]
        %v2932 = vld [vmem:[%s2878 + $0x1a8] sm:$0xff]
        %v2933 = vld [vmem:[%s2878 + $0x1b0] sm:$0xff]
        %v2934 = vld [vmem:[%s2878 + $0x1b8] sm:$0xff]
        %v2935 = vld [vmem:[%s2878 + $0x1c0] sm:$0xff]
        %v2936 = vld [vmem:[%s2878 + $0x1c8] sm:$0xff]
        %v2937 = vld [vmem:[%s2878 + $0x1d0] sm:$0xff]
        %v2938 = vld [vmem:[%s2878 + $0x1d8] sm:$0xff]
        %v2939 = vld [vmem:[%s2878 + $0x1e0] sm:$0xff]
        %v2940 = vld [vmem:[%s2878 + $0x1e8] sm:$0xff]
        %v2941 = vld [vmem:[%s2878 + $0x1f0] sm:$0xff]
        %v2942 = vld [vmem:[%s2878 + $0x1f8] sm:$0xff]
        %v2945 = vunpack.c.l.b16 %v2876
        %v2946 = vunpack.c.h.b16 %v2876
        %v2947 = vunpack.c.l.b16 %v2877
        %v2948 = vunpack.c.h.b16 %v2877
        %v2949 = vpack.c.b16 %v2945, %v2434
        %v2950 = vpack.c.b16 %v2946, %v2435
        %v2951 = vpack.c.b16 %v2947, %v2436
        %v2952 = vpack.c.b16 %v2948, %v2437
        %v2954 = vshrl.u32 %v2949, 16
        %v2956 = vrot.slane %v2954, 2
        %v2957 = vshll.u32 %v2949, 16
        %v2959 = vrot.slane %v2957, 3
        %v2960 = vor.u32 %v2956, %v2959
        %v2962 = vshrl.u32 %v2950, 16
        %v2964 = vrot.slane %v2962, 2
        %v2965 = vshll.u32 %v2950, 16
        %v2967 = vrot.slane %v2965, 3
        %v2968 = vor.u32 %v2964, %v2967
        %v2970 = vshrl.u32 %v2951, 16
        %v2972 = vrot.slane %v2970, 2
        %v2973 = vshll.u32 %v2951, 16
        %v2975 = vrot.slane %v2973, 3
        %v2976 = vor.u32 %v2972, %v2975
        %v2978 = vshrl.u32 %v2952, 16
        %v2980 = vrot.slane %v2978, 2
        %v2981 = vshll.u32 %v2952, 16
        %v2983 = vrot.slane %v2981, 3
        %v2984 = vor.u32 %v2980, %v2983
        %v3053 = vunpack.c.l.b16 %v2879
        %v3054 = vunpack.c.h.b16 %v2879
        %v3055 = vunpack.c.l.b16 %v2880
        %v3056 = vunpack.c.h.b16 %v2880
        %v3057 = vunpack.c.l.b16 %v2881
        %v3058 = vunpack.c.h.b16 %v2881
        %v3059 = vunpack.c.l.b16 %v2882
        %v3060 = vunpack.c.h.b16 %v2882
        %v3061 = vunpack.c.l.b16 %v2883
        %v3062 = vunpack.c.h.b16 %v2883
        %v3063 = vunpack.c.l.b16 %v2884
        %v3064 = vunpack.c.h.b16 %v2884
        %v3065 = vunpack.c.l.b16 %v2885
        %v3066 = vunpack.c.h.b16 %v2885
        %v3067 = vunpack.c.l.b16 %v2886
        %v3068 = vunpack.c.h.b16 %v2886
        %v3069 = vunpack.c.l.b16 %v2887
        %v3070 = vunpack.c.h.b16 %v2887
        %v3071 = vunpack.c.l.b16 %v2888
        %v3072 = vunpack.c.h.b16 %v2888
        %v3073 = vunpack.c.l.b16 %v2889
        %v3074 = vunpack.c.h.b16 %v2889
        %v3075 = vunpack.c.l.b16 %v2890
        %v3076 = vunpack.c.h.b16 %v2890
        %v3077 = vunpack.c.l.b16 %v2891
        %v3078 = vunpack.c.h.b16 %v2891
        %v3079 = vunpack.c.l.b16 %v2892
        %v3080 = vunpack.c.h.b16 %v2892
        %v3081 = vunpack.c.l.b16 %v2893
        %v3082 = vunpack.c.h.b16 %v2893
        %v3083 = vunpack.c.l.b16 %v2894
        %v3084 = vunpack.c.h.b16 %v2894
        %v3085 = vunpack.c.l.b16 %v2895
        %v3086 = vunpack.c.h.b16 %v2895
        %v3087 = vunpack.c.l.b16 %v2896
        %v3088 = vunpack.c.h.b16 %v2896
        %v3089 = vunpack.c.l.b16 %v2897
        %v3090 = vunpack.c.h.b16 %v2897
        %v3091 = vunpack.c.l.b16 %v2898
        %v3092 = vunpack.c.h.b16 %v2898
        %v3093 = vunpack.c.l.b16 %v2899
        %v3094 = vunpack.c.h.b16 %v2899
        %v3095 = vunpack.c.l.b16 %v2900
        %v3096 = vunpack.c.h.b16 %v2900
        %v3097 = vunpack.c.l.b16 %v2901
        %v3098 = vunpack.c.h.b16 %v2901
        %v3099 = vunpack.c.l.b16 %v2902
        %v3100 = vunpack.c.h.b16 %v2902
        %v3101 = vunpack.c.l.b16 %v2903
        %v3102 = vunpack.c.h.b16 %v2903
        %v3103 = vunpack.c.l.b16 %v2904
        %v3104 = vunpack.c.h.b16 %v2904
        %v3105 = vunpack.c.l.b16 %v2905
        %v3106 = vunpack.c.h.b16 %v2905
        %v3107 = vunpack.c.l.b16 %v2906
        %v3108 = vunpack.c.h.b16 %v2906
        %v3109 = vunpack.c.l.b16 %v2907
        %v3110 = vunpack.c.h.b16 %v2907
        %v3111 = vunpack.c.l.b16 %v2908
        %v3112 = vunpack.c.h.b16 %v2908
        %v3113 = vunpack.c.l.b16 %v2909
        %v3114 = vunpack.c.h.b16 %v2909
        %v3115 = vunpack.c.l.b16 %v2910
        %v3116 = vunpack.c.h.b16 %v2910
        %v3117 = vunpack.c.l.b16 %v2911
        %v3118 = vunpack.c.h.b16 %v2911
        %v3119 = vunpack.c.l.b16 %v2912
        %v3120 = vunpack.c.h.b16 %v2912
        %v3121 = vunpack.c.l.b16 %v2913
        %v3122 = vunpack.c.h.b16 %v2913
        %v3123 = vunpack.c.l.b16 %v2914
        %v3124 = vunpack.c.h.b16 %v2914
        %v3125 = vunpack.c.l.b16 %v2915
        %v3126 = vunpack.c.h.b16 %v2915
        %v3127 = vunpack.c.l.b16 %v2916
        %v3128 = vunpack.c.h.b16 %v2916
        %v3129 = vunpack.c.l.b16 %v2917
        %v3130 = vunpack.c.h.b16 %v2917
        %v3131 = vunpack.c.l.b16 %v2918
        %v3132 = vunpack.c.h.b16 %v2918
        %v3133 = vunpack.c.l.b16 %v2919
        %v3134 = vunpack.c.h.b16 %v2919
        %v3135 = vunpack.c.l.b16 %v2920
        %v3136 = vunpack.c.h.b16 %v2920
        %v3137 = vunpack.c.l.b16 %v2921
        %v3138 = vunpack.c.h.b16 %v2921
        %v3139 = vunpack.c.l.b16 %v2922
        %v3140 = vunpack.c.h.b16 %v2922
        %v3141 = vunpack.c.l.b16 %v2923
        %v3142 = vunpack.c.h.b16 %v2923
        %v3143 = vunpack.c.l.b16 %v2924
        %v3144 = vunpack.c.h.b16 %v2924
        %v3145 = vunpack.c.l.b16 %v2925
        %v3146 = vunpack.c.h.b16 %v2925
        %v3147 = vunpack.c.l.b16 %v2926
        %v3148 = vunpack.c.h.b16 %v2926
        %v3149 = vunpack.c.l.b16 %v2927
        %v3150 = vunpack.c.h.b16 %v2927
        %v3151 = vunpack.c.l.b16 %v2928
        %v3152 = vunpack.c.h.b16 %v2928
        %v3153 = vunpack.c.l.b16 %v2929
        %v3154 = vunpack.c.h.b16 %v2929
        %v3155 = vunpack.c.l.b16 %v2930
        %v3156 = vunpack.c.h.b16 %v2930
        %v3157 = vunpack.c.l.b16 %v2931
        %v3158 = vunpack.c.h.b16 %v2931
        %v3159 = vunpack.c.l.b16 %v2932
        %v3160 = vunpack.c.h.b16 %v2932
        %v3161 = vunpack.c.l.b16 %v2933
        %v3162 = vunpack.c.h.b16 %v2933
        %v3163 = vunpack.c.l.b16 %v2934
        %v3164 = vunpack.c.h.b16 %v2934
        %v3165 = vunpack.c.l.b16 %v2935
        %v3166 = vunpack.c.h.b16 %v2935
        %v3167 = vunpack.c.l.b16 %v2936
        %v3168 = vunpack.c.h.b16 %v2936
        %v3169 = vunpack.c.l.b16 %v2937
        %v3170 = vunpack.c.h.b16 %v2937
        %v3171 = vunpack.c.l.b16 %v2938
        %v3172 = vunpack.c.h.b16 %v2938
        %v3173 = vunpack.c.l.b16 %v2939
        %v3174 = vunpack.c.h.b16 %v2939
        %v3175 = vunpack.c.l.b16 %v2940
        %v3176 = vunpack.c.h.b16 %v2940
        %v3177 = vunpack.c.l.b16 %v2941
        %v3178 = vunpack.c.h.b16 %v2941
        %v3179 = vunpack.c.l.b16 %v2942
        %v3180 = vunpack.c.h.b16 %v2942
        %v3181 = vpack.c.b16 %v3055, %v3053
        %v3182 = vpack.c.b16 %v3056, %v3054
        %v3183 = vpack.c.b16 %v3059, %v3057
        %v3184 = vpack.c.b16 %v3060, %v3058
        %v3185 = vpack.c.b16 %v3063, %v3061
        %v3186 = vpack.c.b16 %v3064, %v3062
        %v3187 = vpack.c.b16 %v3067, %v3065
        %v3188 = vpack.c.b16 %v3068, %v3066
        %v3189 = vpack.c.b16 %v3071, %v3069
        %v3190 = vpack.c.b16 %v3072, %v3070
        %v3191 = vpack.c.b16 %v3075, %v3073
        %v3192 = vpack.c.b16 %v3076, %v3074
        %v3193 = vpack.c.b16 %v3079, %v3077
        %v3194 = vpack.c.b16 %v3080, %v3078
        %v3195 = vpack.c.b16 %v3083, %v3081
        %v3196 = vpack.c.b16 %v3084, %v3082
        %v3197 = vpack.c.b16 %v3087, %v3085
        %v3198 = vpack.c.b16 %v3088, %v3086
        %v3199 = vpack.c.b16 %v3091, %v3089
        %v3200 = vpack.c.b16 %v3092, %v3090
        %v3201 = vpack.c.b16 %v3095, %v3093
        %v3202 = vpack.c.b16 %v3096, %v3094
        %v3203 = vpack.c.b16 %v3099, %v3097
        %v3204 = vpack.c.b16 %v3100, %v3098
        %v3205 = vpack.c.b16 %v3103, %v3101
        %v3206 = vpack.c.b16 %v3104, %v3102
        %v3207 = vpack.c.b16 %v3107, %v3105
        %v3208 = vpack.c.b16 %v3108, %v3106
        %v3209 = vpack.c.b16 %v3111, %v3109
        %v3210 = vpack.c.b16 %v3112, %v3110
        %v3211 = vpack.c.b16 %v3115, %v3113
        %v3212 = vpack.c.b16 %v3116, %v3114
        %v3213 = vpack.c.b16 %v3119, %v3117
        %v3214 = vpack.c.b16 %v3120, %v3118
        %v3215 = vpack.c.b16 %v3123, %v3121
        %v3216 = vpack.c.b16 %v3124, %v3122
        %v3217 = vpack.c.b16 %v3127, %v3125
        %v3218 = vpack.c.b16 %v3128, %v3126
        %v3219 = vpack.c.b16 %v3131, %v3129
        %v3220 = vpack.c.b16 %v3132, %v3130
        %v3221 = vpack.c.b16 %v3135, %v3133
        %v3222 = vpack.c.b16 %v3136, %v3134
        %v3223 = vpack.c.b16 %v3139, %v3137
        %v3224 = vpack.c.b16 %v3140, %v3138
        %v3225 = vpack.c.b16 %v3143, %v3141
        %v3226 = vpack.c.b16 %v3144, %v3142
        %v3227 = vpack.c.b16 %v3147, %v3145
        %v3228 = vpack.c.b16 %v3148, %v3146
        %v3229 = vpack.c.b16 %v3151, %v3149
        %v3230 = vpack.c.b16 %v3152, %v3150
        %v3231 = vpack.c.b16 %v3155, %v3153
        %v3232 = vpack.c.b16 %v3156, %v3154
        %v3233 = vpack.c.b16 %v3159, %v3157
        %v3234 = vpack.c.b16 %v3160, %v3158
        %v3235 = vpack.c.b16 %v3163, %v3161
        %v3236 = vpack.c.b16 %v3164, %v3162
        %v3237 = vpack.c.b16 %v3167, %v3165
        %v3238 = vpack.c.b16 %v3168, %v3166
        %v3239 = vpack.c.b16 %v3171, %v3169
        %v3240 = vpack.c.b16 %v3172, %v3170
        %v3241 = vpack.c.b16 %v3175, %v3173
        %v3242 = vpack.c.b16 %v3176, %v3174
        %v3243 = vpack.c.b16 %v3179, %v3177
        %v3244 = vpack.c.b16 %v3180, %v3178
        %3309 = vmatpush.bf16.msra.mxu0 %v3195
        %3310 = vmatpush.bf16.msra.mxu0 %v3193
        %3311 = vmatpush.bf16.msra.mxu0 %v3191
        %3312 = vmatpush.bf16.msra.mxu0 %v3189
        %3313 = vmatpush.bf16.msra.mxu0 %v3187
        %3314 = vmatpush.bf16.msra.mxu0 %v3185
        %3315 = vmatpush.bf16.msra.mxu0 %v3183
        %3316 = vmatpush.bf16.msra.mxu0 %v3181
        %3317 = vmatmul.bf16.gmra.mxu0 %v2960
        %v3318 = vpop.f32.mrf.mxu0
        %v3319 = vadd.f32 0.0, %v3318
        %v3320 = vpop.f32.mrf.mxu0
        %3321 = vdwg.mxu0
        %3322 = vmatpush.bf16.msra.mxu0 %v3211
        %3323 = vmatpush.bf16.msra.mxu0 %v3209
        %3324 = vmatpush.bf16.msra.mxu0 %v3207
        %3325 = vmatpush.bf16.msra.mxu0 %v3205
        %3326 = vmatpush.bf16.msra.mxu0 %v3203
        %3327 = vmatpush.bf16.msra.mxu0 %v3201
        %3328 = vmatpush.bf16.msra.mxu0 %v3199
        %3329 = vmatpush.bf16.msra.mxu0 %v3197
        %3330 = vmatmul.bf16.gmra.mxu0 %v2968
        %v3331 = vpop.f32.mrf.mxu0
        %v3332 = vadd.f32 %v3319, %v3331
        %v3333 = vpop.f32.mrf.mxu0
        %3334 = vdwg.mxu0
        %3335 = vmatpush.bf16.msra.mxu0 %v3227
        %3336 = vmatpush.bf16.msra.mxu0 %v3225
        %3337 = vmatpush.bf16.msra.mxu0 %v3223
        %3338 = vmatpush.bf16.msra.mxu0 %v3221
        %3339 = vmatpush.bf16.msra.mxu0 %v3219
        %3340 = vmatpush.bf16.msra.mxu0 %v3217
        %3341 = vmatpush.bf16.msra.mxu0 %v3215
        %3342 = vmatpush.bf16.msra.mxu0 %v3213
        %3343 = vmatmul.bf16.gmra.mxu0 %v2976
        %v3344 = vpop.f32.mrf.mxu0
        %v3345 = vadd.f32 %v3332, %v3344
        %v3346 = vpop.f32.mrf.mxu0
        %3347 = vdwg.mxu0
        %3348 = vmatpush.bf16.msra.mxu0 %v3243
        %3349 = vmatpush.bf16.msra.mxu0 %v3241
        %3350 = vmatpush.bf16.msra.mxu0 %v3239
        %3351 = vmatpush.bf16.msra.mxu0 %v3237
        %3352 = vmatpush.bf16.msra.mxu0 %v3235
        %3353 = vmatpush.bf16.msra.mxu0 %v3233
        %3354 = vmatpush.bf16.msra.mxu0 %v3231
        %3355 = vmatpush.bf16.msra.mxu0 %v3229
        %3356 = vmatmul.bf16.gmra.mxu0 %v2984
        %v3357 = vpop.f32.mrf.mxu0
        %v3358 = vadd.f32 %v3345, %v3357
        %v3359 = vpop.f32.mrf.mxu0
        %3360 = vdwg.mxu0
        %3361 = vmatpush.bf16.msra.mxu0 %v3196
        %3362 = vmatpush.bf16.msra.mxu0 %v3194
        %3363 = vmatpush.bf16.msra.mxu0 %v3192
        %3364 = vmatpush.bf16.msra.mxu0 %v3190
        %3365 = vmatpush.bf16.msra.mxu0 %v3188
        %3366 = vmatpush.bf16.msra.mxu0 %v3186
        %3367 = vmatpush.bf16.msra.mxu0 %v3184
        %3368 = vmatpush.bf16.msra.mxu0 %v3182
        %3369 = vmatmul.bf16.gmra.mxu0 %v2960
        %v3370 = vpop.f32.mrf.mxu0
        %v3371 = vadd.f32 0.0, %v3370
        %v3372 = vpop.f32.mrf.mxu0
        %3373 = vdwg.mxu0
        %3374 = vmatpush.bf16.msra.mxu0 %v3212
        %3375 = vmatpush.bf16.msra.mxu0 %v3210
        %3376 = vmatpush.bf16.msra.mxu0 %v3208
        %3377 = vmatpush.bf16.msra.mxu0 %v3206
        %3378 = vmatpush.bf16.msra.mxu0 %v3204
        %3379 = vmatpush.bf16.msra.mxu0 %v3202
        %3380 = vmatpush.bf16.msra.mxu0 %v3200
        %3381 = vmatpush.bf16.msra.mxu0 %v3198
        %3382 = vmatmul.bf16.gmra.mxu0 %v2968
        %v3383 = vpop.f32.mrf.mxu0
        %v3384 = vadd.f32 %v3371, %v3383
        %v3385 = vpop.f32.mrf.mxu0
        %3386 = vdwg.mxu0
        %3387 = vmatpush.bf16.msra.mxu0 %v3228
        %3388 = vmatpush.bf16.msra.mxu0 %v3226
        %3389 = vmatpush.bf16.msra.mxu0 %v3224
        %3390 = vmatpush.bf16.msra.mxu0 %v3222
        %3391 = vmatpush.bf16.msra.mxu0 %v3220
        %3392 = vmatpush.bf16.msra.mxu0 %v3218
        %3393 = vmatpush.bf16.msra.mxu0 %v3216
        %3394 = vmatpush.bf16.msra.mxu0 %v3214
        %3395 = vmatmul.bf16.gmra.mxu0 %v2976
        %v3396 = vpop.f32.mrf.mxu0
        %v3397 = vadd.f32 %v3384, %v3396
        %v3398 = vpop.f32.mrf.mxu0
        %3399 = vdwg.mxu0
        %3400 = vmatpush.bf16.msra.mxu0 %v3244
        %3401 = vmatpush.bf16.msra.mxu0 %v3242
        %3402 = vmatpush.bf16.msra.mxu0 %v3240
        %3403 = vmatpush.bf16.msra.mxu0 %v3238
        %3404 = vmatpush.bf16.msra.mxu0 %v3236
        %3405 = vmatpush.bf16.msra.mxu0 %v3234
        %3406 = vmatpush.bf16.msra.mxu0 %v3232
        %3407 = vmatpush.bf16.msra.mxu0 %v3230
        %3408 = vmatmul.bf16.gmra.mxu0 %v2984
        %v3409 = vpop.f32.mrf.mxu0
        %v3410 = vadd.f32 %v3397, %v3409
        %v3411 = vpop.f32.mrf.mxu0
        %3412 = vdwg.mxu0
        %v3413 = vadd.f32 %v2874, %v3358
        %v3414 = vadd.f32 %v2875, %v3410
        %v3415 = vld [vmem:[#allocation2] sm:$0x88]
        %v3416 = vld [vmem:[#allocation2 + $0x8] sm:$0x88]
        %s3417 = scalar_lea.vmem [#allocation3], 3072
        %v3418 = vld [vmem:[%s3417] sm:$0xff]
        %v3419 = vld [vmem:[%s3417 + $0x8] sm:$0xff]
        %v3420 = vld [vmem:[%s3417 + $0x10] sm:$0xff]
        %v3421 = vld [vmem:[%s3417 + $0x18] sm:$0xff]
        %v3422 = vld [vmem:[%s3417 + $0x20] sm:$0xff]
        %v3423 = vld [vmem:[%s3417 + $0x28] sm:$0xff]
        %v3424 = vld [vmem:[%s3417 + $0x30] sm:$0xff]
        %v3425 = vld [vmem:[%s3417 + $0x38] sm:$0xff]
        %v3426 = vld [vmem:[%s3417 + $0x40] sm:$0xff]
        %v3427 = vld [vmem:[%s3417 + $0x48] sm:$0xff]
        %v3428 = vld [vmem:[%s3417 + $0x50] sm:$0xff]
        %v3429 = vld [vmem:[%s3417 + $0x58] sm:$0xff]
        %v3430 = vld [vmem:[%s3417 + $0x60] sm:$0xff]
        %v3431 = vld [vmem:[%s3417 + $0x68] sm:$0xff]
        %v3432 = vld [vmem:[%s3417 + $0x70] sm:$0xff]
        %v3433 = vld [vmem:[%s3417 + $0x78] sm:$0xff]
        %v3434 = vld [vmem:[%s3417 + $0x80] sm:$0xff]
        %v3435 = vld [vmem:[%s3417 + $0x88] sm:$0xff]
        %v3436 = vld [vmem:[%s3417 + $0x90] sm:$0xff]
        %v3437 = vld [vmem:[%s3417 + $0x98] sm:$0xff]
        %v3438 = vld [vmem:[%s3417 + $0xa0] sm:$0xff]
        %v3439 = vld [vmem:[%s3417 + $0xa8] sm:$0xff]
        %v3440 = vld [vmem:[%s3417 + $0xb0] sm:$0xff]
        %v3441 = vld [vmem:[%s3417 + $0xb8] sm:$0xff]
        %v3442 = vld [vmem:[%s3417 + $0xc0] sm:$0xff]
        %v3443 = vld [vmem:[%s3417 + $0xc8] sm:$0xff]
        %v3444 = vld [vmem:[%s3417 + $0xd0] sm:$0xff]
        %v3445 = vld [vmem:[%s3417 + $0xd8] sm:$0xff]
        %v3446 = vld [vmem:[%s3417 + $0xe0] sm:$0xff]
        %v3447 = vld [vmem:[%s3417 + $0xe8] sm:$0xff]
        %v3448 = vld [vmem:[%s3417 + $0xf0] sm:$0xff]
        %v3449 = vld [vmem:[%s3417 + $0xf8] sm:$0xff]
        %v3450 = vld [vmem:[%s3417 + $0x100] sm:$0xff]
        %v3451 = vld [vmem:[%s3417 + $0x108] sm:$0xff]
        %v3452 = vld [vmem:[%s3417 + $0x110] sm:$0xff]
        %v3453 = vld [vmem:[%s3417 + $0x118] sm:$0xff]
        %v3454 = vld [vmem:[%s3417 + $0x120] sm:$0xff]
        %v3455 = vld [vmem:[%s3417 + $0x128] sm:$0xff]
        %v3456 = vld [vmem:[%s3417 + $0x130] sm:$0xff]
        %v3457 = vld [vmem:[%s3417 + $0x138] sm:$0xff]
        %v3458 = vld [vmem:[%s3417 + $0x140] sm:$0xff]
        %v3459 = vld [vmem:[%s3417 + $0x148] sm:$0xff]
        %v3460 = vld [vmem:[%s3417 + $0x150] sm:$0xff]
        %v3461 = vld [vmem:[%s3417 + $0x158] sm:$0xff]
        %v3462 = vld [vmem:[%s3417 + $0x160] sm:$0xff]
        %v3463 = vld [vmem:[%s3417 + $0x168] sm:$0xff]
        %v3464 = vld [vmem:[%s3417 + $0x170] sm:$0xff]
        %v3465 = vld [vmem:[%s3417 + $0x178] sm:$0xff]
        %v3466 = vld [vmem:[%s3417 + $0x180] sm:$0xff]
        %v3467 = vld [vmem:[%s3417 + $0x188] sm:$0xff]
        %v3468 = vld [vmem:[%s3417 + $0x190] sm:$0xff]
        %v3469 = vld [vmem:[%s3417 + $0x198] sm:$0xff]
        %v3470 = vld [vmem:[%s3417 + $0x1a0] sm:$0xff]
        %v3471 = vld [vmem:[%s3417 + $0x1a8] sm:$0xff]
        %v3472 = vld [vmem:[%s3417 + $0x1b0] sm:$0xff]
        %v3473 = vld [vmem:[%s3417 + $0x1b8] sm:$0xff]
        %v3474 = vld [vmem:[%s3417 + $0x1c0] sm:$0xff]
        %v3475 = vld [vmem:[%s3417 + $0x1c8] sm:$0xff]
        %v3476 = vld [vmem:[%s3417 + $0x1d0] sm:$0xff]
        %v3477 = vld [vmem:[%s3417 + $0x1d8] sm:$0xff]
        %v3478 = vld [vmem:[%s3417 + $0x1e0] sm:$0xff]
        %v3479 = vld [vmem:[%s3417 + $0x1e8] sm:$0xff]
        %v3480 = vld [vmem:[%s3417 + $0x1f0] sm:$0xff]
        %v3481 = vld [vmem:[%s3417 + $0x1f8] sm:$0xff]
        %v3484 = vunpack.c.l.b16 %v3415
        %v3485 = vunpack.c.h.b16 %v3415
        %v3486 = vunpack.c.l.b16 %v3416
        %v3487 = vunpack.c.h.b16 %v3416
        %v3488 = vpack.c.b16 %v2945, %v3484
        %v3489 = vpack.c.b16 %v2946, %v3485
        %v3490 = vpack.c.b16 %v2947, %v3486
        %v3491 = vpack.c.b16 %v2948, %v3487
        %v3492 = vrot.slane %v3488, 3
        %v3493 = vrot.slane %v3489, 3
        %v3494 = vrot.slane %v3490, 3
        %v3495 = vrot.slane %v3491, 3
        %v3564 = vunpack.c.l.b16 %v3418
        %v3565 = vunpack.c.h.b16 %v3418
        %v3566 = vunpack.c.l.b16 %v3419
        %v3567 = vunpack.c.h.b16 %v3419
        %v3568 = vunpack.c.l.b16 %v3420
        %v3569 = vunpack.c.h.b16 %v3420
        %v3570 = vunpack.c.l.b16 %v3421
        %v3571 = vunpack.c.h.b16 %v3421
        %v3572 = vunpack.c.l.b16 %v3422
        %v3573 = vunpack.c.h.b16 %v3422
        %v3574 = vunpack.c.l.b16 %v3423
        %v3575 = vunpack.c.h.b16 %v3423
        %v3576 = vunpack.c.l.b16 %v3424
        %v3577 = vunpack.c.h.b16 %v3424
        %v3578 = vunpack.c.l.b16 %v3425
        %v3579 = vunpack.c.h.b16 %v3425
        %v3580 = vunpack.c.l.b16 %v3426
        %v3581 = vunpack.c.h.b16 %v3426
        %v3582 = vunpack.c.l.b16 %v3427
        %v3583 = vunpack.c.h.b16 %v3427
        %v3584 = vunpack.c.l.b16 %v3428
        %v3585 = vunpack.c.h.b16 %v3428
        %v3586 = vunpack.c.l.b16 %v3429
        %v3587 = vunpack.c.h.b16 %v3429
        %v3588 = vunpack.c.l.b16 %v3430
        %v3589 = vunpack.c.h.b16 %v3430
        %v3590 = vunpack.c.l.b16 %v3431
        %v3591 = vunpack.c.h.b16 %v3431
        %v3592 = vunpack.c.l.b16 %v3432
        %v3593 = vunpack.c.h.b16 %v3432
        %v3594 = vunpack.c.l.b16 %v3433
        %v3595 = vunpack.c.h.b16 %v3433
        %v3596 = vunpack.c.l.b16 %v3434
        %v3597 = vunpack.c.h.b16 %v3434
        %v3598 = vunpack.c.l.b16 %v3435
        %v3599 = vunpack.c.h.b16 %v3435
        %v3600 = vunpack.c.l.b16 %v3436
        %v3601 = vunpack.c.h.b16 %v3436
        %v3602 = vunpack.c.l.b16 %v3437
        %v3603 = vunpack.c.h.b16 %v3437
        %v3604 = vunpack.c.l.b16 %v3438
        %v3605 = vunpack.c.h.b16 %v3438
        %v3606 = vunpack.c.l.b16 %v3439
        %v3607 = vunpack.c.h.b16 %v3439
        %v3608 = vunpack.c.l.b16 %v3440
        %v3609 = vunpack.c.h.b16 %v3440
        %v3610 = vunpack.c.l.b16 %v3441
        %v3611 = vunpack.c.h.b16 %v3441
        %v3612 = vunpack.c.l.b16 %v3442
        %v3613 = vunpack.c.h.b16 %v3442
        %v3614 = vunpack.c.l.b16 %v3443
        %v3615 = vunpack.c.h.b16 %v3443
        %v3616 = vunpack.c.l.b16 %v3444
        %v3617 = vunpack.c.h.b16 %v3444
        %v3618 = vunpack.c.l.b16 %v3445
        %v3619 = vunpack.c.h.b16 %v3445
        %v3620 = vunpack.c.l.b16 %v3446
        %v3621 = vunpack.c.h.b16 %v3446
        %v3622 = vunpack.c.l.b16 %v3447
        %v3623 = vunpack.c.h.b16 %v3447
        %v3624 = vunpack.c.l.b16 %v3448
        %v3625 = vunpack.c.h.b16 %v3448
        %v3626 = vunpack.c.l.b16 %v3449
        %v3627 = vunpack.c.h.b16 %v3449
        %v3628 = vunpack.c.l.b16 %v3450
        %v3629 = vunpack.c.h.b16 %v3450
        %v3630 = vunpack.c.l.b16 %v3451
        %v3631 = vunpack.c.h.b16 %v3451
        %v3632 = vunpack.c.l.b16 %v3452
        %v3633 = vunpack.c.h.b16 %v3452
        %v3634 = vunpack.c.l.b16 %v3453
        %v3635 = vunpack.c.h.b16 %v3453
        %v3636 = vunpack.c.l.b16 %v3454
        %v3637 = vunpack.c.h.b16 %v3454
        %v3638 = vunpack.c.l.b16 %v3455
        %v3639 = vunpack.c.h.b16 %v3455
        %v3640 = vunpack.c.l.b16 %v3456
        %v3641 = vunpack.c.h.b16 %v3456
        %v3642 = vunpack.c.l.b16 %v3457
        %v3643 = vunpack.c.h.b16 %v3457
        %v3644 = vunpack.c.l.b16 %v3458
        %v3645 = vunpack.c.h.b16 %v3458
        %v3646 = vunpack.c.l.b16 %v3459
        %v3647 = vunpack.c.h.b16 %v3459
        %v3648 = vunpack.c.l.b16 %v3460
        %v3649 = vunpack.c.h.b16 %v3460
        %v3650 = vunpack.c.l.b16 %v3461
        %v3651 = vunpack.c.h.b16 %v3461
        %v3652 = vunpack.c.l.b16 %v3462
        %v3653 = vunpack.c.h.b16 %v3462
        %v3654 = vunpack.c.l.b16 %v3463
        %v3655 = vunpack.c.h.b16 %v3463
        %v3656 = vunpack.c.l.b16 %v3464
        %v3657 = vunpack.c.h.b16 %v3464
        %v3658 = vunpack.c.l.b16 %v3465
        %v3659 = vunpack.c.h.b16 %v3465
        %v3660 = vunpack.c.l.b16 %v3466
        %v3661 = vunpack.c.h.b16 %v3466
        %v3662 = vunpack.c.l.b16 %v3467
        %v3663 = vunpack.c.h.b16 %v3467
        %v3664 = vunpack.c.l.b16 %v3468
        %v3665 = vunpack.c.h.b16 %v3468
        %v3666 = vunpack.c.l.b16 %v3469
        %v3667 = vunpack.c.h.b16 %v3469
        %v3668 = vunpack.c.l.b16 %v3470
        %v3669 = vunpack.c.h.b16 %v3470
        %v3670 = vunpack.c.l.b16 %v3471
        %v3671 = vunpack.c.h.b16 %v3471
        %v3672 = vunpack.c.l.b16 %v3472
        %v3673 = vunpack.c.h.b16 %v3472
        %v3674 = vunpack.c.l.b16 %v3473
        %v3675 = vunpack.c.h.b16 %v3473
        %v3676 = vunpack.c.l.b16 %v3474
        %v3677 = vunpack.c.h.b16 %v3474
        %v3678 = vunpack.c.l.b16 %v3475
        %v3679 = vunpack.c.h.b16 %v3475
        %v3680 = vunpack.c.l.b16 %v3476
        %v3681 = vunpack.c.h.b16 %v3476
        %v3682 = vunpack.c.l.b16 %v3477
        %v3683 = vunpack.c.h.b16 %v3477
        %v3684 = vunpack.c.l.b16 %v3478
        %v3685 = vunpack.c.h.b16 %v3478
        %v3686 = vunpack.c.l.b16 %v3479
        %v3687 = vunpack.c.h.b16 %v3479
        %v3688 = vunpack.c.l.b16 %v3480
        %v3689 = vunpack.c.h.b16 %v3480
        %v3690 = vunpack.c.l.b16 %v3481
        %v3691 = vunpack.c.h.b16 %v3481
        %v3692 = vpack.c.b16 %v3566, %v3564
        %v3693 = vpack.c.b16 %v3567, %v3565
        %v3694 = vpack.c.b16 %v3570, %v3568
        %v3695 = vpack.c.b16 %v3571, %v3569
        %v3696 = vpack.c.b16 %v3574, %v3572
        %v3697 = vpack.c.b16 %v3575, %v3573
        %v3698 = vpack.c.b16 %v3578, %v3576
        %v3699 = vpack.c.b16 %v3579, %v3577
        %v3700 = vpack.c.b16 %v3582, %v3580
        %v3701 = vpack.c.b16 %v3583, %v3581
        %v3702 = vpack.c.b16 %v3586, %v3584
        %v3703 = vpack.c.b16 %v3587, %v3585
        %v3704 = vpack.c.b16 %v3590, %v3588
        %v3705 = vpack.c.b16 %v3591, %v3589
        %v3706 = vpack.c.b16 %v3594, %v3592
        %v3707 = vpack.c.b16 %v3595, %v3593
        %v3708 = vpack.c.b16 %v3598, %v3596
        %v3709 = vpack.c.b16 %v3599, %v3597
        %v3710 = vpack.c.b16 %v3602, %v3600
        %v3711 = vpack.c.b16 %v3603, %v3601
        %v3712 = vpack.c.b16 %v3606, %v3604
        %v3713 = vpack.c.b16 %v3607, %v3605
        %v3714 = vpack.c.b16 %v3610, %v3608
        %v3715 = vpack.c.b16 %v3611, %v3609
        %v3716 = vpack.c.b16 %v3614, %v3612
        %v3717 = vpack.c.b16 %v3615, %v3613
        %v3718 = vpack.c.b16 %v3618, %v3616
        %v3719 = vpack.c.b16 %v3619, %v3617
        %v3720 = vpack.c.b16 %v3622, %v3620
        %v3721 = vpack.c.b16 %v3623, %v3621
        %v3722 = vpack.c.b16 %v3626, %v3624
        %v3723 = vpack.c.b16 %v3627, %v3625
        %v3724 = vpack.c.b16 %v3630, %v3628
        %v3725 = vpack.c.b16 %v3631, %v3629
        %v3726 = vpack.c.b16 %v3634, %v3632
        %v3727 = vpack.c.b16 %v3635, %v3633
        %v3728 = vpack.c.b16 %v3638, %v3636
        %v3729 = vpack.c.b16 %v3639, %v3637
        %v3730 = vpack.c.b16 %v3642, %v3640
        %v3731 = vpack.c.b16 %v3643, %v3641
        %v3732 = vpack.c.b16 %v3646, %v3644
        %v3733 = vpack.c.b16 %v3647, %v3645
        %v3734 = vpack.c.b16 %v3650, %v3648
        %v3735 = vpack.c.b16 %v3651, %v3649
        %v3736 = vpack.c.b16 %v3654, %v3652
        %v3737 = vpack.c.b16 %v3655, %v3653
        %v3738 = vpack.c.b16 %v3658, %v3656
        %v3739 = vpack.c.b16 %v3659, %v3657
        %v3740 = vpack.c.b16 %v3662, %v3660
        %v3741 = vpack.c.b16 %v3663, %v3661
        %v3742 = vpack.c.b16 %v3666, %v3664
        %v3743 = vpack.c.b16 %v3667, %v3665
        %v3744 = vpack.c.b16 %v3670, %v3668
        %v3745 = vpack.c.b16 %v3671, %v3669
        %v3746 = vpack.c.b16 %v3674, %v3672
        %v3747 = vpack.c.b16 %v3675, %v3673
        %v3748 = vpack.c.b16 %v3678, %v3676
        %v3749 = vpack.c.b16 %v3679, %v3677
        %v3750 = vpack.c.b16 %v3682, %v3680
        %v3751 = vpack.c.b16 %v3683, %v3681
        %v3752 = vpack.c.b16 %v3686, %v3684
        %v3753 = vpack.c.b16 %v3687, %v3685
        %v3754 = vpack.c.b16 %v3690, %v3688
        %v3755 = vpack.c.b16 %v3691, %v3689
        %3820 = vmatpush.bf16.msra.mxu0 %v3706
        %3821 = vmatpush.bf16.msra.mxu0 %v3704
        %3822 = vmatpush.bf16.msra.mxu0 %v3702
        %3823 = vmatpush.bf16.msra.mxu0 %v3700
        %3824 = vmatpush.bf16.msra.mxu0 %v3698
        %3825 = vmatpush.bf16.msra.mxu0 %v3696
        %3826 = vmatpush.bf16.msra.mxu0 %v3694
        %3827 = vmatpush.bf16.msra.mxu0 %v3692
        %3828 = vmatmul.bf16.gmra.mxu0 %v3492
        %v3829 = vpop.f32.mrf.mxu0
        %v3830 = vadd.f32 0.0, %v3829
        %v3831 = vpop.f32.mrf.mxu0
        %3832 = vdwg.mxu0
        %3833 = vmatpush.bf16.msra.mxu0 %v3722
        %3834 = vmatpush.bf16.msra.mxu0 %v3720
        %3835 = vmatpush.bf16.msra.mxu0 %v3718
        %3836 = vmatpush.bf16.msra.mxu0 %v3716
        %3837 = vmatpush.bf16.msra.mxu0 %v3714
        %3838 = vmatpush.bf16.msra.mxu0 %v3712
        %3839 = vmatpush.bf16.msra.mxu0 %v3710
        %3840 = vmatpush.bf16.msra.mxu0 %v3708
        %3841 = vmatmul.bf16.gmra.mxu0 %v3493
        %v3842 = vpop.f32.mrf.mxu0
        %v3843 = vadd.f32 %v3830, %v3842
        %v3844 = vpop.f32.mrf.mxu0
        %3845 = vdwg.mxu0
        %3846 = vmatpush.bf16.msra.mxu0 %v3738
        %3847 = vmatpush.bf16.msra.mxu0 %v3736
        %3848 = vmatpush.bf16.msra.mxu0 %v3734
        %3849 = vmatpush.bf16.msra.mxu0 %v3732
        %3850 = vmatpush.bf16.msra.mxu0 %v3730
        %3851 = vmatpush.bf16.msra.mxu0 %v3728
        %3852 = vmatpush.bf16.msra.mxu0 %v3726
        %3853 = vmatpush.bf16.msra.mxu0 %v3724
        %3854 = vmatmul.bf16.gmra.mxu0 %v3494
        %v3855 = vpop.f32.mrf.mxu0
        %v3856 = vadd.f32 %v3843, %v3855
        %v3857 = vpop.f32.mrf.mxu0
        %3858 = vdwg.mxu0
        %3859 = vmatpush.bf16.msra.mxu0 %v3754
        %3860 = vmatpush.bf16.msra.mxu0 %v3752
        %3861 = vmatpush.bf16.msra.mxu0 %v3750
        %3862 = vmatpush.bf16.msra.mxu0 %v3748
        %3863 = vmatpush.bf16.msra.mxu0 %v3746
        %3864 = vmatpush.bf16.msra.mxu0 %v3744
        %3865 = vmatpush.bf16.msra.mxu0 %v3742
        %3866 = vmatpush.bf16.msra.mxu0 %v3740
        %3867 = vmatmul.bf16.gmra.mxu0 %v3495
        %v3868 = vpop.f32.mrf.mxu0
        %v3869 = vadd.f32 %v3856, %v3868
        %v3870 = vpop.f32.mrf.mxu0
        %3871 = vdwg.mxu0
        %3872 = vmatpush.bf16.msra.mxu0 %v3707
        %3873 = vmatpush.bf16.msra.mxu0 %v3705
        %3874 = vmatpush.bf16.msra.mxu0 %v3703
        %3875 = vmatpush.bf16.msra.mxu0 %v3701
        %3876 = vmatpush.bf16.msra.mxu0 %v3699
        %3877 = vmatpush.bf16.msra.mxu0 %v3697
        %3878 = vmatpush.bf16.msra.mxu0 %v3695
        %3879 = vmatpush.bf16.msra.mxu0 %v3693
        %3880 = vmatmul.bf16.gmra.mxu0 %v3492
        %v3881 = vpop.f32.mrf.mxu0
        %v3882 = vadd.f32 0.0, %v3881
        %v3883 = vpop.f32.mrf.mxu0
        %3884 = vdwg.mxu0
        %3885 = vmatpush.bf16.msra.mxu0 %v3723
        %3886 = vmatpush.bf16.msra.mxu0 %v3721
        %3887 = vmatpush.bf16.msra.mxu0 %v3719
        %3888 = vmatpush.bf16.msra.mxu0 %v3717
        %3889 = vmatpush.bf16.msra.mxu0 %v3715
        %3890 = vmatpush.bf16.msra.mxu0 %v3713
        %3891 = vmatpush.bf16.msra.mxu0 %v3711
        %3892 = vmatpush.bf16.msra.mxu0 %v3709
        %3893 = vmatmul.bf16.gmra.mxu0 %v3493
        %v3894 = vpop.f32.mrf.mxu0
        %v3895 = vadd.f32 %v3882, %v3894
        %v3896 = vpop.f32.mrf.mxu0
        %3897 = vdwg.mxu0
        %3898 = vmatpush.bf16.msra.mxu0 %v3739
        %3899 = vmatpush.bf16.msra.mxu0 %v3737
        %3900 = vmatpush.bf16.msra.mxu0 %v3735
        %3901 = vmatpush.bf16.msra.mxu0 %v3733
        %3902 = vmatpush.bf16.msra.mxu0 %v3731
        %3903 = vmatpush.bf16.msra.mxu0 %v3729
        %3904 = vmatpush.bf16.msra.mxu0 %v3727
        %3905 = vmatpush.bf16.msra.mxu0 %v3725
        %3906 = vmatmul.bf16.gmra.mxu0 %v3494
        %v3907 = vpop.f32.mrf.mxu0
        %v3908 = vadd.f32 %v3895, %v3907
        %v3909 = vpop.f32.mrf.mxu0
        %3910 = vdwg.mxu0
        %3911 = vmatpush.bf16.msra.mxu0 %v3755
        %3912 = vmatpush.bf16.msra.mxu0 %v3753
        %3913 = vmatpush.bf16.msra.mxu0 %v3751
        %3914 = vmatpush.bf16.msra.mxu0 %v3749
        %3915 = vmatpush.bf16.msra.mxu0 %v3747
        %3916 = vmatpush.bf16.msra.mxu0 %v3745
        %3917 = vmatpush.bf16.msra.mxu0 %v3743
        %3918 = vmatpush.bf16.msra.mxu0 %v3741
        %3919 = vmatmul.bf16.gmra.mxu0 %v3495
        %v3920 = vpop.f32.mrf.mxu0
        %v3921 = vadd.f32 %v3908, %v3920
        %v3922 = vpop.f32.mrf.mxu0
        %3923 = vdwg.mxu0
        %v3924 = vadd.f32 %v3413, %v3869
        %v3925 = vadd.f32 %v3414, %v3921
        %v3926 = vxor.u32 %v3924, 2147483648
        %v3927 = vxor.u32 %v3925, 2147483648
        %v3928 = vmul.f32 %v3926, 1.442695
        %v3929 = vpow.pop %v3928
        %v3930 = vmul.f32 %v3927, 1.442695
        %v3931 = vpow.pop %v3930
        %v3932 = vadd.f32 %v3929, 1.0
        %v3933 = vadd.f32 %v3931, 1.0
        %v3934 = vrcp.pop %v3932
        %v3935 = vmul.f32 %v3932, %v3934
        %v3936 = vsub.f32 1.0, %v3935
        %v3937 = vmul.f32 %v3934, %v3936
        %v3938 = vadd.f32 %v3934, %v3937
        %vm3939 = vweird.f32 %v3932
        %vm3940 = vweird.f32 %v3934
        %vm3941 = vmor %vm3939, %vm3940
        %v3942 = vsel %vm3941, %v3934, %v3938
        %v3943 = vand.u32 2147483647, %v3932
        %vm3944 = vcmp.eq.f32.partialorder %v3943, 8.507059e+37
        %v3945 = vand.u32 %v3932, 2147483648
        %v3946 = vor.u32 1.1754944e-38, %v3945
        %v3947 = vsel %vm3944, %v3946, %v3942
        %v3948 = vmul.f32 1.0, %v3947
        %v3949 = vrcp.pop %v3933
        %v3950 = vmul.f32 %v3933, %v3949
        %v3951 = vsub.f32 1.0, %v3950
        %v3952 = vmul.f32 %v3949, %v3951
        %v3953 = vadd.f32 %v3949, %v3952
        %vm3954 = vweird.f32 %v3933
        %vm3955 = vweird.f32 %v3949
        %vm3956 = vmor %vm3954, %vm3955
        %v3957 = vsel %vm3956, %v3949, %v3953
        %v3958 = vand.u32 2147483647, %v3933
        %vm3959 = vcmp.eq.f32.partialorder %v3958, 8.507059e+37
        %v3960 = vand.u32 %v3933, 2147483648
        %v3961 = vor.u32 1.1754944e-38, %v3960
        %v3962 = vsel %vm3959, %v3961, %v3957
        %v3963 = vmul.f32 1.0, %v3962
        %v3964 = vld [vmem:[%s159] sm:$0xff]
        %v3965 = vld [vmem:[%s159 + $0x8] sm:$0xff]
        %v3966 = vld [vmem:[%s159 + $0x10] sm:$0xff]
        %v3967 = vld [vmem:[%s159 + $0x18] sm:$0xff]
        %v3968 = vld [vmem:[%s159 + $0x20] sm:$0xff]
        %v3969 = vld [vmem:[%s159 + $0x28] sm:$0xff]
        %v3970 = vld [vmem:[%s159 + $0x30] sm:$0xff]
        %v3971 = vld [vmem:[%s159 + $0x38] sm:$0xff]
        %v3972 = vmul.f32 %v3948, %v3964
        %v3973 = vmul.f32 %v3963, %v3965
        %v3974 = vmul.f32 %v3948, %v3966
        %v3975 = vmul.f32 %v3963, %v3967
        %v3976 = vmul.f32 %v3948, %v3968
        %v3977 = vmul.f32 %v3963, %v3969
        %v3978 = vmul.f32 %v3948, %v3970
        %v3979 = vmul.f32 %v3963, %v3971
        %3980 = vst [vmem:[%s180] sm:$0xff] %v3972
        %3981 = vst [vmem:[%s180 + $0x8] sm:$0xff] %v3973
        %3982 = vst [vmem:[%s180 + $0x10] sm:$0xff] %v3974
        %3983 = vst [vmem:[%s180 + $0x18] sm:$0xff] %v3975
        %3984 = vst [vmem:[%s180 + $0x20] sm:$0xff] %v3976
        %3985 = vst [vmem:[%s180 + $0x28] sm:$0xff] %v3977
        %3986 = vst [vmem:[%s180 + $0x30] sm:$0xff] %v3978
        %3987 = vst [vmem:[%s180 + $0x38] sm:$0xff] %v3979
        %s3988 = sand.u32 %s75, 1
        %s3989 = scalar_lea.sflag [#allocation5], %s3988
        %s3990 = sand.u32 %s75, 1
        %s3991 = smul.addr %s3990, 64
        %s3992 = scalar_lea.vmem [#allocation8], %s3991
        // Predicated region
        $region37: #{tpu_custom_call.1} parent=27 // pred_check
          %p3993 = pneg %p85
        $region38: #{tpu_custom_call.1} parent=27 // pred_check_branch
          %3995 = sbr.rel (%p3993) target = $region40
        $region39: #{tpu_custom_call.1} parent=27 // pred_region
          %3997 = vsyncadd %s3989, 0
          %s3998 = smul.addr %s20, 8
          %s3999 = smul.addr %s3998, 8
          %s4000 = scalar_lea.hbm %s2, %s3999
          %s4001 = sshll.u32 %s3992, 4
          %s4002 = int_to_ptr.vmem [resolvable:$true] %s4001
          %s4003 = sshll.u32 %s4000, 4
          %s4004 = int_to_ptr.hbm [resolvable:$true] %s4003
          %4009 = dma.vmem_to_hbm [thread:$0]  %s4002, 1024, %s4004, %s3989, 256, 256, 16
        $region40: #{tpu_custom_call.1} parent=27 // pred_fallthru
          _
      $region28: #{tpu_custom_call.1} parent=5 // pred_fallthru
        _
      %p4010 = scmp.le.s32.totalorder 2, %s15
      // Predicated region
      $region41: #{tpu_custom_call.1} parent=5 // pred_check
        %p4011 = pneg %p4010
      $region42: #{tpu_custom_call.1} parent=5 // pred_check_branch
        %4013 = sbr.rel (%p4011) target = $region44
      $region43: #{tpu_custom_call.1} parent=5 // pred_region
        %s4014 = ssub.s32 %s15, 2
        // Predicated region
        $region45: #{tpu_custom_call.1} parent=43 // pred_check
          %p4015 = pneg %p91
        $region46: #{tpu_custom_call.1} parent=43 // pred_check_branch
          %4017 = sbr.rel (%p4015) target = $region48
        $region47: #{tpu_custom_call.1} parent=43 // pred_region
          %s4018 = sand.u32 %s76, 1
          %s4019 = scalar_lea.sflag [#allocation5], %s4018
          %s4020 = sand.u32 %s76, 1
          %s4021 = smul.addr %s4020, 64
          %s4022 = scalar_lea.vmem [#allocation8], %s4021
          %4024 = dma.done %s4019, 1024
        $region48: #{tpu_custom_call.1} parent=43 // pred_fallthru
          _
      $region44: #{tpu_custom_call.1} parent=5 // pred_fallthru
        _
    $region6: #{tpu_custom_call.1} parent=1 // loop_footer
      %s19 = sadd.s32 1, %s15
    $region7: #{tpu_custom_call.1} parent=1 // loop_footer_branch
      %14 = sbr.rel target = $region3
    $region8: #{tpu_custom_call.1} parent=1 // loop_exit
      _
    %4025 = vsyncpa [#allocation4], 1
    %s4026 = scalar_lea.sflag [#allocation4], 1
    %4027 = vsyncpa %s4026, 1
    %4028 = vsyncpa [#allocation7], 1
    %s4029 = scalar_lea.sflag [#allocation7], 1
    %4030 = vsyncpa %s4029, 1
    %4031 = vsyncpa [#allocation5], 1
    %s4032 = scalar_lea.sflag [#allocation5], 1
    %4033 = vsyncpa %s4032, 1

</llo_original>
